<compile_context>
chip_gen: v5e
topology: v5e:2x2
jax: 0.10.0
libtpu: 0.0.40
codegen_flags: <defaults>
</compile_context>

<pallas_src>
import numpy as np
import jax
import jax.numpy as jnp
from jax.experimental import pallas as pl
from jax.experimental.pallas import tpu as pltpu

# Model hyper-parameters (args.*) -- small, self-consistent choices.
NHID = 32
NINP = 32
NLAYERS = 2
VOCAB = 64
BETA = 3.0

LANE = 128                   # TPU lane width; slab column width
VPAD = 128                   # vocab padded to lane width for lane-dense stores
GW = 4 * NHID                # LSTM gate width
NEG_INF = -1e30              # additive score mask for padded attention positions
D2B_PAD = -1e9               # bias for padded vocab logits (exp underflows to 0)

assert GW <= LANE and 3 * NHID <= LANE and VOCAB <= VPAD and NHID % 8 == 0
assert NLAYERS + 4 <= 8      # small-vector block of the parameter slab


def _align8(n):
    return (n + 7) & ~7


def _build_offsets():
    """Row offsets of every parameter inside the packed (rows, 128) slab."""
    r = 0
    whh = [0] * NLAYERS
    wih = [0] * NLAYERS        # wih[0] unused: layer-0 input gates precomputed outside
    whh[0] = r; r += NHID
    for l in range(1, NLAYERS):
        wih[l] = r; r += NHID
        whh[l] = r; r += NHID
    d1wa = r; r += NHID        # classifier layer-1 weights, "output" half
    d1wb = r; r += NHID        # classifier layer-1 weights, "concat_feat" half
    d2w = r; r += GW           # classifier layer-2 weights (4H, VPAD)
    answ = r; r += NHID        # fused ans_q|ans_h|ans_i projection (H, 3H)
    wc = r; r += 3 * NHID      # concat linear (3H, H)
    wabd = r; r += _align8(3 * NHID)   # block-diagonal Wa score weights (3H, 3)
    exp = r; r += 8            # 0/1 stream->lane expander (3, 3H)
    vec = r; r += 8            # small-vector block (biases)
    mask = r                   # (L, 3) additive score mask; last (L-dependent size)
    return dict(whh=whh, wih=wih, d1wa=d1wa, d1wb=d1wb, d2w=d2w, answ=answ,
                wc=wc, wabd=wabd, exp=exp, vec=vec, mask=mask)


_OFF = _build_offsets()


def _lstm_cell(gates, c_prev):
    # PyTorch gate order: i, f, g, o
    H = NHID
    i_g = jax.nn.sigmoid(gates[:, 0 * H:1 * H])
    f_g = jax.nn.sigmoid(gates[:, 1 * H:2 * H])
    g_g = jnp.tanh(gates[:, 2 * H:3 * H])
    o_g = jax.nn.sigmoid(gates[:, 3 * H:4 * H])
    c_new = f_g * c_prev + i_g * g_g
    h_new = o_g * jnp.tanh(c_new)
    return h_new, c_new


# ---------------------------------------------------------------------------
# Pallas kernel: one invocation runs the whole answer sequence.
# ---------------------------------------------------------------------------
def _netg_kernel(xg0_ref, hc0_ref, feat_ref, slab_ref, logp_ref, hcout_ref):
    H = NHID
    S3 = 3 * H
    T = xg0_ref.shape[0]
    B = xg0_ref.shape[1]
    L = feat_ref.shape[1]

    # ---- one-time loads of small, loop-invariant operands ----
    feat = feat_ref[...]                                                 # (B, L, 3H)
    mask = slab_ref[_OFF['mask']:_OFF['mask'] + L, 0:3][None]            # (1, L, 3)
    lb = [slab_ref[_OFF['vec'] + l:_OFF['vec'] + l + 1, :]               # (1, 4H)
          for l in range(NLAYERS)]
    d1b = slab_ref[_OFF['vec'] + NLAYERS:_OFF['vec'] + NLAYERS + 1, :]
    d2b = slab_ref[_OFF['vec'] + NLAYERS + 1:_OFF['vec'] + NLAYERS + 2, :]     # (1, VPAD)
    ans_b = slab_ref[_OFF['vec'] + NLAYERS + 2:_OFF['vec'] + NLAYERS + 3, 0:S3]
    bc = slab_ref[_OFF['vec'] + NLAYERS + 3:_OFF['vec'] + NLAYERS + 4, 0:H]

    h = [hc0_ref[0, l] for l in range(NLAYERS)]                          # (B, H) each
    c = [hc0_ref[1, l] for l in range(NLAYERS)]

    # T is tiny -> fully-unrolled static loop (static store offsets, no carry
    # plumbing).  For long sequences move t onto an "arbitrary" grid axis.
    for t in range(T):
        # ---- stacked LSTM (layer-0 input->gate product precomputed outside) ----
        g = (xg0_ref[t]
             + jnp.dot(h[0], slab_ref[_OFF['whh'][0]:_OFF['whh'][0] + H, :],
                       preferred_element_type=jnp.float32)
             + lb[0])
        h[0], c[0] = _lstm_cell(g, c[0])
        x = h[0]
        for l in range(1, NLAYERS):                    # concat-free fused-by-sum gates
            g = (jnp.dot(x, slab_ref[_OFF['wih'][l]:_OFF['wih'][l] + H, :],
                         preferred_element_type=jnp.float32)
                 + jnp.dot(h[l], slab_ref[_OFF['whh'][l]:_OFF['whh'][l] + H, :],
                           preferred_element_type=jnp.float32)
                 + lb[l])
            h[l], c[l] = _lstm_cell(g, c[l])
            x = h[l]                                   # inter-layer dropout == identity
        output = x                                                        # (B, H)

        # ---- fused 3-stream attention (question / history / image) ----
        answ = slab_ref[_OFF['answ']:_OFF['answ'] + H, 0:S3]              # (H, 3H)
        ia = jnp.dot(output, answ, preferred_element_type=jnp.float32) + ans_b   # (B, 3H)
        att = jnp.tanh(feat + ia[:, None, :])                             # (B, L, 3H)
        # per-stream score = <att_chunk, wa_s>; Wa_* biases dropped (softmax shift-inv.)
        wa_bd = slab_ref[_OFF['wabd']:_OFF['wabd'] + S3, 0:3]             # (3H, 3) block-diag
        scores = (jnp.dot(att.reshape(B * L, S3), wa_bd,
                          preferred_element_type=jnp.float32)
                  .reshape(B, L, 3)) + mask                               # (B, L, 3)
        mmax = jnp.max(scores, axis=1, keepdims=True)
        e = jnp.exp(scores - mmax)
        w = e * pl.reciprocal(jnp.sum(e, axis=1, keepdims=True), approx=True)
        expand = slab_ref[_OFF['exp']:_OFF['exp'] + 3, 0:S3]              # (3, 3H) 0/1
        w_exp = (jnp.dot(w.reshape(B * L, 3), expand,
                         preferred_element_type=jnp.float32)
                 .reshape(B, L, S3))
        attn = jnp.sum(feat * w_exp, axis=1)                              # (B, 3H) == bmm
        wc = slab_ref[_OFF['wc']:_OFF['wc'] + S3, 0:H]                    # (3H, H)
        concat_feat = jnp.tanh(
            jnp.dot(attn, wc, preferred_element_type=jnp.float32) + bc)   # (B, H)

        # ---- SimpleClassifier decoder (concatenation-free) + log_softmax ----
        hid1 = jax.nn.relu(
            jnp.dot(output, slab_ref[_OFF['d1wa']:_OFF['d1wa'] + H, :],
                    preferred_element_type=jnp.float32)
            + jnp.dot(concat_feat, slab_ref[_OFF['d1wb']:_OFF['d1wb'] + H, :],
                      preferred_element_type=jnp.float32)
            + d1b)
        z = BETA * (jnp.dot(hid1, slab_ref[_OFF['d2w']:_OFF['d2w'] + GW, :],
                            preferred_element_type=jnp.float32) + d2b)    # (B, VPAD)
        zs = z - jnp.max(z, axis=-1, keepdims=True)
        logp = zs - jnp.log(jnp.sum(jnp.exp(zs), axis=-1, keepdims=True))
        logp_ref[:, t:t + 1, :] = logp[:, None, :]                        # lane-dense store

    # Final hidden/cell state written back once.
    for l in range(NLAYERS):
        hcout_ref[0, l] = h[l]
        hcout_ref[1, l] = c[l]


# ---------------------------------------------------------------------------
# Wrapper: hoists time-invariant compute, packs params, calls the kernel once.
# ---------------------------------------------------------------------------
def netg_forward(emb, question, history, image, hidden, p):
    h0, c0 = hidden
    B, T, _ = emb.shape
    H = NHID

    # -- time-invariant attention-stream projections (one matmul each) --
    def project(x, w, b):
        return jnp.einsum('blk,kh->blh', x, w) + b
    streams = [project(question, p['wq'], p['bq']),
               project(history, p['wh'], p['bh']),
               project(image, p['wi'], p['bi'])]
    lens = [s.shape[1] for s in streams]
    L = max(lens)

    def pad_len(x):
        if x.shape[1] == L:
            return x
        return jnp.concatenate(
            [x, jnp.zeros((B, L - x.shape[1], H), x.dtype)], axis=1)
    feat = jnp.concatenate([pad_len(s) for s in streams], axis=-1)        # (B, L, 3H)

    # -- LSTM layer-0 input->gate product for every timestep (one batched matmul) --
    xg0 = jnp.einsum('bti,ig->tbg', emb, p['wih'][0])                     # (T, B, 4H)

    hc0 = jnp.stack([h0, c0]).astype(jnp.float32)                         # (2, NLAYERS, B, H)

    # -- pack all small parameters + score masks into one lane-dense slab --
    slab_rows = _OFF['mask'] + _align8(L)
    slab = jnp.zeros((slab_rows, LANE), jnp.float32)

    def put(s, row, arr):
        arr = jnp.asarray(arr, jnp.float32)
        return s.at[row:row + arr.shape[0], :arr.shape[1]].set(arr)

    slab = put(slab, _OFF['whh'][0], p['whh'][0])
    for l in range(1, NLAYERS):
        slab = put(slab, _OFF['wih'][l], p['wih'][l])
        slab = put(slab, _OFF['whh'][l], p['whh'][l])
    slab = put(slab, _OFF['d1wa'], p['d1w'][:H])
    slab = put(slab, _OFF['d1wb'], p['d1w'][H:])
    slab = put(slab, _OFF['d2w'], p['d2w'])                               # cols 0:VOCAB
    slab = put(slab, _OFF['answ'],
               jnp.concatenate([p['aq'], p['ah'], p['ai']], axis=1))      # (H, 3H)
    slab = put(slab, _OFF['wc'], p['wc'])                                 # (3H, H)

    wa_bd = jnp.zeros((3 * H, 3), jnp.float32)                            # block-diag Wa
    for s_i, k in enumerate(('waq', 'wah', 'wai')):
        wa_bd = wa_bd.at[s_i * H:(s_i + 1) * H, s_i].set(p[k][0])
    slab = put(slab, _OFF['wabd'], wa_bd)

    expand = jnp.zeros((3, 3 * H), jnp.float32)                           # 0/1 expander
    for s_i in range(3):
        expand = expand.at[s_i, s_i * H:(s_i + 1) * H].set(1.0)
    slab = put(slab, _OFF['exp'], expand)

    for l in range(NLAYERS):
        slab = put(slab, _OFF['vec'] + l, p['lb'][l])                     # (1, 4H)
    slab = put(slab, _OFF['vec'] + NLAYERS, p['d1b'])
    d2b_pad = jnp.full((1, VPAD), D2B_PAD, jnp.float32).at[:, :VOCAB].set(p['d2b'])
    slab = put(slab, _OFF['vec'] + NLAYERS + 1, d2b_pad)
    slab = put(slab, _OFF['vec'] + NLAYERS + 2,
               jnp.concatenate([p['baq'], p['bah'], p['bai']], axis=1))
    slab = put(slab, _OFF['vec'] + NLAYERS + 3, p['bc'])
    # NOTE: the Wa_* score biases are dropped (softmax is shift-invariant per stream).

    mask = jnp.stack(
        [jnp.where(jnp.arange(L) < ln, 0.0, NEG_INF) for ln in lens],
        axis=1).astype(jnp.float32)                                       # (L, 3)
    slab = put(slab, _OFF['mask'], mask)

    inputs = (xg0.astype(jnp.float32), hc0, feat.astype(jnp.float32), slab)

    def full_spec(a):
        nd = a.ndim
        return pl.BlockSpec(a.shape, lambda i, _nd=nd: (0,) * _nd)

    out_shape = (
        jax.ShapeDtypeStruct((B, T, VPAD), jnp.float32),
        jax.ShapeDtypeStruct((2, NLAYERS, B, NHID), jnp.float32),
    )
    out_specs = (
        pl.BlockSpec((B, T, VPAD), lambda i: (0, 0, 0)),
        pl.BlockSpec((2, NLAYERS, B, NHID), lambda i: (0, 0, 0, 0)),
    )

    logp_pad, hcout = pl.pallas_call(
        _netg_kernel,
        out_shape=out_shape,
        grid=(1,),
        in_specs=[full_spec(a) for a in inputs],
        out_specs=out_specs,
        compiler_params=pltpu.CompilerParams(dimension_semantics=("arbitrary",)),
    )(*inputs)

    seq_logprobs = logp_pad[:, :, :VOCAB]                                 # drop lane padding
    return seq_logprobs, (hcout[0], hcout[1])


# ---------------------------------------------------------------------------
# Pure-JAX reference (mirrors the PyTorch forward, eval mode)
# ---------------------------------------------------------------------------
def reference_forward(emb, question, history, image, hidden, p):
    h, c = hidden
    B, T, _ = emb.shape
    H = NHID
    logps = []
    for t in range(T):
        x = emb[:, t, :]
        new_h, new_c = [], []
        for layer in range(NLAYERS):
            gates = x @ p["wih"][layer] + h[layer] @ p["whh"][layer] + p["lb"][layer]
            i_g = jax.nn.sigmoid(gates[:, :H])
            f_g = jax.nn.sigmoid(gates[:, H:2 * H])
            g_g = jnp.tanh(gates[:, 2 * H:3 * H])
            o_g = jax.nn.sigmoid(gates[:, 3 * H:])
            cn = f_g * c[layer] + i_g * g_g
            hn = o_g * jnp.tanh(cn)
            new_h.append(hn); new_c.append(cn)
            x = hn
        h = jnp.stack(new_h); c = jnp.stack(new_c)
        output = x

        def attend(feat, wp, bp, wa, ba, wA, bA):
            e = jnp.einsum("blk,kh->blh", feat, wp) + bp
            ia = output @ wa + ba
            att = jnp.tanh(e + ia[:, None, :])
            s = jnp.sum(att * wA.reshape(1, 1, H), -1) + bA[0, 0]
            w = jax.nn.softmax(s, -1)
            return jnp.einsum("bl,blh->bh", w, e)

        qf = attend(question, p["wq"], p["bq"], p["aq"], p["baq"], p["waq"], p["bwaq"])
        hf = attend(history, p["wh"], p["bh"], p["ah"], p["bah"], p["wah"], p["bwah"])
        imf = attend(image, p["wi"], p["bi"], p["ai"], p["bai"], p["wai"], p["bwai"])
        cf = jnp.tanh(jnp.concatenate([qf, hf, imf], -1) @ p["wc"] + p["bc"])
        fus = jnp.concatenate([output, cf], -1)
        hid1 = jax.nn.relu(fus @ p["d1w"] + p["d1b"])
        dec = hid1 @ p["d2w"] + p["d2b"]
        logps.append(jax.nn.log_softmax(BETA * dec, -1))
    return jnp.stack(logps, axis=1), (h, c)


# ---------------------------------------------------------------------------
if __name__ == "__main__":
    B, T = 2, 4            # batch, ans_length
    LQ, LH, LI = 8, 8, 8   # question / history / image lengths
    H = NHID

    key = jax.random.PRNGKey(0)
    keys = iter(jax.random.split(key, 64))

    def rnd(shape, s=0.1):
        return jax.random.normal(next(keys), shape, jnp.float32) * s

    # Deterministic synthetic parameters (shapes follow the module's __init__,
    # linear weights pre-transposed to (in_features, out_features)).
    p = {
        "wih": rnd((NLAYERS, NINP, 4 * H)),   # LSTM input->gates
        "whh": rnd((NLAYERS, H, 4 * H)),      # LSTM hidden->gates
        "lb":  rnd((NLAYERS, 1, 4 * H)),      # b_ih + b_hh combined
        "wq": rnd((2 * H, H)), "bq": rnd((1, H)),
        "aq": rnd((H, H)),     "baq": rnd((1, H)),
        "waq": rnd((1, H)),    "bwaq": rnd((1, 1)),
        "wh": rnd((2 * H, H)), "bh": rnd((1, H)),
        "ah": rnd((H, H)),     "bah": rnd((1, H)),
        "wah": rnd((1, H)),    "bwah": rnd((1, 1)),
        "wi": rnd((2 * H, H)), "bi": rnd((1, H)),
        "ai": rnd((H, H)),     "bai": rnd((1, H)),
        "wai": rnd((1, H)),    "bwai": rnd((1, 1)),
        "wc": rnd((3 * H, H)), "bc": rnd((1, H)),
        "d1w": rnd((2 * H, 4 * H)), "d1b": rnd((1, 4 * H)),
        "d2w": rnd((4 * H, VOCAB)), "d2b": rnd((1, VOCAB)),
    }

    # Inputs
    emb      = rnd((B, T, NINP), 1.0)
    question = rnd((B, LQ, 2 * H), 1.0)
    history  = rnd((B, LH, 2 * H), 1.0)
    image    = rnd((B, LI, 2 * H), 1.0)
    h0 = jnp.zeros((NLAYERS, B, H), jnp.float32)   # init_hidden(): zeros
    c0 = jnp.zeros((NLAYERS, B, H), jnp.float32)

    # Run Pallas kernel (jit the wrapper so the hoisted precompute / packing fuses).
    netg_fn = jax.jit(netg_forward)
    seq_logprobs, (h_f, c_f) = netg_fn(emb, question, history, image, (h0, c0), p)
    jax.block_until_ready(seq_logprobs)

    # Verify against a pure-JAX reference of the same forward.
    # Tolerance accounts for default (bf16-pass) MXU precision on both paths and
    # the approximate (EUP) softmax reciprocal in the kernel.
    ref_lp, (ref_h, ref_c) = reference_forward(emb, question, history, image, (h0, c0), p)
    np.testing.assert_allclose(np.asarray(seq_logprobs), np.asarray(ref_lp),
                               atol=3e-2, rtol=3e-2)
    np.testing.assert_allclose(np.asarray(h_f), np.asarray(ref_h), atol=3e-2, rtol=3e-2)
    np.testing.assert_allclose(np.asarray(c_f), np.asarray(ref_c), atol=3e-2, rtol=3e-2)

    assert seq_logprobs.shape == (B, T, VOCAB)
    print("KERNEL_OK")
</pallas_src>

<mosaic_0001>
module attributes {stable_mosaic.version = 11 : i64} {
  func.func @_netg_kernel(%arg0: i32, %arg1: memref<4x2x128xf32, #tpu.memory_space<vmem>>, %arg2: memref<2x2x2x32xf32, #tpu.memory_space<vmem>>, %arg3: memref<2x8x96xf32, #tpu.memory_space<vmem>>, %arg4: memref<536x128xf32, #tpu.memory_space<vmem>>, %arg5: memref<2x4x128xf32, #tpu.memory_space<vmem>>, %arg6: memref<2x2x2x32xf32, #tpu.memory_space<vmem>>) attributes {dimension_semantics = [#tpu.dimension_semantics<arbitrary>], iteration_bounds = array<i64: 1>, scalar_prefetch = 0 : i64, scratch_operands = 0 : i64, tpu.core_type = #tpu.core_type<tc>, window_params = [{pipeline_mode = #tpu.pipeline_mode<synchronous>, transform_indices = @transform_0, window_bounds = array<i64: 4, 2, 128>}, {pipeline_mode = #tpu.pipeline_mode<synchronous>, transform_indices = @transform_1, window_bounds = array<i64: 2, 2, 2, 32>}, {pipeline_mode = #tpu.pipeline_mode<synchronous>, transform_indices = @transform_2, window_bounds = array<i64: 2, 8, 96>}, {pipeline_mode = #tpu.pipeline_mode<synchronous>, transform_indices = @transform_3, window_bounds = array<i64: 536, 128>}, {pipeline_mode = #tpu.pipeline_mode<synchronous>, transform_indices = @transform_4, window_bounds = array<i64: 2, 4, 128>}, {pipeline_mode = #tpu.pipeline_mode<synchronous>, transform_indices = @transform_5, window_bounds = array<i64: 2, 2, 2, 32>}]} {
    %c0 = arith.constant 0 : index
    %c0_0 = arith.constant 0 : index
    %c0_1 = arith.constant 0 : index
    %0 = vector.load %arg3[%c0, %c0_0, %c0_1] : memref<2x8x96xf32, #tpu.memory_space<vmem>>, vector<2x8x96xf32>
    %c528 = arith.constant 528 : index
    %c0_2 = arith.constant 0 : index
    %1 = vector.load %arg4[%c528, %c0_2] : memref<536x128xf32, #tpu.memory_space<vmem>>, vector<8x3xf32>
    %2 = vector.shape_cast %1 : vector<8x3xf32> to vector<1x8x3xf32>
    %c520 = arith.constant 520 : index
    %c0_3 = arith.constant 0 : index
    %3 = vector.load %arg4[%c520, %c0_3] : memref<536x128xf32, #tpu.memory_space<vmem>>, vector<1x128xf32>
    %c521 = arith.constant 521 : index
    %c0_4 = arith.constant 0 : index
    %4 = vector.load %arg4[%c521, %c0_4] : memref<536x128xf32, #tpu.memory_space<vmem>>, vector<1x128xf32>
    %c522 = arith.constant 522 : index
    %c0_5 = arith.constant 0 : index
    %5 = vector.load %arg4[%c522, %c0_5] : memref<536x128xf32, #tpu.memory_space<vmem>>, vector<1x128xf32>
    %c523 = arith.constant 523 : index
    %c0_6 = arith.constant 0 : index
    %6 = vector.load %arg4[%c523, %c0_6] : memref<536x128xf32, #tpu.memory_space<vmem>>, vector<1x128xf32>
    %c524 = arith.constant 524 : index
    %c0_7 = arith.constant 0 : index
    %7 = vector.load %arg4[%c524, %c0_7] : memref<536x128xf32, #tpu.memory_space<vmem>>, vector<1x96xf32>
    %c525 = arith.constant 525 : index
    %c0_8 = arith.constant 0 : index
    %8 = vector.load %arg4[%c525, %c0_8] : memref<536x128xf32, #tpu.memory_space<vmem>>, vector<1x32xf32>
    %c0_9 = arith.constant 0 : index
    %c0_10 = arith.constant 0 : index
    %c0_11 = arith.constant 0 : index
    %c0_12 = arith.constant 0 : index
    %9 = vector.load %arg2[%c0_9, %c0_10, %c0_11, %c0_12] : memref<2x2x2x32xf32, #tpu.memory_space<vmem>>, vector<1x1x2x32xf32>
    %10 = vector.shape_cast %9 : vector<1x1x2x32xf32> to vector<2x32xf32>
    %c0_13 = arith.constant 0 : index
    %c1 = arith.constant 1 : index
    %c0_14 = arith.constant 0 : index
    %c0_15 = arith.constant 0 : index
    %11 = vector.load %arg2[%c0_13, %c1, %c0_14, %c0_15] : memref<2x2x2x32xf32, #tpu.memory_space<vmem>>, vector<1x1x2x32xf32>
    %12 = vector.shape_cast %11 : vector<1x1x2x32xf32> to vector<2x32xf32>
    %c1_16 = arith.constant 1 : index
    %c0_17 = arith.constant 0 : index
    %c0_18 = arith.constant 0 : index
    %c0_19 = arith.constant 0 : index
    %13 = vector.load %arg2[%c1_16, %c0_17, %c0_18, %c0_19] : memref<2x2x2x32xf32, #tpu.memory_space<vmem>>, vector<1x1x2x32xf32>
    %14 = vector.shape_cast %13 : vector<1x1x2x32xf32> to vector<2x32xf32>
    %c1_20 = arith.constant 1 : index
    %c1_21 = arith.constant 1 : index
    %c0_22 = arith.constant 0 : index
    %c0_23 = arith.constant 0 : index
    %15 = vector.load %arg2[%c1_20, %c1_21, %c0_22, %c0_23] : memref<2x2x2x32xf32, #tpu.memory_space<vmem>>, vector<1x1x2x32xf32>
    %16 = vector.shape_cast %15 : vector<1x1x2x32xf32> to vector<2x32xf32>
    %c0_24 = arith.constant 0 : index
    %c0_25 = arith.constant 0 : index
    %c0_26 = arith.constant 0 : index
    %17 = vector.load %arg1[%c0_24, %c0_25, %c0_26] : memref<4x2x128xf32, #tpu.memory_space<vmem>>, vector<1x2x128xf32>
    %18 = vector.shape_cast %17 : vector<1x2x128xf32> to vector<2x128xf32>
    %c0_27 = arith.constant 0 : index
    %c0_28 = arith.constant 0 : index
    %19 = vector.load %arg4[%c0_27, %c0_28] : memref<536x128xf32, #tpu.memory_space<vmem>>, vector<32x128xf32>
    %cst = arith.constant dense<0.000000e+00> : vector<2x128xf32>
    %20 = tpu.matmul %10, %19, %cst {dimension_numbers = #tpu.dot_dimension_numbers<[1], [0], [0], [1], [0, 0, 1, 1], [], []>} : vector<2x32xf32>, vector<32x128xf32>, vector<2x128xf32> -> vector<2x128xf32>
    %21 = arith.addf %18, %20 : vector<2x128xf32>
    %22 = vector.broadcast %3 : vector<1x128xf32> to vector<2x128xf32>
    %23 = arith.addf %21, %22 : vector<2x128xf32>
    %24 = vector.extract_strided_slice %23 {offsets = [0, 0], sizes = [2, 32], strides = [1, 1]} : vector<2x128xf32> to vector<2x32xf32>
    %25 = arith.negf %24 : vector<2x32xf32>
    %26 = math.exp %25 : vector<2x32xf32>
    %cst_29 = arith.constant 1.000000e+00 : f32
    %27 = vector.broadcast %cst_29 : f32 to vector<2x32xf32>
    %28 = arith.addf %27, %26 : vector<2x32xf32>
    %29 = arith.divf %27, %28 : vector<2x32xf32>
    %30 = vector.extract_strided_slice %23 {offsets = [0, 32], sizes = [2, 32], strides = [1, 1]} : vector<2x128xf32> to vector<2x32xf32>
    %31 = arith.negf %30 : vector<2x32xf32>
    %32 = math.exp %31 : vector<2x32xf32>
    %cst_30 = arith.constant 1.000000e+00 : f32
    %33 = vector.broadcast %cst_30 : f32 to vector<2x32xf32>
    %34 = arith.addf %33, %32 : vector<2x32xf32>
    %35 = arith.divf %33, %34 : vector<2x32xf32>
    %36 = vector.extract_strided_slice %23 {offsets = [0, 64], sizes = [2, 32], strides = [1, 1]} : vector<2x128xf32> to vector<2x32xf32>
    %37 = math.tanh %36 : vector<2x32xf32>
    %38 = vector.extract_strided_slice %23 {offsets = [0, 96], sizes = [2, 32], strides = [1, 1]} : vector<2x128xf32> to vector<2x32xf32>
    %39 = arith.negf %38 : vector<2x32xf32>
    %40 = math.exp %39 : vector<2x32xf32>
    %cst_31 = arith.constant 1.000000e+00 : f32
    %41 = vector.broadcast %cst_31 : f32 to vector<2x32xf32>
    %42 = arith.addf %41, %40 : vector<2x32xf32>
    %43 = arith.divf %41, %42 : vector<2x32xf32>
    %44 = arith.mulf %35, %14 : vector<2x32xf32>
    %45 = arith.mulf %29, %37 : vector<2x32xf32>
    %46 = arith.addf %44, %45 : vector<2x32xf32>
    %47 = math.tanh %46 : vector<2x32xf32>
    %48 = arith.mulf %43, %47 : vector<2x32xf32>
    %c32 = arith.constant 32 : index
    %c0_32 = arith.constant 0 : index
    %49 = vector.load %arg4[%c32, %c0_32] : memref<536x128xf32, #tpu.memory_space<vmem>>, vector<32x128xf32>
    %cst_33 = arith.constant dense<0.000000e+00> : vector<2x128xf32>
    %50 = tpu.matmul %48, %49, %cst_33 {dimension_numbers = #tpu.dot_dimension_numbers<[1], [0], [0], [1], [0, 0, 1, 1], [], []>} : vector<2x32xf32>, vector<32x128xf32>, vector<2x128xf32> -> vector<2x128xf32>
    %c64 = arith.constant 64 : index
    %c0_34 = arith.constant 0 : index
    %51 = vector.load %arg4[%c64, %c0_34] : memref<536x128xf32, #tpu.memory_space<vmem>>, vector<32x128xf32>
    %cst_35 = arith.constant dense<0.000000e+00> : vector<2x128xf32>
    %52 = tpu.matmul %12, %51, %cst_35 {dimension_numbers = #tpu.dot_dimension_numbers<[1], [0], [0], [1], [0, 0, 1, 1], [], []>} : vector<2x32xf32>, vector<32x128xf32>, vector<2x128xf32> -> vector<2x128xf32>
    %53 = arith.addf %50, %52 : vector<2x128xf32>
    %54 = vector.broadcast %4 : vector<1x128xf32> to vector<2x128xf32>
    %55 = arith.addf %53, %54 : vector<2x128xf32>
    %56 = vector.extract_strided_slice %55 {offsets = [0, 0], sizes = [2, 32], strides = [1, 1]} : vector<2x128xf32> to vector<2x32xf32>
    %57 = arith.negf %56 : vector<2x32xf32>
    %58 = math.exp %57 : vector<2x32xf32>
    %cst_36 = arith.constant 1.000000e+00 : f32
    %59 = vector.broadcast %cst_36 : f32 to vector<2x32xf32>
    %60 = arith.addf %59, %58 : vector<2x32xf32>
    %61 = arith.divf %59, %60 : vector<2x32xf32>
    %62 = vector.extract_strided_slice %55 {offsets = [0, 32], sizes = [2, 32], strides = [1, 1]} : vector<2x128xf32> to vector<2x32xf32>
    %63 = arith.negf %62 : vector<2x32xf32>
    %64 = math.exp %63 : vector<2x32xf32>
    %cst_37 = arith.constant 1.000000e+00 : f32
    %65 = vector.broadcast %cst_37 : f32 to vector<2x32xf32>
    %66 = arith.addf %65, %64 : vector<2x32xf32>
    %67 = arith.divf %65, %66 : vector<2x32xf32>
    %68 = vector.extract_strided_slice %55 {offsets = [0, 64], sizes = [2, 32], strides = [1, 1]} : vector<2x128xf32> to vector<2x32xf32>
    %69 = math.tanh %68 : vector<2x32xf32>
    %70 = vector.extract_strided_slice %55 {offsets = [0, 96], sizes = [2, 32], strides = [1, 1]} : vector<2x128xf32> to vector<2x32xf32>
    %71 = arith.negf %70 : vector<2x32xf32>
    %72 = math.exp %71 : vector<2x32xf32>
    %cst_38 = arith.constant 1.000000e+00 : f32
    %73 = vector.broadcast %cst_38 : f32 to vector<2x32xf32>
    %74 = arith.addf %73, %72 : vector<2x32xf32>
    %75 = arith.divf %73, %74 : vector<2x32xf32>
    %76 = arith.mulf %67, %16 : vector<2x32xf32>
    %77 = arith.mulf %61, %69 : vector<2x32xf32>
    %78 = arith.addf %76, %77 : vector<2x32xf32>
    %79 = math.tanh %78 : vector<2x32xf32>
    %80 = arith.mulf %75, %79 : vector<2x32xf32>
    %c288 = arith.constant 288 : index
    %c0_39 = arith.constant 0 : index
    %81 = vector.load %arg4[%c288, %c0_39] : memref<536x128xf32, #tpu.memory_space<vmem>>, vector<32x96xf32>
    %cst_40 = arith.constant dense<0.000000e+00> : vector<2x96xf32>
    %82 = tpu.matmul %80, %81, %cst_40 {dimension_numbers = #tpu.dot_dimension_numbers<[1], [0], [0], [1], [0, 0, 1, 1], [], []>} : vector<2x32xf32>, vector<32x96xf32>, vector<2x96xf32> -> vector<2x96xf32>
    %83 = vector.broadcast %7 : vector<1x96xf32> to vector<2x96xf32>
    %84 = arith.addf %82, %83 : vector<2x96xf32>
    %85 = vector.shape_cast %84 : vector<2x96xf32> to vector<2x1x96xf32>
    %86 = vector.broadcast %85 : vector<2x1x96xf32> to vector<2x8x96xf32>
    %87 = arith.addf %0, %86 : vector<2x8x96xf32>
    %88 = math.tanh %87 : vector<2x8x96xf32>
    %c416 = arith.constant 416 : index
    %c0_41 = arith.constant 0 : index
    %89 = vector.load %arg4[%c416, %c0_41] : memref<536x128xf32, #tpu.memory_space<vmem>>, vector<96x3xf32>
    %90 = vector.shape_cast %88 : vector<2x8x96xf32> to vector<16x96xf32>
    %cst_42 = arith.constant dense<0.000000e+00> : vector<16x3xf32>
    %91 = tpu.matmul %90, %89, %cst_42 {dimension_numbers = #tpu.dot_dimension_numbers<[1], [0], [0], [1], [0, 0, 1, 1], [], []>} : vector<16x96xf32>, vector<96x3xf32>, vector<16x3xf32> -> vector<16x3xf32>
    %92 = vector.shape_cast %91 : vector<16x3xf32> to vector<2x8x3xf32>
    %93 = vector.broadcast %2 : vector<1x8x3xf32> to vector<2x8x3xf32>
    %94 = arith.addf %92, %93 : vector<2x8x3xf32>
    %cst_43 = arith.constant dense<0xFF800000> : vector<2x3xf32>
    %95 = vector.multi_reduction <maximumf>, %94, %cst_43 [1] : vector<2x8x3xf32> to vector<2x3xf32>
    %96 = vector.shape_cast %95 : vector<2x3xf32> to vector<2x1x3xf32>
    %97 = vector.broadcast %96 : vector<2x1x3xf32> to vector<2x8x3xf32>
    %98 = arith.subf %94, %97 : vector<2x8x3xf32>
    %99 = math.exp %98 : vector<2x8x3xf32>
    %cst_44 = arith.constant dense<0.000000e+00> : vector<2x3xf32>
    %100 = vector.multi_reduction <add>, %99, %cst_44 [1] : vector<2x8x3xf32> to vector<2x3xf32>
    %101 = vector.shape_cast %100 : vector<2x3xf32> to vector<2x1x3xf32>
    %102 = tpu.reciprocal %101 {approx = true} : vector<2x1x3xf32> -> vector<2x1x3xf32>
    %103 = vector.broadcast %102 : vector<2x1x3xf32> to vector<2x8x3xf32>
    %104 = arith.mulf %99, %103 : vector<2x8x3xf32>
    %c512 = arith.constant 512 : index
    %c0_45 = arith.constant 0 : index
    %105 = vector.load %arg4[%c512, %c0_45] : memref<536x128xf32, #tpu.memory_space<vmem>>, vector<3x96xf32>
    %106 = vector.shape_cast %104 : vector<2x8x3xf32> to vector<16x3xf32>
    %cst_46 = arith.constant dense<0.000000e+00> : vector<16x96xf32>
    %107 = tpu.matmul %106, %105, %cst_46 {dimension_numbers = #tpu.dot_dimension_numbers<[1], [0], [0], [1], [0, 0, 1, 1], [], []>} : vector<16x3xf32>, vector<3x96xf32>, vector<16x96xf32> -> vector<16x96xf32>
    %108 = vector.shape_cast %107 : vector<16x96xf32> to vector<2x8x96xf32>
    %109 = arith.mulf %0, %108 : vector<2x8x96xf32>
    %cst_47 = arith.constant dense<0.000000e+00> : vector<2x96xf32>
    %110 = vector.multi_reduction <add>, %109, %cst_47 [1] : vector<2x8x96xf32> to vector<2x96xf32>
    %c320 = arith.constant 320 : index
    %c0_48 = arith.constant 0 : index
    %111 = vector.load %arg4[%c320, %c0_48] : memref<536x128xf32, #tpu.memory_space<vmem>>, vector<96x32xf32>
    %cst_49 = arith.constant dense<0.000000e+00> : vector<2x32xf32>
    %112 = tpu.matmul %110, %111, %cst_49 {dimension_numbers = #tpu.dot_dimension_numbers<[1], [0], [0], [1], [0, 0, 1, 1], [], []>} : vector<2x96xf32>, vector<96x32xf32>, vector<2x32xf32> -> vector<2x32xf32>
    %113 = vector.broadcast %8 : vector<1x32xf32> to vector<2x32xf32>
    %114 = arith.addf %112, %113 : vector<2x32xf32>
    %115 = math.tanh %114 : vector<2x32xf32>
    %c96 = arith.constant 96 : index
    %c0_50 = arith.constant 0 : index
    %116 = vector.load %arg4[%c96, %c0_50] : memref<536x128xf32, #tpu.memory_space<vmem>>, vector<32x128xf32>
    %cst_51 = arith.constant dense<0.000000e+00> : vector<2x128xf32>
    %117 = tpu.matmul %80, %116, %cst_51 {dimension_numbers = #tpu.dot_dimension_numbers<[1], [0], [0], [1], [0, 0, 1, 1], [], []>} : vector<2x32xf32>, vector<32x128xf32>, vector<2x128xf32> -> vector<2x128xf32>
    %c128 = arith.constant 128 : index
    %c0_52 = arith.constant 0 : index
    %118 = vector.load %arg4[%c128, %c0_52] : memref<536x128xf32, #tpu.memory_space<vmem>>, vector<32x128xf32>
    %cst_53 = arith.constant dense<0.000000e+00> : vector<2x128xf32>
    %119 = tpu.matmul %115, %118, %cst_53 {dimension_numbers = #tpu.dot_dimension_numbers<[1], [0], [0], [1], [0, 0, 1, 1], [], []>} : vector<2x32xf32>, vector<32x128xf32>, vector<2x128xf32> -> vector<2x128xf32>
    %120 = arith.addf %117, %119 : vector<2x128xf32>
    %121 = vector.broadcast %5 : vector<1x128xf32> to vector<2x128xf32>
    %122 = arith.addf %120, %121 : vector<2x128xf32>
    %cst_54 = arith.constant 0.000000e+00 : f32
    %123 = vector.broadcast %cst_54 : f32 to vector<2x128xf32>
    %124 = arith.maximumf %122, %123 : vector<2x128xf32>
    %c160 = arith.constant 160 : index
    %c0_55 = arith.constant 0 : index
    %125 = vector.load %arg4[%c160, %c0_55] : memref<536x128xf32, #tpu.memory_space<vmem>>, vector<128x128xf32>
    %cst_56 = arith.constant dense<0.000000e+00> : vector<2x128xf32>
    %126 = tpu.matmul %124, %125, %cst_56 {dimension_numbers = #tpu.dot_dimension_numbers<[1], [0], [0], [1], [0, 0, 1, 1], [], []>} : vector<2x128xf32>, vector<128x128xf32>, vector<2x128xf32> -> vector<2x128xf32>
    %127 = vector.broadcast %6 : vector<1x128xf32> to vector<2x128xf32>
    %128 = arith.addf %126, %127 : vector<2x128xf32>
    %cst_57 = arith.constant 3.000000e+00 : f32
    %129 = vector.broadcast %cst_57 : f32 to vector<2x128xf32>
    %130 = arith.mulf %129, %128 : vector<2x128xf32>
    %cst_58 = arith.constant dense<0xFF800000> : vector<2xf32>
    %131 = vector.multi_reduction <maximumf>, %130, %cst_58 [1] : vector<2x128xf32> to vector<2xf32>
    %132 = vector.shape_cast %131 : vector<2xf32> to vector<2x1xf32>
    %133 = vector.broadcast %132 : vector<2x1xf32> to vector<2x128xf32>
    %134 = arith.subf %130, %133 : vector<2x128xf32>
    %135 = math.exp %134 : vector<2x128xf32>
    %cst_59 = arith.constant dense<0.000000e+00> : vector<2xf32>
    %136 = vector.multi_reduction <add>, %135, %cst_59 [1] : vector<2x128xf32> to vector<2xf32>
    %137 = vector.shape_cast %136 : vector<2xf32> to vector<2x1xf32>
    %138 = math.log %137 : vector<2x1xf32>
    %139 = vector.broadcast %138 : vector<2x1xf32> to vector<2x128xf32>
    %140 = arith.subf %134, %139 : vector<2x128xf32>
    %141 = vector.shape_cast %140 : vector<2x128xf32> to vector<2x1x128xf32>
    %c0_60 = arith.constant 0 : index
    %c0_61 = arith.constant 0 : index
    %c0_62 = arith.constant 0 : index
    %142 = vector.load %arg5[%c0_60, %c0_61, %c0_62] : memref<2x4x128xf32, #tpu.memory_space<vmem>>, vector<2x1x128xf32>
    tpu.vector_store %arg5[%c0_60, %c0_61, %c0_62], %141 {strides = array<i32>} : memref<2x4x128xf32, #tpu.memory_space<vmem>>, vector<2x1x128xf32>,
    %c1_63 = arith.constant 1 : index
    %c0_64 = arith.constant 0 : index
    %c0_65 = arith.constant 0 : index
    %143 = vector.load %arg1[%c1_63, %c0_64, %c0_65] : memref<4x2x128xf32, #tpu.memory_space<vmem>>, vector<1x2x128xf32>
    %144 = vector.shape_cast %143 : vector<1x2x128xf32> to vector<2x128xf32>
    %c0_66 = arith.constant 0 : index
    %c0_67 = arith.constant 0 : index
    %145 = vector.load %arg4[%c0_66, %c0_67] : memref<536x128xf32, #tpu.memory_space<vmem>>, vector<32x128xf32>
    %cst_68 = arith.constant dense<0.000000e+00> : vector<2x128xf32>
    %146 = tpu.matmul %48, %145, %cst_68 {dimension_numbers = #tpu.dot_dimension_numbers<[1], [0], [0], [1], [0, 0, 1, 1], [], []>} : vector<2x32xf32>, vector<32x128xf32>, vector<2x128xf32> -> vector<2x128xf32>
    %147 = arith.addf %144, %146 : vector<2x128xf32>
    %148 = vector.broadcast %3 : vector<1x128xf32> to vector<2x128xf32>
    %149 = arith.addf %147, %148 : vector<2x128xf32>
    %150 = vector.extract_strided_slice %149 {offsets = [0, 0], sizes = [2, 32], strides = [1, 1]} : vector<2x128xf32> to vector<2x32xf32>
    %151 = arith.negf %150 : vector<2x32xf32>
    %152 = math.exp %151 : vector<2x32xf32>
    %cst_69 = arith.constant 1.000000e+00 : f32
    %153 = vector.broadcast %cst_69 : f32 to vector<2x32xf32>
    %154 = arith.addf %153, %152 : vector<2x32xf32>
    %155 = arith.divf %153, %154 : vector<2x32xf32>
    %156 = vector.extract_strided_slice %149 {offsets = [0, 32], sizes = [2, 32], strides = [1, 1]} : vector<2x128xf32> to vector<2x32xf32>
    %157 = arith.negf %156 : vector<2x32xf32>
    %158 = math.exp %157 : vector<2x32xf32>
    %cst_70 = arith.constant 1.000000e+00 : f32
    %159 = vector.broadcast %cst_70 : f32 to vector<2x32xf32>
    %160 = arith.addf %159, %158 : vector<2x32xf32>
    %161 = arith.divf %159, %160 : vector<2x32xf32>
    %162 = vector.extract_strided_slice %149 {offsets = [0, 64], sizes = [2, 32], strides = [1, 1]} : vector<2x128xf32> to vector<2x32xf32>
    %163 = math.tanh %162 : vector<2x32xf32>
    %164 = vector.extract_strided_slice %149 {offsets = [0, 96], sizes = [2, 32], strides = [1, 1]} : vector<2x128xf32> to vector<2x32xf32>
    %165 = arith.negf %164 : vector<2x32xf32>
    %166 = math.exp %165 : vector<2x32xf32>
    %cst_71 = arith.constant 1.000000e+00 : f32
    %167 = vector.broadcast %cst_71 : f32 to vector<2x32xf32>
    %168 = arith.addf %167, %166 : vector<2x32xf32>
    %169 = arith.divf %167, %168 : vector<2x32xf32>
    %170 = arith.mulf %161, %46 : vector<2x32xf32>
    %171 = arith.mulf %155, %163 : vector<2x32xf32>
    %172 = arith.addf %170, %171 : vector<2x32xf32>
    %173 = math.tanh %172 : vector<2x32xf32>
    %174 = arith.mulf %169, %173 : vector<2x32xf32>
    %c32_72 = arith.constant 32 : index
    %c0_73 = arith.constant 0 : index
    %175 = vector.load %arg4[%c32_72, %c0_73] : memref<536x128xf32, #tpu.memory_space<vmem>>, vector<32x128xf32>
    %cst_74 = arith.constant dense<0.000000e+00> : vector<2x128xf32>
    %176 = tpu.matmul %174, %175, %cst_74 {dimension_numbers = #tpu.dot_dimension_numbers<[1], [0], [0], [1], [0, 0, 1, 1], [], []>} : vector<2x32xf32>, vector<32x128xf32>, vector<2x128xf32> -> vector<2x128xf32>
    %c64_75 = arith.constant 64 : index
    %c0_76 = arith.constant 0 : index
    %177 = vector.load %arg4[%c64_75, %c0_76] : memref<536x128xf32, #tpu.memory_space<vmem>>, vector<32x128xf32>
    %cst_77 = arith.constant dense<0.000000e+00> : vector<2x128xf32>
    %178 = tpu.matmul %80, %177, %cst_77 {dimension_numbers = #tpu.dot_dimension_numbers<[1], [0], [0], [1], [0, 0, 1, 1], [], []>} : vector<2x32xf32>, vector<32x128xf32>, vector<2x128xf32> -> vector<2x128xf32>
    %179 = arith.addf %176, %178 : vector<2x128xf32>
    %180 = vector.broadcast %4 : vector<1x128xf32> to vector<2x128xf32>
    %181 = arith.addf %179, %180 : vector<2x128xf32>
    %182 = vector.extract_strided_slice %181 {offsets = [0, 0], sizes = [2, 32], strides = [1, 1]} : vector<2x128xf32> to vector<2x32xf32>
    %183 = arith.negf %182 : vector<2x32xf32>
    %184 = math.exp %183 : vector<2x32xf32>
    %cst_78 = arith.constant 1.000000e+00 : f32
    %185 = vector.broadcast %cst_78 : f32 to vector<2x32xf32>
    %186 = arith.addf %185, %184 : vector<2x32xf32>
    %187 = arith.divf %185, %186 : vector<2x32xf32>
    %188 = vector.extract_strided_slice %181 {offsets = [0, 32], sizes = [2, 32], strides = [1, 1]} : vector<2x128xf32> to vector<2x32xf32>
    %189 = arith.negf %188 : vector<2x32xf32>
    %190 = math.exp %189 : vector<2x32xf32>
    %cst_79 = arith.constant 1.000000e+00 : f32
    %191 = vector.broadcast %cst_79 : f32 to vector<2x32xf32>
    %192 = arith.addf %191, %190 : vector<2x32xf32>
    %193 = arith.divf %191, %192 : vector<2x32xf32>
    %194 = vector.extract_strided_slice %181 {offsets = [0, 64], sizes = [2, 32], strides = [1, 1]} : vector<2x128xf32> to vector<2x32xf32>
    %195 = math.tanh %194 : vector<2x32xf32>
    %196 = vector.extract_strided_slice %181 {offsets = [0, 96], sizes = [2, 32], strides = [1, 1]} : vector<2x128xf32> to vector<2x32xf32>
    %197 = arith.negf %196 : vector<2x32xf32>
    %198 = math.exp %197 : vector<2x32xf32>
    %cst_80 = arith.constant 1.000000e+00 : f32
    %199 = vector.broadcast %cst_80 : f32 to vector<2x32xf32>
    %200 = arith.addf %199, %198 : vector<2x32xf32>
    %201 = arith.divf %199, %200 : vector<2x32xf32>
    %202 = arith.mulf %193, %78 : vector<2x32xf32>
    %203 = arith.mulf %187, %195 : vector<2x32xf32>
    %204 = arith.addf %202, %203 : vector<2x32xf32>
    %205 = math.tanh %204 : vector<2x32xf32>
    %206 = arith.mulf %201, %205 : vector<2x32xf32>
    %c288_81 = arith.constant 288 : index
    %c0_82 = arith.constant 0 : index
    %207 = vector.load %arg4[%c288_81, %c0_82] : memref<536x128xf32, #tpu.memory_space<vmem>>, vector<32x96xf32>
    %cst_83 = arith.constant dense<0.000000e+00> : vector<2x96xf32>
    %208 = tpu.matmul %206, %207, %cst_83 {dimension_numbers = #tpu.dot_dimension_numbers<[1], [0], [0], [1], [0, 0, 1, 1], [], []>} : vector<2x32xf32>, vector<32x96xf32>, vector<2x96xf32> -> vector<2x96xf32>
    %209 = vector.broadcast %7 : vector<1x96xf32> to vector<2x96xf32>
    %210 = arith.addf %208, %209 : vector<2x96xf32>
    %211 = vector.shape_cast %210 : vector<2x96xf32> to vector<2x1x96xf32>
    %212 = vector.broadcast %211 : vector<2x1x96xf32> to vector<2x8x96xf32>
    %213 = arith.addf %0, %212 : vector<2x8x96xf32>
    %214 = math.tanh %213 : vector<2x8x96xf32>
    %c416_84 = arith.constant 416 : index
    %c0_85 = arith.constant 0 : index
    %215 = vector.load %arg4[%c416_84, %c0_85] : memref<536x128xf32, #tpu.memory_space<vmem>>, vector<96x3xf32>
    %216 = vector.shape_cast %214 : vector<2x8x96xf32> to vector<16x96xf32>
    %cst_86 = arith.constant dense<0.000000e+00> : vector<16x3xf32>
    %217 = tpu.matmul %216, %215, %cst_86 {dimension_numbers = #tpu.dot_dimension_numbers<[1], [0], [0], [1], [0, 0, 1, 1], [], []>} : vector<16x96xf32>, vector<96x3xf32>, vector<16x3xf32> -> vector<16x3xf32>
    %218 = vector.shape_cast %217 : vector<16x3xf32> to vector<2x8x3xf32>
    %219 = vector.broadcast %2 : vector<1x8x3xf32> to vector<2x8x3xf32>
    %220 = arith.addf %218, %219 : vector<2x8x3xf32>
    %cst_87 = arith.constant dense<0xFF800000> : vector<2x3xf32>
    %221 = vector.multi_reduction <maximumf>, %220, %cst_87 [1] : vector<2x8x3xf32> to vector<2x3xf32>
    %222 = vector.shape_cast %221 : vector<2x3xf32> to vector<2x1x3xf32>
    %223 = vector.broadcast %222 : vector<2x1x3xf32> to vector<2x8x3xf32>
    %224 = arith.subf %220, %223 : vector<2x8x3xf32>
    %225 = math.exp %224 : vector<2x8x3xf32>
    %cst_88 = arith.constant dense<0.000000e+00> : vector<2x3xf32>
    %226 = vector.multi_reduction <add>, %225, %cst_88 [1] : vector<2x8x3xf32> to vector<2x3xf32>
    %227 = vector.shape_cast %226 : vector<2x3xf32> to vector<2x1x3xf32>
    %228 = tpu.reciprocal %227 {approx = true} : vector<2x1x3xf32> -> vector<2x1x3xf32>
    %229 = vector.broadcast %228 : vector<2x1x3xf32> to vector<2x8x3xf32>
    %230 = arith.mulf %225, %229 : vector<2x8x3xf32>
    %c512_89 = arith.constant 512 : index
    %c0_90 = arith.constant 0 : index
    %231 = vector.load %arg4[%c512_89, %c0_90] : memref<536x128xf32, #tpu.memory_space<vmem>>, vector<3x96xf32>
    %232 = vector.shape_cast %230 : vector<2x8x3xf32> to vector<16x3xf32>
    %cst_91 = arith.constant dense<0.000000e+00> : vector<16x96xf32>
    %233 = tpu.matmul %232, %231, %cst_91 {dimension_numbers = #tpu.dot_dimension_numbers<[1], [0], [0], [1], [0, 0, 1, 1], [], []>} : vector<16x3xf32>, vector<3x96xf32>, vector<16x96xf32> -> vector<16x96xf32>
    %234 = vector.shape_cast %233 : vector<16x96xf32> to vector<2x8x96xf32>
    %235 = arith.mulf %0, %234 : vector<2x8x96xf32>
    %cst_92 = arith.constant dense<0.000000e+00> : vector<2x96xf32>
    %236 = vector.multi_reduction <add>, %235, %cst_92 [1] : vector<2x8x96xf32> to vector<2x96xf32>
    %c320_93 = arith.constant 320 : index
    %c0_94 = arith.constant 0 : index
    %237 = vector.load %arg4[%c320_93, %c0_94] : memref<536x128xf32, #tpu.memory_space<vmem>>, vector<96x32xf32>
    %cst_95 = arith.constant dense<0.000000e+00> : vector<2x32xf32>
    %238 = tpu.matmul %236, %237, %cst_95 {dimension_numbers = #tpu.dot_dimension_numbers<[1], [0], [0], [1], [0, 0, 1, 1], [], []>} : vector<2x96xf32>, vector<96x32xf32>, vector<2x32xf32> -> vector<2x32xf32>
    %239 = vector.broadcast %8 : vector<1x32xf32> to vector<2x32xf32>
    %240 = arith.addf %238, %239 : vector<2x32xf32>
    %241 = math.tanh %240 : vector<2x32xf32>
    %c96_96 = arith.constant 96 : index
    %c0_97 = arith.constant 0 : index
    %242 = vector.load %arg4[%c96_96, %c0_97] : memref<536x128xf32, #tpu.memory_space<vmem>>, vector<32x128xf32>
    %cst_98 = arith.constant dense<0.000000e+00> : vector<2x128xf32>
    %243 = tpu.matmul %206, %242, %cst_98 {dimension_numbers = #tpu.dot_dimension_numbers<[1], [0], [0], [1], [0, 0, 1, 1], [], []>} : vector<2x32xf32>, vector<32x128xf32>, vector<2x128xf32> -> vector<2x128xf32>
    %c128_99 = arith.constant 128 : index
    %c0_100 = arith.constant 0 : index
    %244 = vector.load %arg4[%c128_99, %c0_100] : memref<536x128xf32, #tpu.memory_space<vmem>>, vector<32x128xf32>
    %cst_101 = arith.constant dense<0.000000e+00> : vector<2x128xf32>
    %245 = tpu.matmul %241, %244, %cst_101 {dimension_numbers = #tpu.dot_dimension_numbers<[1], [0], [0], [1], [0, 0, 1, 1], [], []>} : vector<2x32xf32>, vector<32x128xf32>, vector<2x128xf32> -> vector<2x128xf32>
    %246 = arith.addf %243, %245 : vector<2x128xf32>
    %247 = vector.broadcast %5 : vector<1x128xf32> to vector<2x128xf32>
    %248 = arith.addf %246, %247 : vector<2x128xf32>
    %cst_102 = arith.constant 0.000000e+00 : f32
    %249 = vector.broadcast %cst_102 : f32 to vector<2x128xf32>
    %250 = arith.maximumf %248, %249 : vector<2x128xf32>
    %c160_103 = arith.constant 160 : index
    %c0_104 = arith.constant 0 : index
    %251 = vector.load %arg4[%c160_103, %c0_104] : memref<536x128xf32, #tpu.memory_space<vmem>>, vector<128x128xf32>
    %cst_105 = arith.constant dense<0.000000e+00> : vector<2x128xf32>
    %252 = tpu.matmul %250, %251, %cst_105 {dimension_numbers = #tpu.dot_dimension_numbers<[1], [0], [0], [1], [0, 0, 1, 1], [], []>} : vector<2x128xf32>, vector<128x128xf32>, vector<2x128xf32> -> vector<2x128xf32>
    %253 = vector.broadcast %6 : vector<1x128xf32> to vector<2x128xf32>
    %254 = arith.addf %252, %253 : vector<2x128xf32>
    %cst_106 = arith.constant 3.000000e+00 : f32
    %255 = vector.broadcast %cst_106 : f32 to vector<2x128xf32>
    %256 = arith.mulf %255, %254 : vector<2x128xf32>
    %cst_107 = arith.constant dense<0xFF800000> : vector<2xf32>
    %257 = vector.multi_reduction <maximumf>, %256, %cst_107 [1] : vector<2x128xf32> to vector<2xf32>
    %258 = vector.shape_cast %257 : vector<2xf32> to vector<2x1xf32>
    %259 = vector.broadcast %258 : vector<2x1xf32> to vector<2x128xf32>
    %260 = arith.subf %256, %259 : vector<2x128xf32>
    %261 = math.exp %260 : vector<2x128xf32>
    %cst_108 = arith.constant dense<0.000000e+00> : vector<2xf32>
    %262 = vector.multi_reduction <add>, %261, %cst_108 [1] : vector<2x128xf32> to vector<2xf32>
    %263 = vector.shape_cast %262 : vector<2xf32> to vector<2x1xf32>
    %264 = math.log %263 : vector<2x1xf32>
    %265 = vector.broadcast %264 : vector<2x1xf32> to vector<2x128xf32>
    %266 = arith.subf %260, %265 : vector<2x128xf32>
    %267 = vector.shape_cast %266 : vector<2x128xf32> to vector<2x1x128xf32>
    %c0_109 = arith.constant 0 : index
    %c1_110 = arith.constant 1 : index
    %c0_111 = arith.constant 0 : index
    %268 = vector.load %arg5[%c0_109, %c1_110, %c0_111] : memref<2x4x128xf32, #tpu.memory_space<vmem>>, vector<2x1x128xf32>
    tpu.vector_store %arg5[%c0_109, %c1_110, %c0_111], %267 {strides = array<i32>} : memref<2x4x128xf32, #tpu.memory_space<vmem>>, vector<2x1x128xf32>,
    %c2 = arith.constant 2 : index
    %c0_112 = arith.constant 0 : index
    %c0_113 = arith.constant 0 : index
    %269 = vector.load %arg1[%c2, %c0_112, %c0_113] : memref<4x2x128xf32, #tpu.memory_space<vmem>>, vector<1x2x128xf32>
    %270 = vector.shape_cast %269 : vector<1x2x128xf32> to vector<2x128xf32>
    %c0_114 = arith.constant 0 : index
    %c0_115 = arith.constant 0 : index
    %271 = vector.load %arg4[%c0_114, %c0_115] : memref<536x128xf32, #tpu.memory_space<vmem>>, vector<32x128xf32>
    %cst_116 = arith.constant dense<0.000000e+00> : vector<2x128xf32>
    %272 = tpu.matmul %174, %271, %cst_116 {dimension_numbers = #tpu.dot_dimension_numbers<[1], [0], [0], [1], [0, 0, 1, 1], [], []>} : vector<2x32xf32>, vector<32x128xf32>, vector<2x128xf32> -> vector<2x128xf32>
    %273 = arith.addf %270, %272 : vector<2x128xf32>
    %274 = vector.broadcast %3 : vector<1x128xf32> to vector<2x128xf32>
    %275 = arith.addf %273, %274 : vector<2x128xf32>
    %276 = vector.extract_strided_slice %275 {offsets = [0, 0], sizes = [2, 32], strides = [1, 1]} : vector<2x128xf32> to vector<2x32xf32>
    %277 = arith.negf %276 : vector<2x32xf32>
    %278 = math.exp %277 : vector<2x32xf32>
    %cst_117 = arith.constant 1.000000e+00 : f32
    %279 = vector.broadcast %cst_117 : f32 to vector<2x32xf32>
    %280 = arith.addf %279, %278 : vector<2x32xf32>
    %281 = arith.divf %279, %280 : vector<2x32xf32>
    %282 = vector.extract_strided_slice %275 {offsets = [0, 32], sizes = [2, 32], strides = [1, 1]} : vector<2x128xf32> to vector<2x32xf32>
    %283 = arith.negf %282 : vector<2x32xf32>
    %284 = math.exp %283 : vector<2x32xf32>
    %cst_118 = arith.constant 1.000000e+00 : f32
    %285 = vector.broadcast %cst_118 : f32 to vector<2x32xf32>
    %286 = arith.addf %285, %284 : vector<2x32xf32>
    %287 = arith.divf %285, %286 : vector<2x32xf32>
    %288 = vector.extract_strided_slice %275 {offsets = [0, 64], sizes = [2, 32], strides = [1, 1]} : vector<2x128xf32> to vector<2x32xf32>
    %289 = math.tanh %288 : vector<2x32xf32>
    %290 = vector.extract_strided_slice %275 {offsets = [0, 96], sizes = [2, 32], strides = [1, 1]} : vector<2x128xf32> to vector<2x32xf32>
    %291 = arith.negf %290 : vector<2x32xf32>
    %292 = math.exp %291 : vector<2x32xf32>
    %cst_119 = arith.constant 1.000000e+00 : f32
    %293 = vector.broadcast %cst_119 : f32 to vector<2x32xf32>
    %294 = arith.addf %293, %292 : vector<2x32xf32>
    %295 = arith.divf %293, %294 : vector<2x32xf32>
    %296 = arith.mulf %287, %172 : vector<2x32xf32>
    %297 = arith.mulf %281, %289 : vector<2x32xf32>
    %298 = arith.addf %296, %297 : vector<2x32xf32>
    %299 = math.tanh %298 : vector<2x32xf32>
    %300 = arith.mulf %295, %299 : vector<2x32xf32>
    %c32_120 = arith.constant 32 : index
    %c0_121 = arith.constant 0 : index
    %301 = vector.load %arg4[%c32_120, %c0_121] : memref<536x128xf32, #tpu.memory_space<vmem>>, vector<32x128xf32>
    %cst_122 = arith.constant dense<0.000000e+00> : vector<2x128xf32>
    %302 = tpu.matmul %300, %301, %cst_122 {dimension_numbers = #tpu.dot_dimension_numbers<[1], [0], [0], [1], [0, 0, 1, 1], [], []>} : vector<2x32xf32>, vector<32x128xf32>, vector<2x128xf32> -> vector<2x128xf32>
    %c64_123 = arith.constant 64 : index
    %c0_124 = arith.constant 0 : index
    %303 = vector.load %arg4[%c64_123, %c0_124] : memref<536x128xf32, #tpu.memory_space<vmem>>, vector<32x128xf32>
    %cst_125 = arith.constant dense<0.000000e+00> : vector<2x128xf32>
    %304 = tpu.matmul %206, %303, %cst_125 {dimension_numbers = #tpu.dot_dimension_numbers<[1], [0], [0], [1], [0, 0, 1, 1], [], []>} : vector<2x32xf32>, vector<32x128xf32>, vector<2x128xf32> -> vector<2x128xf32>
    %305 = arith.addf %302, %304 : vector<2x128xf32>
    %306 = vector.broadcast %4 : vector<1x128xf32> to vector<2x128xf32>
    %307 = arith.addf %305, %306 : vector<2x128xf32>
    %308 = vector.extract_strided_slice %307 {offsets = [0, 0], sizes = [2, 32], strides = [1, 1]} : vector<2x128xf32> to vector<2x32xf32>
    %309 = arith.negf %308 : vector<2x32xf32>
    %310 = math.exp %309 : vector<2x32xf32>
    %cst_126 = arith.constant 1.000000e+00 : f32
    %311 = vector.broadcast %cst_126 : f32 to vector<2x32xf32>
    %312 = arith.addf %311, %310 : vector<2x32xf32>
    %313 = arith.divf %311, %312 : vector<2x32xf32>
    %314 = vector.extract_strided_slice %307 {offsets = [0, 32], sizes = [2, 32], strides = [1, 1]} : vector<2x128xf32> to vector<2x32xf32>
    %315 = arith.negf %314 : vector<2x32xf32>
    %316 = math.exp %315 : vector<2x32xf32>
    %cst_127 = arith.constant 1.000000e+00 : f32
    %317 = vector.broadcast %cst_127 : f32 to vector<2x32xf32>
    %318 = arith.addf %317, %316 : vector<2x32xf32>
    %319 = arith.divf %317, %318 : vector<2x32xf32>
    %320 = vector.extract_strided_slice %307 {offsets = [0, 64], sizes = [2, 32], strides = [1, 1]} : vector<2x128xf32> to vector<2x32xf32>
    %321 = math.tanh %320 : vector<2x32xf32>
    %322 = vector.extract_strided_slice %307 {offsets = [0, 96], sizes = [2, 32], strides = [1, 1]} : vector<2x128xf32> to vector<2x32xf32>
    %323 = arith.negf %322 : vector<2x32xf32>
    %324 = math.exp %323 : vector<2x32xf32>
    %cst_128 = arith.constant 1.000000e+00 : f32
    %325 = vector.broadcast %cst_128 : f32 to vector<2x32xf32>
    %326 = arith.addf %325, %324 : vector<2x32xf32>
    %327 = arith.divf %325, %326 : vector<2x32xf32>
    %328 = arith.mulf %319, %204 : vector<2x32xf32>
    %329 = arith.mulf %313, %321 : vector<2x32xf32>
    %330 = arith.addf %328, %329 : vector<2x32xf32>
    %331 = math.tanh %330 : vector<2x32xf32>
    %332 = arith.mulf %327, %331 : vector<2x32xf32>
    %c288_129 = arith.constant 288 : index
    %c0_130 = arith.constant 0 : index
    %333 = vector.load %arg4[%c288_129, %c0_130] : memref<536x128xf32, #tpu.memory_space<vmem>>, vector<32x96xf32>
    %cst_131 = arith.constant dense<0.000000e+00> : vector<2x96xf32>
    %334 = tpu.matmul %332, %333, %cst_131 {dimension_numbers = #tpu.dot_dimension_numbers<[1], [0], [0], [1], [0, 0, 1, 1], [], []>} : vector<2x32xf32>, vector<32x96xf32>, vector<2x96xf32> -> vector<2x96xf32>
    %335 = vector.broadcast %7 : vector<1x96xf32> to vector<2x96xf32>
    %336 = arith.addf %334, %335 : vector<2x96xf32>
    %337 = vector.shape_cast %336 : vector<2x96xf32> to vector<2x1x96xf32>
    %338 = vector.broadcast %337 : vector<2x1x96xf32> to vector<2x8x96xf32>
    %339 = arith.addf %0, %338 : vector<2x8x96xf32>
    %340 = math.tanh %339 : vector<2x8x96xf32>
    %c416_132 = arith.constant 416 : index
    %c0_133 = arith.constant 0 : index
    %341 = vector.load %arg4[%c416_132, %c0_133] : memref<536x128xf32, #tpu.memory_space<vmem>>, vector<96x3xf32>
    %342 = vector.shape_cast %340 : vector<2x8x96xf32> to vector<16x96xf32>
    %cst_134 = arith.constant dense<0.000000e+00> : vector<16x3xf32>
    %343 = tpu.matmul %342, %341, %cst_134 {dimension_numbers = #tpu.dot_dimension_numbers<[1], [0], [0], [1], [0, 0, 1, 1], [], []>} : vector<16x96xf32>, vector<96x3xf32>, vector<16x3xf32> -> vector<16x3xf32>
    %344 = vector.shape_cast %343 : vector<16x3xf32> to vector<2x8x3xf32>
    %345 = vector.broadcast %2 : vector<1x8x3xf32> to vector<2x8x3xf32>
    %346 = arith.addf %344, %345 : vector<2x8x3xf32>
    %cst_135 = arith.constant dense<0xFF800000> : vector<2x3xf32>
    %347 = vector.multi_reduction <maximumf>, %346, %cst_135 [1] : vector<2x8x3xf32> to vector<2x3xf32>
    %348 = vector.shape_cast %347 : vector<2x3xf32> to vector<2x1x3xf32>
    %349 = vector.broadcast %348 : vector<2x1x3xf32> to vector<2x8x3xf32>
    %350 = arith.subf %346, %349 : vector<2x8x3xf32>
    %351 = math.exp %350 : vector<2x8x3xf32>
    %cst_136 = arith.constant dense<0.000000e+00> : vector<2x3xf32>
    %352 = vector.multi_reduction <add>, %351, %cst_136 [1] : vector<2x8x3xf32> to vector<2x3xf32>
    %353 = vector.shape_cast %352 : vector<2x3xf32> to vector<2x1x3xf32>
    %354 = tpu.reciprocal %353 {approx = true} : vector<2x1x3xf32> -> vector<2x1x3xf32>
    %355 = vector.broadcast %354 : vector<2x1x3xf32> to vector<2x8x3xf32>
    %356 = arith.mulf %351, %355 : vector<2x8x3xf32>
    %c512_137 = arith.constant 512 : index
    %c0_138 = arith.constant 0 : index
    %357 = vector.load %arg4[%c512_137, %c0_138] : memref<536x128xf32, #tpu.memory_space<vmem>>, vector<3x96xf32>
    %358 = vector.shape_cast %356 : vector<2x8x3xf32> to vector<16x3xf32>
    %cst_139 = arith.constant dense<0.000000e+00> : vector<16x96xf32>
    %359 = tpu.matmul %358, %357, %cst_139 {dimension_numbers = #tpu.dot_dimension_numbers<[1], [0], [0], [1], [0, 0, 1, 1], [], []>} : vector<16x3xf32>, vector<3x96xf32>, vector<16x96xf32> -> vector<16x96xf32>
    %360 = vector.shape_cast %359 : vector<16x96xf32> to vector<2x8x96xf32>
    %361 = arith.mulf %0, %360 : vector<2x8x96xf32>
    %cst_140 = arith.constant dense<0.000000e+00> : vector<2x96xf32>
    %362 = vector.multi_reduction <add>, %361, %cst_140 [1] : vector<2x8x96xf32> to vector<2x96xf32>
    %c320_141 = arith.constant 320 : index
    %c0_142 = arith.constant 0 : index
    %363 = vector.load %arg4[%c320_141, %c0_142] : memref<536x128xf32, #tpu.memory_space<vmem>>, vector<96x32xf32>
    %cst_143 = arith.constant dense<0.000000e+00> : vector<2x32xf32>
    %364 = tpu.matmul %362, %363, %cst_143 {dimension_numbers = #tpu.dot_dimension_numbers<[1], [0], [0], [1], [0, 0, 1, 1], [], []>} : vector<2x96xf32>, vector<96x32xf32>, vector<2x32xf32> -> vector<2x32xf32>
    %365 = vector.broadcast %8 : vector<1x32xf32> to vector<2x32xf32>
    %366 = arith.addf %364, %365 : vector<2x32xf32>
    %367 = math.tanh %366 : vector<2x32xf32>
    %c96_144 = arith.constant 96 : index
    %c0_145 = arith.constant 0 : index
    %368 = vector.load %arg4[%c96_144, %c0_145] : memref<536x128xf32, #tpu.memory_space<vmem>>, vector<32x128xf32>
    %cst_146 = arith.constant dense<0.000000e+00> : vector<2x128xf32>
    %369 = tpu.matmul %332, %368, %cst_146 {dimension_numbers = #tpu.dot_dimension_numbers<[1], [0], [0], [1], [0, 0, 1, 1], [], []>} : vector<2x32xf32>, vector<32x128xf32>, vector<2x128xf32> -> vector<2x128xf32>
    %c128_147 = arith.constant 128 : index
    %c0_148 = arith.constant 0 : index
    %370 = vector.load %arg4[%c128_147, %c0_148] : memref<536x128xf32, #tpu.memory_space<vmem>>, vector<32x128xf32>
    %cst_149 = arith.constant dense<0.000000e+00> : vector<2x128xf32>
    %371 = tpu.matmul %367, %370, %cst_149 {dimension_numbers = #tpu.dot_dimension_numbers<[1], [0], [0], [1], [0, 0, 1, 1], [], []>} : vector<2x32xf32>, vector<32x128xf32>, vector<2x128xf32> -> vector<2x128xf32>
    %372 = arith.addf %369, %371 : vector<2x128xf32>
    %373 = vector.broadcast %5 : vector<1x128xf32> to vector<2x128xf32>
    %374 = arith.addf %372, %373 : vector<2x128xf32>
    %cst_150 = arith.constant 0.000000e+00 : f32
    %375 = vector.broadcast %cst_150 : f32 to vector<2x128xf32>
    %376 = arith.maximumf %374, %375 : vector<2x128xf32>
    %c160_151 = arith.constant 160 : index
    %c0_152 = arith.constant 0 : index
    %377 = vector.load %arg4[%c160_151, %c0_152] : memref<536x128xf32, #tpu.memory_space<vmem>>, vector<128x128xf32>
    %cst_153 = arith.constant dense<0.000000e+00> : vector<2x128xf32>
    %378 = tpu.matmul %376, %377, %cst_153 {dimension_numbers = #tpu.dot_dimension_numbers<[1], [0], [0], [1], [0, 0, 1, 1], [], []>} : vector<2x128xf32>, vector<128x128xf32>, vector<2x128xf32> -> vector<2x128xf32>
    %379 = vector.broadcast %6 : vector<1x128xf32> to vector<2x128xf32>
    %380 = arith.addf %378, %379 : vector<2x128xf32>
    %cst_154 = arith.constant 3.000000e+00 : f32
    %381 = vector.broadcast %cst_154 : f32 to vector<2x128xf32>
    %382 = arith.mulf %381, %380 : vector<2x128xf32>
    %cst_155 = arith.constant dense<0xFF800000> : vector<2xf32>
    %383 = vector.multi_reduction <maximumf>, %382, %cst_155 [1] : vector<2x128xf32> to vector<2xf32>
    %384 = vector.shape_cast %383 : vector<2xf32> to vector<2x1xf32>
    %385 = vector.broadcast %384 : vector<2x1xf32> to vector<2x128xf32>
    %386 = arith.subf %382, %385 : vector<2x128xf32>
    %387 = math.exp %386 : vector<2x128xf32>
    %cst_156 = arith.constant dense<0.000000e+00> : vector<2xf32>
    %388 = vector.multi_reduction <add>, %387, %cst_156 [1] : vector<2x128xf32> to vector<2xf32>
    %389 = vector.shape_cast %388 : vector<2xf32> to vector<2x1xf32>
    %390 = math.log %389 : vector<2x1xf32>
    %391 = vector.broadcast %390 : vector<2x1xf32> to vector<2x128xf32>
    %392 = arith.subf %386, %391 : vector<2x128xf32>
    %393 = vector.shape_cast %392 : vector<2x128xf32> to vector<2x1x128xf32>
    %c0_157 = arith.constant 0 : index
    %c2_158 = arith.constant 2 : index
    %c0_159 = arith.constant 0 : index
    %394 = vector.load %arg5[%c0_157, %c2_158, %c0_159] : memref<2x4x128xf32, #tpu.memory_space<vmem>>, vector<2x1x128xf32>
    tpu.vector_store %arg5[%c0_157, %c2_158, %c0_159], %393 {strides = array<i32>} : memref<2x4x128xf32, #tpu.memory_space<vmem>>, vector<2x1x128xf32>,
    %c3 = arith.constant 3 : index
    %c0_160 = arith.constant 0 : index
    %c0_161 = arith.constant 0 : index
    %395 = vector.load %arg1[%c3, %c0_160, %c0_161] : memref<4x2x128xf32, #tpu.memory_space<vmem>>, vector<1x2x128xf32>
    %396 = vector.shape_cast %395 : vector<1x2x128xf32> to vector<2x128xf32>
    %c0_162 = arith.constant 0 : index
    %c0_163 = arith.constant 0 : index
    %397 = vector.load %arg4[%c0_162, %c0_163] : memref<536x128xf32, #tpu.memory_space<vmem>>, vector<32x128xf32>
    %cst_164 = arith.constant dense<0.000000e+00> : vector<2x128xf32>
    %398 = tpu.matmul %300, %397, %cst_164 {dimension_numbers = #tpu.dot_dimension_numbers<[1], [0], [0], [1], [0, 0, 1, 1], [], []>} : vector<2x32xf32>, vector<32x128xf32>, vector<2x128xf32> -> vector<2x128xf32>
    %399 = arith.addf %396, %398 : vector<2x128xf32>
    %400 = vector.broadcast %3 : vector<1x128xf32> to vector<2x128xf32>
    %401 = arith.addf %399, %400 : vector<2x128xf32>
    %402 = vector.extract_strided_slice %401 {offsets = [0, 0], sizes = [2, 32], strides = [1, 1]} : vector<2x128xf32> to vector<2x32xf32>
    %403 = arith.negf %402 : vector<2x32xf32>
    %404 = math.exp %403 : vector<2x32xf32>
    %cst_165 = arith.constant 1.000000e+00 : f32
    %405 = vector.broadcast %cst_165 : f32 to vector<2x32xf32>
    %406 = arith.addf %405, %404 : vector<2x32xf32>
    %407 = arith.divf %405, %406 : vector<2x32xf32>
    %408 = vector.extract_strided_slice %401 {offsets = [0, 32], sizes = [2, 32], strides = [1, 1]} : vector<2x128xf32> to vector<2x32xf32>
    %409 = arith.negf %408 : vector<2x32xf32>
    %410 = math.exp %409 : vector<2x32xf32>
    %cst_166 = arith.constant 1.000000e+00 : f32
    %411 = vector.broadcast %cst_166 : f32 to vector<2x32xf32>
    %412 = arith.addf %411, %410 : vector<2x32xf32>
    %413 = arith.divf %411, %412 : vector<2x32xf32>
    %414 = vector.extract_strided_slice %401 {offsets = [0, 64], sizes = [2, 32], strides = [1, 1]} : vector<2x128xf32> to vector<2x32xf32>
    %415 = math.tanh %414 : vector<2x32xf32>
    %416 = vector.extract_strided_slice %401 {offsets = [0, 96], sizes = [2, 32], strides = [1, 1]} : vector<2x128xf32> to vector<2x32xf32>
    %417 = arith.negf %416 : vector<2x32xf32>
    %418 = math.exp %417 : vector<2x32xf32>
    %cst_167 = arith.constant 1.000000e+00 : f32
    %419 = vector.broadcast %cst_167 : f32 to vector<2x32xf32>
    %420 = arith.addf %419, %418 : vector<2x32xf32>
    %421 = arith.divf %419, %420 : vector<2x32xf32>
    %422 = arith.mulf %413, %298 : vector<2x32xf32>
    %423 = arith.mulf %407, %415 : vector<2x32xf32>
    %424 = arith.addf %422, %423 : vector<2x32xf32>
    %425 = math.tanh %424 : vector<2x32xf32>
    %426 = arith.mulf %421, %425 : vector<2x32xf32>
    %c32_168 = arith.constant 32 : index
    %c0_169 = arith.constant 0 : index
    %427 = vector.load %arg4[%c32_168, %c0_169] : memref<536x128xf32, #tpu.memory_space<vmem>>, vector<32x128xf32>
    %cst_170 = arith.constant dense<0.000000e+00> : vector<2x128xf32>
    %428 = tpu.matmul %426, %427, %cst_170 {dimension_numbers = #tpu.dot_dimension_numbers<[1], [0], [0], [1], [0, 0, 1, 1], [], []>} : vector<2x32xf32>, vector<32x128xf32>, vector<2x128xf32> -> vector<2x128xf32>
    %c64_171 = arith.constant 64 : index
    %c0_172 = arith.constant 0 : index
    %429 = vector.load %arg4[%c64_171, %c0_172] : memref<536x128xf32, #tpu.memory_space<vmem>>, vector<32x128xf32>
    %cst_173 = arith.constant dense<0.000000e+00> : vector<2x128xf32>
    %430 = tpu.matmul %332, %429, %cst_173 {dimension_numbers = #tpu.dot_dimension_numbers<[1], [0], [0], [1], [0, 0, 1, 1], [], []>} : vector<2x32xf32>, vector<32x128xf32>, vector<2x128xf32> -> vector<2x128xf32>
    %431 = arith.addf %428, %430 : vector<2x128xf32>
    %432 = vector.broadcast %4 : vector<1x128xf32> to vector<2x128xf32>
    %433 = arith.addf %431, %432 : vector<2x128xf32>
    %434 = vector.extract_strided_slice %433 {offsets = [0, 0], sizes = [2, 32], strides = [1, 1]} : vector<2x128xf32> to vector<2x32xf32>
    %435 = arith.negf %434 : vector<2x32xf32>
    %436 = math.exp %435 : vector<2x32xf32>
    %cst_174 = arith.constant 1.000000e+00 : f32
    %437 = vector.broadcast %cst_174 : f32 to vector<2x32xf32>
    %438 = arith.addf %437, %436 : vector<2x32xf32>
    %439 = arith.divf %437, %438 : vector<2x32xf32>
    %440 = vector.extract_strided_slice %433 {offsets = [0, 32], sizes = [2, 32], strides = [1, 1]} : vector<2x128xf32> to vector<2x32xf32>
    %441 = arith.negf %440 : vector<2x32xf32>
    %442 = math.exp %441 : vector<2x32xf32>
    %cst_175 = arith.constant 1.000000e+00 : f32
    %443 = vector.broadcast %cst_175 : f32 to vector<2x32xf32>
    %444 = arith.addf %443, %442 : vector<2x32xf32>
    %445 = arith.divf %443, %444 : vector<2x32xf32>
    %446 = vector.extract_strided_slice %433 {offsets = [0, 64], sizes = [2, 32], strides = [1, 1]} : vector<2x128xf32> to vector<2x32xf32>
    %447 = math.tanh %446 : vector<2x32xf32>
    %448 = vector.extract_strided_slice %433 {offsets = [0, 96], sizes = [2, 32], strides = [1, 1]} : vector<2x128xf32> to vector<2x32xf32>
    %449 = arith.negf %448 : vector<2x32xf32>
    %450 = math.exp %449 : vector<2x32xf32>
    %cst_176 = arith.constant 1.000000e+00 : f32
    %451 = vector.broadcast %cst_176 : f32 to vector<2x32xf32>
    %452 = arith.addf %451, %450 : vector<2x32xf32>
    %453 = arith.divf %451, %452 : vector<2x32xf32>
    %454 = arith.mulf %445, %330 : vector<2x32xf32>
    %455 = arith.mulf %439, %447 : vector<2x32xf32>
    %456 = arith.addf %454, %455 : vector<2x32xf32>
    %457 = math.tanh %456 : vector<2x32xf32>
    %458 = arith.mulf %453, %457 : vector<2x32xf32>
    %c288_177 = arith.constant 288 : index
    %c0_178 = arith.constant 0 : index
    %459 = vector.load %arg4[%c288_177, %c0_178] : memref<536x128xf32, #tpu.memory_space<vmem>>, vector<32x96xf32>
    %cst_179 = arith.constant dense<0.000000e+00> : vector<2x96xf32>
    %460 = tpu.matmul %458, %459, %cst_179 {dimension_numbers = #tpu.dot_dimension_numbers<[1], [0], [0], [1], [0, 0, 1, 1], [], []>} : vector<2x32xf32>, vector<32x96xf32>, vector<2x96xf32> -> vector<2x96xf32>
    %461 = vector.broadcast %7 : vector<1x96xf32> to vector<2x96xf32>
    %462 = arith.addf %460, %461 : vector<2x96xf32>
    %463 = vector.shape_cast %462 : vector<2x96xf32> to vector<2x1x96xf32>
    %464 = vector.broadcast %463 : vector<2x1x96xf32> to vector<2x8x96xf32>
    %465 = arith.addf %0, %464 : vector<2x8x96xf32>
    %466 = math.tanh %465 : vector<2x8x96xf32>
    %c416_180 = arith.constant 416 : index
    %c0_181 = arith.constant 0 : index
    %467 = vector.load %arg4[%c416_180, %c0_181] : memref<536x128xf32, #tpu.memory_space<vmem>>, vector<96x3xf32>
    %468 = vector.shape_cast %466 : vector<2x8x96xf32> to vector<16x96xf32>
    %cst_182 = arith.constant dense<0.000000e+00> : vector<16x3xf32>
    %469 = tpu.matmul %468, %467, %cst_182 {dimension_numbers = #tpu.dot_dimension_numbers<[1], [0], [0], [1], [0, 0, 1, 1], [], []>} : vector<16x96xf32>, vector<96x3xf32>, vector<16x3xf32> -> vector<16x3xf32>
    %470 = vector.shape_cast %469 : vector<16x3xf32> to vector<2x8x3xf32>
    %471 = vector.broadcast %2 : vector<1x8x3xf32> to vector<2x8x3xf32>
    %472 = arith.addf %470, %471 : vector<2x8x3xf32>
    %cst_183 = arith.constant dense<0xFF800000> : vector<2x3xf32>
    %473 = vector.multi_reduction <maximumf>, %472, %cst_183 [1] : vector<2x8x3xf32> to vector<2x3xf32>
    %474 = vector.shape_cast %473 : vector<2x3xf32> to vector<2x1x3xf32>
    %475 = vector.broadcast %474 : vector<2x1x3xf32> to vector<2x8x3xf32>
    %476 = arith.subf %472, %475 : vector<2x8x3xf32>
    %477 = math.exp %476 : vector<2x8x3xf32>
    %cst_184 = arith.constant dense<0.000000e+00> : vector<2x3xf32>
    %478 = vector.multi_reduction <add>, %477, %cst_184 [1] : vector<2x8x3xf32> to vector<2x3xf32>
    %479 = vector.shape_cast %478 : vector<2x3xf32> to vector<2x1x3xf32>
    %480 = tpu.reciprocal %479 {approx = true} : vector<2x1x3xf32> -> vector<2x1x3xf32>
    %481 = vector.broadcast %480 : vector<2x1x3xf32> to vector<2x8x3xf32>
    %482 = arith.mulf %477, %481 : vector<2x8x3xf32>
    %c512_185 = arith.constant 512 : index
    %c0_186 = arith.constant 0 : index
    %483 = vector.load %arg4[%c512_185, %c0_186] : memref<536x128xf32, #tpu.memory_space<vmem>>, vector<3x96xf32>
    %484 = vector.shape_cast %482 : vector<2x8x3xf32> to vector<16x3xf32>
    %cst_187 = arith.constant dense<0.000000e+00> : vector<16x96xf32>
    %485 = tpu.matmul %484, %483, %cst_187 {dimension_numbers = #tpu.dot_dimension_numbers<[1], [0], [0], [1], [0, 0, 1, 1], [], []>} : vector<16x3xf32>, vector<3x96xf32>, vector<16x96xf32> -> vector<16x96xf32>
    %486 = vector.shape_cast %485 : vector<16x96xf32> to vector<2x8x96xf32>
    %487 = arith.mulf %0, %486 : vector<2x8x96xf32>
    %cst_188 = arith.constant dense<0.000000e+00> : vector<2x96xf32>
    %488 = vector.multi_reduction <add>, %487, %cst_188 [1] : vector<2x8x96xf32> to vector<2x96xf32>
    %c320_189 = arith.constant 320 : index
    %c0_190 = arith.constant 0 : index
    %489 = vector.load %arg4[%c320_189, %c0_190] : memref<536x128xf32, #tpu.memory_space<vmem>>, vector<96x32xf32>
    %cst_191 = arith.constant dense<0.000000e+00> : vector<2x32xf32>
    %490 = tpu.matmul %488, %489, %cst_191 {dimension_numbers = #tpu.dot_dimension_numbers<[1], [0], [0], [1], [0, 0, 1, 1], [], []>} : vector<2x96xf32>, vector<96x32xf32>, vector<2x32xf32> -> vector<2x32xf32>
    %491 = vector.broadcast %8 : vector<1x32xf32> to vector<2x32xf32>
    %492 = arith.addf %490, %491 : vector<2x32xf32>
    %493 = math.tanh %492 : vector<2x32xf32>
    %c96_192 = arith.constant 96 : index
    %c0_193 = arith.constant 0 : index
    %494 = vector.load %arg4[%c96_192, %c0_193] : memref<536x128xf32, #tpu.memory_space<vmem>>, vector<32x128xf32>
    %cst_194 = arith.constant dense<0.000000e+00> : vector<2x128xf32>
    %495 = tpu.matmul %458, %494, %cst_194 {dimension_numbers = #tpu.dot_dimension_numbers<[1], [0], [0], [1], [0, 0, 1, 1], [], []>} : vector<2x32xf32>, vector<32x128xf32>, vector<2x128xf32> -> vector<2x128xf32>
    %c128_195 = arith.constant 128 : index
    %c0_196 = arith.constant 0 : index
    %496 = vector.load %arg4[%c128_195, %c0_196] : memref<536x128xf32, #tpu.memory_space<vmem>>, vector<32x128xf32>
    %cst_197 = arith.constant dense<0.000000e+00> : vector<2x128xf32>
    %497 = tpu.matmul %493, %496, %cst_197 {dimension_numbers = #tpu.dot_dimension_numbers<[1], [0], [0], [1], [0, 0, 1, 1], [], []>} : vector<2x32xf32>, vector<32x128xf32>, vector<2x128xf32> -> vector<2x128xf32>
    %498 = arith.addf %495, %497 : vector<2x128xf32>
    %499 = vector.broadcast %5 : vector<1x128xf32> to vector<2x128xf32>
    %500 = arith.addf %498, %499 : vector<2x128xf32>
    %cst_198 = arith.constant 0.000000e+00 : f32
    %501 = vector.broadcast %cst_198 : f32 to vector<2x128xf32>
    %502 = arith.maximumf %500, %501 : vector<2x128xf32>
    %c160_199 = arith.constant 160 : index
    %c0_200 = arith.constant 0 : index
    %503 = vector.load %arg4[%c160_199, %c0_200] : memref<536x128xf32, #tpu.memory_space<vmem>>, vector<128x128xf32>
    %cst_201 = arith.constant dense<0.000000e+00> : vector<2x128xf32>
    %504 = tpu.matmul %502, %503, %cst_201 {dimension_numbers = #tpu.dot_dimension_numbers<[1], [0], [0], [1], [0, 0, 1, 1], [], []>} : vector<2x128xf32>, vector<128x128xf32>, vector<2x128xf32> -> vector<2x128xf32>
    %505 = vector.broadcast %6 : vector<1x128xf32> to vector<2x128xf32>
    %506 = arith.addf %504, %505 : vector<2x128xf32>
    %cst_202 = arith.constant 3.000000e+00 : f32
    %507 = vector.broadcast %cst_202 : f32 to vector<2x128xf32>
    %508 = arith.mulf %507, %506 : vector<2x128xf32>
    %cst_203 = arith.constant dense<0xFF800000> : vector<2xf32>
    %509 = vector.multi_reduction <maximumf>, %508, %cst_203 [1] : vector<2x128xf32> to vector<2xf32>
    %510 = vector.shape_cast %509 : vector<2xf32> to vector<2x1xf32>
    %511 = vector.broadcast %510 : vector<2x1xf32> to vector<2x128xf32>
    %512 = arith.subf %508, %511 : vector<2x128xf32>
    %513 = math.exp %512 : vector<2x128xf32>
    %cst_204 = arith.constant dense<0.000000e+00> : vector<2xf32>
    %514 = vector.multi_reduction <add>, %513, %cst_204 [1] : vector<2x128xf32> to vector<2xf32>
    %515 = vector.shape_cast %514 : vector<2xf32> to vector<2x1xf32>
    %516 = math.log %515 : vector<2x1xf32>
    %517 = vector.broadcast %516 : vector<2x1xf32> to vector<2x128xf32>
    %518 = arith.subf %512, %517 : vector<2x128xf32>
    %519 = vector.shape_cast %518 : vector<2x128xf32> to vector<2x1x128xf32>
    %c0_205 = arith.constant 0 : index
    %c3_206 = arith.constant 3 : index
    %c0_207 = arith.constant 0 : index
    %520 = vector.load %arg5[%c0_205, %c3_206, %c0_207] : memref<2x4x128xf32, #tpu.memory_space<vmem>>, vector<2x1x128xf32>
    tpu.vector_store %arg5[%c0_205, %c3_206, %c0_207], %519 {strides = array<i32>} : memref<2x4x128xf32, #tpu.memory_space<vmem>>, vector<2x1x128xf32>,
    %c0_208 = arith.constant 0 : index
    %c0_209 = arith.constant 0 : index
    %c0_210 = arith.constant 0 : index
    %c0_211 = arith.constant 0 : index
    %521 = vector.load %arg6[%c0_208, %c0_209, %c0_210, %c0_211] : memref<2x2x2x32xf32, #tpu.memory_space<vmem>>, vector<1x1x2x32xf32>
    %522 = vector.shape_cast %521 : vector<1x1x2x32xf32> to vector<2x32xf32>
    %523 = vector.shape_cast %426 : vector<2x32xf32> to vector<1x1x2x32xf32>
    tpu.vector_store %arg6[%c0_208, %c0_209, %c0_210, %c0_211], %523 {strides = array<i32>} : memref<2x2x2x32xf32, #tpu.memory_space<vmem>>, vector<1x1x2x32xf32>,
    %c1_212 = arith.constant 1 : index
    %c0_213 = arith.constant 0 : index
    %c0_214 = arith.constant 0 : index
    %c0_215 = arith.constant 0 : index
    %524 = vector.load %arg6[%c1_212, %c0_213, %c0_214, %c0_215] : memref<2x2x2x32xf32, #tpu.memory_space<vmem>>, vector<1x1x2x32xf32>
    %525 = vector.shape_cast %524 : vector<1x1x2x32xf32> to vector<2x32xf32>
    %526 = vector.shape_cast %424 : vector<2x32xf32> to vector<1x1x2x32xf32>
    tpu.vector_store %arg6[%c1_212, %c0_213, %c0_214, %c0_215], %526 {strides = array<i32>} : memref<2x2x2x32xf32, #tpu.memory_space<vmem>>, vector<1x1x2x32xf32>,
    %c0_216 = arith.constant 0 : index
    %c1_217 = arith.constant 1 : index
    %c0_218 = arith.constant 0 : index
    %c0_219 = arith.constant 0 : index
    %527 = vector.load %arg6[%c0_216, %c1_217, %c0_218, %c0_219] : memref<2x2x2x32xf32, #tpu.memory_space<vmem>>, vector<1x1x2x32xf32>
    %528 = vector.shape_cast %527 : vector<1x1x2x32xf32> to vector<2x32xf32>
    %529 = vector.shape_cast %458 : vector<2x32xf32> to vector<1x1x2x32xf32>
    tpu.vector_store %arg6[%c0_216, %c1_217, %c0_218, %c0_219], %529 {strides = array<i32>} : memref<2x2x2x32xf32, #tpu.memory_space<vmem>>, vector<1x1x2x32xf32>,
    %c1_220 = arith.constant 1 : index
    %c1_221 = arith.constant 1 : index
    %c0_222 = arith.constant 0 : index
    %c0_223 = arith.constant 0 : index
    %530 = vector.load %arg6[%c1_220, %c1_221, %c0_222, %c0_223] : memref<2x2x2x32xf32, #tpu.memory_space<vmem>>, vector<1x1x2x32xf32>
    %531 = vector.shape_cast %530 : vector<1x1x2x32xf32> to vector<2x32xf32>
    %532 = vector.shape_cast %456 : vector<2x32xf32> to vector<1x1x2x32xf32>
    tpu.vector_store %arg6[%c1_220, %c1_221, %c0_222, %c0_223], %532 {strides = array<i32>} : memref<2x2x2x32xf32, #tpu.memory_space<vmem>>, vector<1x1x2x32xf32>,
    return
  }
  func.func @transform_0(%arg0: i32) -> (i32, i32, i32) {
    %c0_i32 = arith.constant 0 : i32
    %c0_i32_0 = arith.constant 0 : i32
    %c0_i32_1 = arith.constant 0 : i32
    %c0_i32_2 = arith.constant 0 : i32
    return %c0_i32, %c0_i32_0, %c0_i32_1 : i32, i32, i32
  }
  func.func @transform_1(%arg0: i32) -> (i32, i32, i32, i32) {
    %c0_i32 = arith.constant 0 : i32
    %c0_i32_0 = arith.constant 0 : i32
    %c0_i32_1 = arith.constant 0 : i32
    %c0_i32_2 = arith.constant 0 : i32
    %c0_i32_3 = arith.constant 0 : i32
    return %c0_i32, %c0_i32_0, %c0_i32_1, %c0_i32_2 : i32, i32, i32, i32
  }
  func.func @transform_2(%arg0: i32) -> (i32, i32, i32) {
    %c0_i32 = arith.constant 0 : i32
    %c0_i32_0 = arith.constant 0 : i32
    %c0_i32_1 = arith.constant 0 : i32
    %c0_i32_2 = arith.constant 0 : i32
    return %c0_i32, %c0_i32_0, %c0_i32_1 : i32, i32, i32
  }
  func.func @transform_3(%arg0: i32) -> (i32, i32) {
    %c0_i32 = arith.constant 0 : i32
    %c0_i32_0 = arith.constant 0 : i32
    %c0_i32_1 = arith.constant 0 : i32
    return %c0_i32, %c0_i32_0 : i32, i32
  }
  func.func @transform_4(%arg0: i32) -> (i32, i32, i32) {
    %c0_i32 = arith.constant 0 : i32
    %c0_i32_0 = arith.constant 0 : i32
    %c0_i32_1 = arith.constant 0 : i32
    %c0_i32_2 = arith.constant 0 : i32
    return %c0_i32, %c0_i32_0, %c0_i32_1 : i32, i32, i32
  }
  func.func @transform_5(%arg0: i32) -> (i32, i32, i32, i32) {
    %c0_i32 = arith.constant 0 : i32
    %c0_i32_0 = arith.constant 0 : i32
    %c0_i32_1 = arith.constant 0 : i32
    %c0_i32_2 = arith.constant 0 : i32
    %c0_i32_3 = arith.constant 0 : i32
    return %c0_i32, %c0_i32_0, %c0_i32_1, %c0_i32_2 : i32, i32, i32, i32
  }
}

</mosaic_0001>

<llo_original>
// kernel: netg_forward.1
$region0: #{netg_forward.1}
  #allocation0 [shape = 'u32[]', space=smem, size = 0x4, offset = 0x4, fixed_abs, tag = 'smem constant byte address 0x4 - core index']
  #allocation1 [shape = 'u32[72,128]{1,0:T(1,128)}', space=vmem, size = 0x9000, scoped, tag = 'internal scratch']
  %s0 = inlined_call_operand.vmem [shape: f32[4,2,128], index: 0, kind: input, shape index: {}]
  %s1 = inlined_call_operand.vmem [shape: f32[2,2,2,32], index: 1, kind: input, shape index: {}]
  %s2 = inlined_call_operand.vmem [shape: f32[2,8,96], index: 2, kind: input, shape index: {}]
  %s3 = inlined_call_operand.vmem [shape: f32[536,128], index: 3, kind: input, shape index: {}]
  %s4 = inlined_call_operand.hbm [shape: f32[2,4,128], index: 4, kind: output, shape index: {0}]
  %s5 = inlined_call_operand.vmem [shape: f32[2,2,2,32], index: 5, kind: output, shape index: {1}]
  %6 = xla_tuple %s4, %s5
  %s7 = sld [smem:[#allocation0]]
  $region34: #{netg_forward.1} parent=0
    _
  %s9 = ssub.s32 1, %s7
  %s10 = scalar_select 0, %s9, %s7
  $region1: #{netg_forward.1} parent=0
    #allocation2 [shape = 'u8[4096]{0}', space=vmem, size = 0x1000, scoped, tag = 'output window, operand 0, single buffered']
    #allocation3 [shape = 's32[1]{0}', space=sflag, size = 0x4, scoped, tag = 'scoped memory for netg_forward.1']
    %11 = vsyncpa [#allocation3], 0
    // Predicated region
    $region2: #{netg_forward.1} parent=1 // pred_check
      _
    $region3: #{netg_forward.1} parent=1 // pred_check_branch
      %13 = sbr.rel (0) target = $region5
    $region4: #{netg_forward.1} parent=1 // pred_region
      _
    $region5: #{netg_forward.1} parent=1 // pred_fallthru
      _
    // Predicated region
    $region6: #{netg_forward.1} parent=1 // pred_check
      _
    $region7: #{netg_forward.1} parent=1 // pred_check_branch
      %15 = sbr.rel (0) target = $region9
    $region8: #{netg_forward.1} parent=1 // pred_region
      _
    $region9: #{netg_forward.1} parent=1 // pred_fallthru
      _
    // Predicated region
    $region10: #{netg_forward.1} parent=1 // pred_check
      _
    $region11: #{netg_forward.1} parent=1 // pred_check_branch
      %17 = sbr.rel (0) target = $region13
    $region12: #{netg_forward.1} parent=1 // pred_region
      _
    $region13: #{netg_forward.1} parent=1 // pred_fallthru
      _
    // Predicated region
    $region14: #{netg_forward.1} parent=1 // pred_check
      _
    $region15: #{netg_forward.1} parent=1 // pred_check_branch
      %19 = sbr.rel (0) target = $region17
    $region16: #{netg_forward.1} parent=1 // pred_region
      _
    $region17: #{netg_forward.1} parent=1 // pred_fallthru
      _
    %v20 = vld [vmem:[%s2] sm:$0xff]
    %v21 = vld [vmem:[%s2 + $0x8] sm:$0xff]
    %v22 = vld [vmem:[%s3 + $0x210] sm:$0xff]
    %v23 = vld [vmem:[%s3 + $0x208] sm:$0x1]
    %v24 = vld [vmem:[%s3 + $0x209] sm:$0x1]
    %v25 = vld [vmem:[%s3 + $0x20a] sm:$0x1]
    %v26 = vld [vmem:[%s3 + $0x20b] sm:$0x1]
    %v27 = vld [vmem:[%s3 + $0x20c] sm:$0x1]
    %v28 = vld [vmem:[%s3 + $0x20d] sm:$0x1]
    %v29 = vld [vmem:[%s1] sm:$0x3]
    %s30 = scalar_lea.vmem %s1, 2
    %v31 = vld [vmem:[%s30] sm:$0x3]
    %s32 = scalar_lea.vmem %s1, 4
    %v33 = vld [vmem:[%s32] sm:$0x3]
    %s34 = scalar_lea.vmem %s1, 6
    %v35 = vld [vmem:[%s34] sm:$0x3]
    %v36 = vld [vmem:[%s0] sm:$0x3]
    %v37 = vld [vmem:[%s3] sm:$0xff]
    %v38 = vld [vmem:[%s3 + $0x8] sm:$0xff]
    %v39 = vld [vmem:[%s3 + $0x10] sm:$0xff]
    %v40 = vld [vmem:[%s3 + $0x18] sm:$0xff]
    %vm41 = vcmask 261120
    %v43 = vsel %vm41, %v29, 0
    %45 = vmatpush.msra.mxu0 0.0
    %46 = vmatpush.msra.mxu0 0.0
    %47 = vmatpush.msra.mxu0 0.0
    %48 = vmatpush.msra.mxu0 0.0
    %49 = vmatpush.msra.mxu0 0.0
    %50 = vmatpush.msra.mxu0 0.0
    %51 = vmatpush.msra.mxu0 0.0
    %52 = vmatpush.msra.mxu0 0.0
    %53 = vmatpush.msra.mxu0 0.0
    %54 = vmatpush.msra.mxu0 0.0
    %55 = vmatpush.msra.mxu0 0.0
    %56 = vmatpush.msra.mxu0 0.0
    %57 = vmatpush.msra.mxu0 %v40
    %58 = vmatpush.msra.mxu0 %v39
    %59 = vmatpush.msra.mxu0 %v38
    %60 = vmatpush.msra.mxu0 %v37
    %61 = vmatmul.f32.gmra.mxu0 %v43
    %v62 = vpop.f32.mrf.mxu0
    %v63 = vadd.f32 0.0, %v62
    %64 = vdwg.mxu0
    %v65 = vadd.f32 %v36, %v63
    %v66 = vperm.slane %v23, 0
    %v67 = vadd.f32 %v65, %v66
    %v68 = vxor.u32 %v67, 2147483648
    %v69 = vmul.f32 %v68, 1.442695
    %v70 = vpow.pop %v69
    %v71 = vadd.f32 %v70, 1.0
    %v72 = vrcp.pop %v71
    %v73 = vmul.f32 %v71, %v72
    %v74 = vsub.f32 1.0, %v73
    %v75 = vmul.f32 %v72, %v74
    %v76 = vadd.f32 %v72, %v75
    %vm77 = vweird.f32 %v71
    %vm78 = vweird.f32 %v72
    %vm79 = vmor %vm77, %vm78
    %v80 = vsel %vm79, %v72, %v76
    %v81 = vand.u32 2147483647, %v71
    %vm82 = vcmp.eq.f32.partialorder %v81, 8.507059e+37
    %v83 = vand.u32 %v71, 2147483648
    %v84 = vor.u32 1.1754944e-38, %v83
    %v85 = vsel %vm82, %v84, %v80
    %v86 = vmul.f32 1.0, %v85
    %v87 = vtanh.pop %v67
    %89 = vrot.lane.b32.xlu0 %v33, 32
    %v90 = vpop.permute.xlu0 %89
    %v92 = vmul.f32 %v86, %v90
    %94 = vrot.lane.b32.xlu0 %v87, 64
    %v95 = vpop.permute.xlu0 %94
    %v97 = vmul.f32 %v86, %v95
    %99 = vrot.lane.b32.xlu0 %v97, 32
    %v100 = vpop.permute.xlu0 %99
    %v102 = vadd.f32 %v92, %v100
    %v103 = vtanh.pop %v102
    %105 = vrot.lane.b32.xlu0 %v103, 64
    %v106 = vpop.permute.xlu0 %105
    %v108 = vmul.f32 %v86, %v106
    %v109 = vld [vmem:[%s3 + $0x20] sm:$0xff]
    %v110 = vld [vmem:[%s3 + $0x28] sm:$0xff]
    %v111 = vld [vmem:[%s3 + $0x30] sm:$0xff]
    %v112 = vld [vmem:[%s3 + $0x38] sm:$0xff]
    %v113 = vld [vmem:[%s3 + $0x40] sm:$0xff]
    %v114 = vld [vmem:[%s3 + $0x48] sm:$0xff]
    %v115 = vld [vmem:[%s3 + $0x50] sm:$0xff]
    %v116 = vld [vmem:[%s3 + $0x58] sm:$0xff]
    %v118 = vsel %vm41, %v31, 0
    %120 = vmatpush.msra.mxu0 0.0
    %121 = vmatpush.msra.mxu0 0.0
    %122 = vmatpush.msra.mxu0 0.0
    %123 = vmatpush.msra.mxu0 0.0
    %124 = vmatpush.msra.mxu0 0.0
    %125 = vmatpush.msra.mxu0 0.0
    %126 = vmatpush.msra.mxu0 0.0
    %127 = vmatpush.msra.mxu0 0.0
    %128 = vmatpush.msra.mxu0 0.0
    %129 = vmatpush.msra.mxu0 0.0
    %130 = vmatpush.msra.mxu0 0.0
    %131 = vmatpush.msra.mxu0 0.0
    %132 = vmatpush.msra.mxu0 %v116
    %133 = vmatpush.msra.mxu0 %v115
    %134 = vmatpush.msra.mxu0 %v114
    %135 = vmatpush.msra.mxu0 %v113
    %136 = vmatmul.f32.gmra.mxu0 %v118
    %v137 = vpop.f32.mrf.mxu0
    %v138 = vadd.f32 0.0, %v137
    %139 = vdwg.mxu0
    %141 = vrot.lane.b32.xlu0 %v108, 32
    %v142 = vpop.permute.xlu0 %141
    %v143 = vsel %vm41, %v142, 0
    %145 = vmatpush.msra.mxu0 0.0
    %146 = vmatpush.msra.mxu0 0.0
    %147 = vmatpush.msra.mxu0 0.0
    %148 = vmatpush.msra.mxu0 0.0
    %149 = vmatpush.msra.mxu0 0.0
    %150 = vmatpush.msra.mxu0 0.0
    %151 = vmatpush.msra.mxu0 0.0
    %152 = vmatpush.msra.mxu0 0.0
    %153 = vmatpush.msra.mxu0 0.0
    %154 = vmatpush.msra.mxu0 0.0
    %155 = vmatpush.msra.mxu0 0.0
    %156 = vmatpush.msra.mxu0 0.0
    %157 = vmatpush.msra.mxu0 %v112
    %158 = vmatpush.msra.mxu0 %v111
    %159 = vmatpush.msra.mxu0 %v110
    %160 = vmatpush.msra.mxu0 %v109
    %161 = vmatmul.f32.gmra.mxu0 %v143
    %v162 = vpop.f32.mrf.mxu0
    %v163 = vadd.f32 %v138, %v162
    %164 = vdwg.mxu0
    %v165 = vperm.slane %v24, 0
    %v166 = vadd.f32 %v163, %v165
    %v167 = vxor.u32 %v166, 2147483648
    %v168 = vmul.f32 %v167, 1.442695
    %v169 = vpow.pop %v168
    %v170 = vadd.f32 %v169, 1.0
    %v171 = vrcp.pop %v170
    %v172 = vmul.f32 %v170, %v171
    %v173 = vsub.f32 1.0, %v172
    %v174 = vmul.f32 %v171, %v173
    %v175 = vadd.f32 %v171, %v174
    %vm176 = vweird.f32 %v170
    %vm177 = vweird.f32 %v171
    %vm178 = vmor %vm176, %vm177
    %v179 = vsel %vm178, %v171, %v175
    %v180 = vand.u32 2147483647, %v170
    %vm181 = vcmp.eq.f32.partialorder %v180, 8.507059e+37
    %v182 = vand.u32 %v170, 2147483648
    %v183 = vor.u32 1.1754944e-38, %v182
    %v184 = vsel %vm181, %v183, %v179
    %v185 = vmul.f32 1.0, %v184
    %v186 = vtanh.pop %v166
    %188 = vrot.lane.b32.xlu0 %v35, 32
    %v189 = vpop.permute.xlu0 %188
    %v191 = vmul.f32 %v185, %v189
    %193 = vrot.lane.b32.xlu0 %v186, 64
    %v194 = vpop.permute.xlu0 %193
    %v196 = vmul.f32 %v185, %v194
    %198 = vrot.lane.b32.xlu0 %v196, 32
    %v199 = vpop.permute.xlu0 %198
    %v201 = vadd.f32 %v191, %v199
    %v202 = vtanh.pop %v201
    %204 = vrot.lane.b32.xlu0 %v202, 64
    %v205 = vpop.permute.xlu0 %204
    %v207 = vmul.f32 %v185, %v205
    %v208 = vld [vmem:[%s3 + $0x120] sm:$0xff]
    %v209 = vld [vmem:[%s3 + $0x128] sm:$0xff]
    %v210 = vld [vmem:[%s3 + $0x130] sm:$0xff]
    %v211 = vld [vmem:[%s3 + $0x138] sm:$0xff]
    %v212 = vperm.slane %v27, 0
    %214 = vrot.lane.b32.xlu0 %v207, 32
    %v215 = vpop.permute.xlu0 %214
    %v216 = vsel %vm41, %v215, 0
    %218 = vmatpush.msra.mxu0 0.0
    %219 = vmatpush.msra.mxu0 0.0
    %220 = vmatpush.msra.mxu0 0.0
    %221 = vmatpush.msra.mxu0 0.0
    %222 = vmatpush.msra.mxu0 0.0
    %223 = vmatpush.msra.mxu0 0.0
    %224 = vmatpush.msra.mxu0 0.0
    %225 = vmatpush.msra.mxu0 0.0
    %226 = vmatpush.msra.mxu0 0.0
    %227 = vmatpush.msra.mxu0 0.0
    %228 = vmatpush.msra.mxu0 0.0
    %229 = vmatpush.msra.mxu0 0.0
    %230 = vmatpush.msra.mxu0 %v211
    %231 = vmatpush.msra.mxu0 %v210
    %232 = vmatpush.msra.mxu0 %v209
    %233 = vmatpush.msra.mxu0 %v208
    %234 = vmatmul.f32.gmra.mxu0 %v216
    %v235 = vpop.f32.mrf.mxu0
    %v236 = vadd.f32 %v212, %v235
    %237 = vdwg.mxu0
    %v239 = vrot.slane %v236, 1
    %v240 = vperm.slane %v236, 0
    %v241 = vperm.slane %v239, 0
    %v244 = vadd.f32 %v20, %v240
    %v245 = vadd.f32 %v21, %v241
    %v246 = vtanh.pop %v244
    %v247 = vtanh.pop %v245
    %v248 = vld [vmem:[%s3 + $0x1a0] sm:$0xff]
    %v249 = vld [vmem:[%s3 + $0x1a8] sm:$0xff]
    %v250 = vld [vmem:[%s3 + $0x1b0] sm:$0xff]
    %v251 = vld [vmem:[%s3 + $0x1b8] sm:$0xff]
    %v252 = vld [vmem:[%s3 + $0x1c0] sm:$0xff]
    %v253 = vld [vmem:[%s3 + $0x1c8] sm:$0xff]
    %v254 = vld [vmem:[%s3 + $0x1d0] sm:$0xff]
    %v255 = vld [vmem:[%s3 + $0x1d8] sm:$0xff]
    %v256 = vld [vmem:[%s3 + $0x1e0] sm:$0xff]
    %v257 = vld [vmem:[%s3 + $0x1e8] sm:$0xff]
    %v258 = vld [vmem:[%s3 + $0x1f0] sm:$0xff]
    %v259 = vld [vmem:[%s3 + $0x1f8] sm:$0xff]
    %vm260 = vcmask 785408
    %v262 = vsel %vm260, %v246, 0
    %v265 = vsel %vm260, %v247, 0
    %267 = vmatpush.msra.mxu0 0.0
    %268 = vmatpush.msra.mxu0 0.0
    %269 = vmatpush.msra.mxu0 0.0
    %270 = vmatpush.msra.mxu0 0.0
    %271 = vmatpush.msra.mxu0 %v259
    %272 = vmatpush.msra.mxu0 %v258
    %273 = vmatpush.msra.mxu0 %v257
    %274 = vmatpush.msra.mxu0 %v256
    %275 = vmatpush.msra.mxu0 %v255
    %276 = vmatpush.msra.mxu0 %v254
    %277 = vmatpush.msra.mxu0 %v253
    %278 = vmatpush.msra.mxu0 %v252
    %279 = vmatpush.msra.mxu0 %v251
    %280 = vmatpush.msra.mxu0 %v250
    %281 = vmatpush.msra.mxu0 %v249
    %282 = vmatpush.msra.mxu0 %v248
    %283 = vmatmul.f32.gmra.mxu0 %v262
    %v284 = vpop.f32.mrf.mxu0
    %v285 = vadd.f32 0.0, %v284
    %286 = vmatmul.f32.gmra.mxu0 %v265
    %v287 = vpop.f32.mrf.mxu0
    %v288 = vadd.f32 0.0, %v287
    %289 = vdwg.mxu0
    %v290 = vadd.f32 %v285, %v22
    %v291 = vadd.f32 %v288, %v22
    %vm292 = vcmask 23552
    %v293 = vsel %vm292, %v290, -inf
    %v294 = vrot.slane %v293, 4
    %v295 = vmax.f32 %v293, %v294
    %v296 = vrot.slane %v295, 2
    %v297 = vmax.f32 %v295, %v296
    %v298 = vrot.slane %v297, 1
    %v299 = vmax.f32 %v297, %v298
    %v300 = vsel %vm292, %v291, -inf
    %v301 = vrot.slane %v300, 4
    %v302 = vmax.f32 %v300, %v301
    %v303 = vrot.slane %v302, 2
    %v304 = vmax.f32 %v302, %v303
    %v305 = vrot.slane %v304, 1
    %v306 = vmax.f32 %v304, %v305
    %v307 = vsub.f32 %v290, %v299
    %v308 = vsub.f32 %v291, %v306
    %v309 = vmul.f32 %v307, 1.442695
    %v310 = vpow.pop %v309
    %v311 = vmul.f32 %v308, 1.442695
    %v312 = vpow.pop %v311
    %v313 = vsel %vm292, %v310, 0.0
    %v314 = vrot.slane %v313, 4
    %v315 = vadd.f32 %v313, %v314
    %v316 = vrot.slane %v315, 2
    %v317 = vadd.f32 %v315, %v316
    %v318 = vrot.slane %v317, 1
    %v319 = vadd.f32 %v317, %v318
    %v320 = vsel %vm292, %v312, 0.0
    %v321 = vrot.slane %v320, 4
    %v322 = vadd.f32 %v320, %v321
    %v323 = vrot.slane %v322, 2
    %v324 = vadd.f32 %v322, %v323
    %v325 = vrot.slane %v324, 1
    %v326 = vadd.f32 %v324, %v325
    %v327 = vrcp.pop %v319
    %v328 = vrcp.pop %v326
    %v329 = vmul.f32 %v310, %v327
    %v330 = vmul.f32 %v312, %v328
    %v331 = vld [vmem:[%s3 + $0x200] sm:$0x7]
    %v333 = vsel %vm292, %v329, 0
    %v336 = vsel %vm292, %v330, 0
    %vm338 = vcmask 1042432
    %v340 = vsel %vm338, %v331, 0
    %342 = vmatpush.msra.mxu0 0.0
    %343 = vmatpush.msra.mxu0 0.0
    %344 = vmatpush.msra.mxu0 0.0
    %345 = vmatpush.msra.mxu0 0.0
    %346 = vmatpush.msra.mxu0 0.0
    %347 = vmatpush.msra.mxu0 0.0
    %348 = vmatpush.msra.mxu0 0.0
    %349 = vmatpush.msra.mxu0 0.0
    %350 = vmatpush.msra.mxu0 0.0
    %351 = vmatpush.msra.mxu0 0.0
    %352 = vmatpush.msra.mxu0 0.0
    %353 = vmatpush.msra.mxu0 0.0
    %354 = vmatpush.msra.mxu0 0.0
    %355 = vmatpush.msra.mxu0 0.0
    %356 = vmatpush.msra.mxu0 0.0
    %357 = vmatpush.msra.mxu0 %v340
    %358 = vmatmul.f32.gmra.mxu0 %v333
    %v359 = vpop.f32.mrf.mxu0
    %v360 = vadd.f32 0.0, %v359
    %361 = vmatmul.f32.gmra.mxu0 %v336
    %v362 = vpop.f32.mrf.mxu0
    %v363 = vadd.f32 0.0, %v362
    %364 = vdwg.mxu0
    %v365 = vmul.f32 %v20, %v360
    %v366 = vmul.f32 %v21, %v363
    %v367 = vsel %vm260, %v365, 0.0
    %v368 = vrot.slane %v367, 4
    %v369 = vadd.f32 %v367, %v368
    %v370 = vrot.slane %v369, 2
    %v371 = vadd.f32 %v369, %v370
    %v372 = vrot.slane %v371, 1
    %v373 = vadd.f32 %v371, %v372
    %v374 = vsel %vm260, %v366, 0.0
    %v375 = vrot.slane %v374, 4
    %v376 = vadd.f32 %v374, %v375
    %v377 = vrot.slane %v376, 2
    %v378 = vadd.f32 %v376, %v377
    %v379 = vrot.slane %v378, 1
    %v380 = vadd.f32 %v378, %v379
    %v381 = vld [vmem:[%s3 + $0x140] sm:$0xff]
    %v382 = vld [vmem:[%s3 + $0x148] sm:$0xff]
    %v383 = vld [vmem:[%s3 + $0x150] sm:$0xff]
    %v384 = vld [vmem:[%s3 + $0x158] sm:$0xff]
    %v385 = vld [vmem:[%s3 + $0x160] sm:$0xff]
    %v386 = vld [vmem:[%s3 + $0x168] sm:$0xff]
    %v387 = vld [vmem:[%s3 + $0x170] sm:$0xff]
    %v388 = vld [vmem:[%s3 + $0x178] sm:$0xff]
    %v389 = vld [vmem:[%s3 + $0x180] sm:$0xff]
    %v390 = vld [vmem:[%s3 + $0x188] sm:$0xff]
    %v391 = vld [vmem:[%s3 + $0x190] sm:$0xff]
    %v392 = vld [vmem:[%s3 + $0x198] sm:$0xff]
    %v393 = vperm.slane %v28, 0
    %vm396 = vcmask 1041409
    %v397 = vsel %vm396, %v380, %v373
    %v398 = vsel %vm260, %v397, 0
    %400 = vmatpush.msra.mxu0 0.0
    %401 = vmatpush.msra.mxu0 0.0
    %402 = vmatpush.msra.mxu0 0.0
    %403 = vmatpush.msra.mxu0 0.0
    %404 = vmatpush.msra.mxu0 %v392
    %405 = vmatpush.msra.mxu0 %v391
    %406 = vmatpush.msra.mxu0 %v390
    %407 = vmatpush.msra.mxu0 %v389
    %408 = vmatpush.msra.mxu0 %v388
    %409 = vmatpush.msra.mxu0 %v387
    %410 = vmatpush.msra.mxu0 %v386
    %411 = vmatpush.msra.mxu0 %v385
    %412 = vmatpush.msra.mxu0 %v384
    %413 = vmatpush.msra.mxu0 %v383
    %414 = vmatpush.msra.mxu0 %v382
    %415 = vmatpush.msra.mxu0 %v381
    %416 = vmatmul.f32.gmra.mxu0 %v398
    %v417 = vpop.f32.mrf.mxu0
    %v418 = vadd.f32 %v393, %v417
    %419 = vdwg.mxu0
    %v420 = vtanh.pop %v418
    %v421 = vld [vmem:[%s3 + $0x60] sm:$0xff]
    %v422 = vld [vmem:[%s3 + $0x68] sm:$0xff]
    %v423 = vld [vmem:[%s3 + $0x70] sm:$0xff]
    %v424 = vld [vmem:[%s3 + $0x78] sm:$0xff]
    %v425 = vld [vmem:[%s3 + $0x80] sm:$0xff]
    %v426 = vld [vmem:[%s3 + $0x88] sm:$0xff]
    %v427 = vld [vmem:[%s3 + $0x90] sm:$0xff]
    %v428 = vld [vmem:[%s3 + $0x98] sm:$0xff]
    %v430 = vsel %vm41, %v420, 0
    %432 = vmatpush.msra.mxu0 0.0
    %433 = vmatpush.msra.mxu0 0.0
    %434 = vmatpush.msra.mxu0 0.0
    %435 = vmatpush.msra.mxu0 0.0
    %436 = vmatpush.msra.mxu0 0.0
    %437 = vmatpush.msra.mxu0 0.0
    %438 = vmatpush.msra.mxu0 0.0
    %439 = vmatpush.msra.mxu0 0.0
    %440 = vmatpush.msra.mxu0 0.0
    %441 = vmatpush.msra.mxu0 0.0
    %442 = vmatpush.msra.mxu0 0.0
    %443 = vmatpush.msra.mxu0 0.0
    %444 = vmatpush.msra.mxu0 %v428
    %445 = vmatpush.msra.mxu0 %v427
    %446 = vmatpush.msra.mxu0 %v426
    %447 = vmatpush.msra.mxu0 %v425
    %448 = vmatmul.f32.gmra.mxu0 %v430
    %v449 = vpop.f32.mrf.mxu0
    %v450 = vadd.f32 0.0, %v449
    %451 = vdwg.mxu0
    %452 = vmatpush.msra.mxu0 0.0
    %453 = vmatpush.msra.mxu0 0.0
    %454 = vmatpush.msra.mxu0 0.0
    %455 = vmatpush.msra.mxu0 0.0
    %456 = vmatpush.msra.mxu0 0.0
    %457 = vmatpush.msra.mxu0 0.0
    %458 = vmatpush.msra.mxu0 0.0
    %459 = vmatpush.msra.mxu0 0.0
    %460 = vmatpush.msra.mxu0 0.0
    %461 = vmatpush.msra.mxu0 0.0
    %462 = vmatpush.msra.mxu0 0.0
    %463 = vmatpush.msra.mxu0 0.0
    %464 = vmatpush.msra.mxu0 %v424
    %465 = vmatpush.msra.mxu0 %v423
    %466 = vmatpush.msra.mxu0 %v422
    %467 = vmatpush.msra.mxu0 %v421
    %468 = vmatmul.f32.gmra.mxu0 %v216
    %v469 = vpop.f32.mrf.mxu0
    %v470 = vadd.f32 %v450, %v469
    %471 = vdwg.mxu0
    %v472 = vperm.slane %v25, 0
    %v473 = vadd.f32 %v470, %v472
    %v474 = vmax.f32 %v473, 0.0
    %v475 = vld [vmem:[%s3 + $0xa0] sm:$0xff]
    %v476 = vld [vmem:[%s3 + $0xa8] sm:$0xff]
    %v477 = vld [vmem:[%s3 + $0xb0] sm:$0xff]
    %v478 = vld [vmem:[%s3 + $0xb8] sm:$0xff]
    %v479 = vld [vmem:[%s3 + $0xc0] sm:$0xff]
    %v480 = vld [vmem:[%s3 + $0xc8] sm:$0xff]
    %v481 = vld [vmem:[%s3 + $0xd0] sm:$0xff]
    %v482 = vld [vmem:[%s3 + $0xd8] sm:$0xff]
    %v483 = vld [vmem:[%s3 + $0xe0] sm:$0xff]
    %v484 = vld [vmem:[%s3 + $0xe8] sm:$0xff]
    %v485 = vld [vmem:[%s3 + $0xf0] sm:$0xff]
    %v486 = vld [vmem:[%s3 + $0xf8] sm:$0xff]
    %v487 = vld [vmem:[%s3 + $0x100] sm:$0xff]
    %v488 = vld [vmem:[%s3 + $0x108] sm:$0xff]
    %v489 = vld [vmem:[%s3 + $0x110] sm:$0xff]
    %v490 = vld [vmem:[%s3 + $0x118] sm:$0xff]
    %v491 = vperm.slane %v26, 0
    %492 = vmatpush.msra.mxu0 %v490
    %493 = vmatpush.msra.mxu0 %v489
    %494 = vmatpush.msra.mxu0 %v488
    %495 = vmatpush.msra.mxu0 %v487
    %496 = vmatpush.msra.mxu0 %v486
    %497 = vmatpush.msra.mxu0 %v485
    %498 = vmatpush.msra.mxu0 %v484
    %499 = vmatpush.msra.mxu0 %v483
    %500 = vmatpush.msra.mxu0 %v482
    %501 = vmatpush.msra.mxu0 %v481
    %502 = vmatpush.msra.mxu0 %v480
    %503 = vmatpush.msra.mxu0 %v479
    %504 = vmatpush.msra.mxu0 %v478
    %505 = vmatpush.msra.mxu0 %v477
    %506 = vmatpush.msra.mxu0 %v476
    %507 = vmatpush.msra.mxu0 %v475
    %508 = vmatmul.f32.gmra.mxu0 %v474
    %v509 = vpop.f32.mrf.mxu0
    %v510 = vadd.f32 %v491, %v509
    %511 = vdwg.mxu0
    %v512 = vmul.f32 %v510, 3.0
    %vm513 = vcmask 1041408
    %v514 = vsel %vm513, %v512, -inf
    %515 = vmax.xlane.f32.xlu0 %v514
    %v516 = vpop.xlane.xlu0 %515
    %v517 = vsub.f32 %v512, %v516
    %v518 = vmul.f32 %v517, 1.442695
    %v519 = vpow.pop %v518
    %v520 = vsel %vm513, %v519, 0.0
    %521 = vadd.xlane.f32.xlu0 %v520
    %v522 = vpop.xlane.xlu0 %521
    %v523 = vlog2.pop %v522
    %v524 = vmul.f32 %v523, 0.6931472
    %v525 = vsub.f32 %v517, %v524
    %v527 = vrot.slane %v525, 1
    %529 = vst [vmem:[#allocation2] sm:$0x1] %v525
    %530 = vst [vmem:[#allocation2 + $0x4] sm:$0x1] %v527
    %s531 = scalar_lea.vmem %s0, 2
    %v532 = vld [vmem:[%s531] sm:$0x3]
    %v533 = vld [vmem:[%s3] sm:$0xff]
    %v534 = vld [vmem:[%s3 + $0x8] sm:$0xff]
    %v535 = vld [vmem:[%s3 + $0x10] sm:$0xff]
    %v536 = vld [vmem:[%s3 + $0x18] sm:$0xff]
    %537 = vmatpush.msra.mxu0 0.0
    %538 = vmatpush.msra.mxu0 0.0
    %539 = vmatpush.msra.mxu0 0.0
    %540 = vmatpush.msra.mxu0 0.0
    %541 = vmatpush.msra.mxu0 0.0
    %542 = vmatpush.msra.mxu0 0.0
    %543 = vmatpush.msra.mxu0 0.0
    %544 = vmatpush.msra.mxu0 0.0
    %545 = vmatpush.msra.mxu0 0.0
    %546 = vmatpush.msra.mxu0 0.0
    %547 = vmatpush.msra.mxu0 0.0
    %548 = vmatpush.msra.mxu0 0.0
    %549 = vmatpush.msra.mxu0 %v536
    %550 = vmatpush.msra.mxu0 %v535
    %551 = vmatpush.msra.mxu0 %v534
    %552 = vmatpush.msra.mxu0 %v533
    %553 = vmatmul.f32.gmra.mxu0 %v143
    %v554 = vpop.f32.mrf.mxu0
    %v555 = vadd.f32 0.0, %v554
    %556 = vdwg.mxu0
    %v557 = vadd.f32 %v532, %v555
    %v558 = vadd.f32 %v557, %v66
    %v559 = vxor.u32 %v558, 2147483648
    %v560 = vmul.f32 %v559, 1.442695
    %v561 = vpow.pop %v560
    %v562 = vadd.f32 %v561, 1.0
    %v563 = vrcp.pop %v562
    %v564 = vmul.f32 %v562, %v563
    %v565 = vsub.f32 1.0, %v564
    %v566 = vmul.f32 %v563, %v565
    %v567 = vadd.f32 %v563, %v566
    %vm568 = vweird.f32 %v562
    %vm569 = vweird.f32 %v563
    %vm570 = vmor %vm568, %vm569
    %v571 = vsel %vm570, %v563, %v567
    %v572 = vand.u32 2147483647, %v562
    %vm573 = vcmp.eq.f32.partialorder %v572, 8.507059e+37
    %v574 = vand.u32 %v562, 2147483648
    %v575 = vor.u32 1.1754944e-38, %v574
    %v576 = vsel %vm573, %v575, %v571
    %v577 = vmul.f32 1.0, %v576
    %v578 = vtanh.pop %v558
    %v579 = vmul.f32 %v577, %v102
    %581 = vrot.lane.b32.xlu0 %v578, 64
    %v582 = vpop.permute.xlu0 %581
    %v584 = vmul.f32 %v577, %v582
    %586 = vrot.lane.b32.xlu0 %v584, 32
    %v587 = vpop.permute.xlu0 %586
    %v589 = vadd.f32 %v579, %v587
    %v590 = vtanh.pop %v589
    %592 = vrot.lane.b32.xlu0 %v590, 64
    %v593 = vpop.permute.xlu0 %592
    %v595 = vmul.f32 %v577, %v593
    %v596 = vld [vmem:[%s3 + $0x20] sm:$0xff]
    %v597 = vld [vmem:[%s3 + $0x28] sm:$0xff]
    %v598 = vld [vmem:[%s3 + $0x30] sm:$0xff]
    %v599 = vld [vmem:[%s3 + $0x38] sm:$0xff]
    %v600 = vld [vmem:[%s3 + $0x40] sm:$0xff]
    %v601 = vld [vmem:[%s3 + $0x48] sm:$0xff]
    %v602 = vld [vmem:[%s3 + $0x50] sm:$0xff]
    %v603 = vld [vmem:[%s3 + $0x58] sm:$0xff]
    %604 = vmatpush.msra.mxu0 0.0
    %605 = vmatpush.msra.mxu0 0.0
    %606 = vmatpush.msra.mxu0 0.0
    %607 = vmatpush.msra.mxu0 0.0
    %608 = vmatpush.msra.mxu0 0.0
    %609 = vmatpush.msra.mxu0 0.0
    %610 = vmatpush.msra.mxu0 0.0
    %611 = vmatpush.msra.mxu0 0.0
    %612 = vmatpush.msra.mxu0 0.0
    %613 = vmatpush.msra.mxu0 0.0
    %614 = vmatpush.msra.mxu0 0.0
    %615 = vmatpush.msra.mxu0 0.0
    %616 = vmatpush.msra.mxu0 %v603
    %617 = vmatpush.msra.mxu0 %v602
    %618 = vmatpush.msra.mxu0 %v601
    %619 = vmatpush.msra.mxu0 %v600
    %620 = vmatmul.f32.gmra.mxu0 %v216
    %v621 = vpop.f32.mrf.mxu0
    %v622 = vadd.f32 0.0, %v621
    %623 = vdwg.mxu0
    %625 = vrot.lane.b32.xlu0 %v595, 32
    %v626 = vpop.permute.xlu0 %625
    %v627 = vsel %vm41, %v626, 0
    %629 = vmatpush.msra.mxu0 0.0
    %630 = vmatpush.msra.mxu0 0.0
    %631 = vmatpush.msra.mxu0 0.0
    %632 = vmatpush.msra.mxu0 0.0
    %633 = vmatpush.msra.mxu0 0.0
    %634 = vmatpush.msra.mxu0 0.0
    %635 = vmatpush.msra.mxu0 0.0
    %636 = vmatpush.msra.mxu0 0.0
    %637 = vmatpush.msra.mxu0 0.0
    %638 = vmatpush.msra.mxu0 0.0
    %639 = vmatpush.msra.mxu0 0.0
    %640 = vmatpush.msra.mxu0 0.0
    %641 = vmatpush.msra.mxu0 %v599
    %642 = vmatpush.msra.mxu0 %v598
    %643 = vmatpush.msra.mxu0 %v597
    %644 = vmatpush.msra.mxu0 %v596
    %645 = vmatmul.f32.gmra.mxu0 %v627
    %v646 = vpop.f32.mrf.mxu0
    %v647 = vadd.f32 %v622, %v646
    %648 = vdwg.mxu0
    %v649 = vadd.f32 %v647, %v165
    %v650 = vxor.u32 %v649, 2147483648
    %v651 = vmul.f32 %v650, 1.442695
    %v652 = vpow.pop %v651
    %v653 = vadd.f32 %v652, 1.0
    %v654 = vrcp.pop %v653
    %v655 = vmul.f32 %v653, %v654
    %v656 = vsub.f32 1.0, %v655
    %v657 = vmul.f32 %v654, %v656
    %v658 = vadd.f32 %v654, %v657
    %vm659 = vweird.f32 %v653
    %vm660 = vweird.f32 %v654
    %vm661 = vmor %vm659, %vm660
    %v662 = vsel %vm661, %v654, %v658
    %v663 = vand.u32 2147483647, %v653
    %vm664 = vcmp.eq.f32.partialorder %v663, 8.507059e+37
    %v665 = vand.u32 %v653, 2147483648
    %v666 = vor.u32 1.1754944e-38, %v665
    %v667 = vsel %vm664, %v666, %v662
    %v668 = vmul.f32 1.0, %v667
    %v669 = vtanh.pop %v649
    %v670 = vmul.f32 %v668, %v201
    %672 = vrot.lane.b32.xlu0 %v669, 64
    %v673 = vpop.permute.xlu0 %672
    %v675 = vmul.f32 %v668, %v673
    %677 = vrot.lane.b32.xlu0 %v675, 32
    %v678 = vpop.permute.xlu0 %677
    %v680 = vadd.f32 %v670, %v678
    %v681 = vtanh.pop %v680
    %683 = vrot.lane.b32.xlu0 %v681, 64
    %v684 = vpop.permute.xlu0 %683
    %v686 = vmul.f32 %v668, %v684
    %v687 = vld [vmem:[%s3 + $0x120] sm:$0xff]
    %v688 = vld [vmem:[%s3 + $0x128] sm:$0xff]
    %v689 = vld [vmem:[%s3 + $0x130] sm:$0xff]
    %v690 = vld [vmem:[%s3 + $0x138] sm:$0xff]
    %692 = vrot.lane.b32.xlu0 %v686, 32
    %v693 = vpop.permute.xlu0 %692
    %v694 = vsel %vm41, %v693, 0
    %696 = vmatpush.msra.mxu0 0.0
    %697 = vmatpush.msra.mxu0 0.0
    %698 = vmatpush.msra.mxu0 0.0
    %699 = vmatpush.msra.mxu0 0.0
    %700 = vmatpush.msra.mxu0 0.0
    %701 = vmatpush.msra.mxu0 0.0
    %702 = vmatpush.msra.mxu0 0.0
    %703 = vmatpush.msra.mxu0 0.0
    %704 = vmatpush.msra.mxu0 0.0
    %705 = vmatpush.msra.mxu0 0.0
    %706 = vmatpush.msra.mxu0 0.0
    %707 = vmatpush.msra.mxu0 0.0
    %708 = vmatpush.msra.mxu0 %v690
    %709 = vmatpush.msra.mxu0 %v689
    %710 = vmatpush.msra.mxu0 %v688
    %711 = vmatpush.msra.mxu0 %v687
    %712 = vmatmul.f32.gmra.mxu0 %v694
    %v713 = vpop.f32.mrf.mxu0
    %v714 = vadd.f32 %v212, %v713
    %715 = vdwg.mxu0
    %v717 = vrot.slane %v714, 1
    %v718 = vperm.slane %v714, 0
    %v719 = vperm.slane %v717, 0
    %v722 = vadd.f32 %v20, %v718
    %v723 = vadd.f32 %v21, %v719
    %v724 = vtanh.pop %v722
    %v725 = vtanh.pop %v723
    %v726 = vld [vmem:[%s3 + $0x1a0] sm:$0xff]
    %v727 = vld [vmem:[%s3 + $0x1a8] sm:$0xff]
    %v728 = vld [vmem:[%s3 + $0x1b0] sm:$0xff]
    %v729 = vld [vmem:[%s3 + $0x1b8] sm:$0xff]
    %v730 = vld [vmem:[%s3 + $0x1c0] sm:$0xff]
    %v731 = vld [vmem:[%s3 + $0x1c8] sm:$0xff]
    %v732 = vld [vmem:[%s3 + $0x1d0] sm:$0xff]
    %v733 = vld [vmem:[%s3 + $0x1d8] sm:$0xff]
    %v734 = vld [vmem:[%s3 + $0x1e0] sm:$0xff]
    %v735 = vld [vmem:[%s3 + $0x1e8] sm:$0xff]
    %v736 = vld [vmem:[%s3 + $0x1f0] sm:$0xff]
    %v737 = vld [vmem:[%s3 + $0x1f8] sm:$0xff]
    %v739 = vsel %vm260, %v724, 0
    %v742 = vsel %vm260, %v725, 0
    %744 = vmatpush.msra.mxu0 0.0
    %745 = vmatpush.msra.mxu0 0.0
    %746 = vmatpush.msra.mxu0 0.0
    %747 = vmatpush.msra.mxu0 0.0
    %748 = vmatpush.msra.mxu0 %v737
    %749 = vmatpush.msra.mxu0 %v736
    %750 = vmatpush.msra.mxu0 %v735
    %751 = vmatpush.msra.mxu0 %v734
    %752 = vmatpush.msra.mxu0 %v733
    %753 = vmatpush.msra.mxu0 %v732
    %754 = vmatpush.msra.mxu0 %v731
    %755 = vmatpush.msra.mxu0 %v730
    %756 = vmatpush.msra.mxu0 %v729
    %757 = vmatpush.msra.mxu0 %v728
    %758 = vmatpush.msra.mxu0 %v727
    %759 = vmatpush.msra.mxu0 %v726
    %760 = vmatmul.f32.gmra.mxu0 %v739
    %v761 = vpop.f32.mrf.mxu0
    %v762 = vadd.f32 0.0, %v761
    %763 = vmatmul.f32.gmra.mxu0 %v742
    %v764 = vpop.f32.mrf.mxu0
    %v765 = vadd.f32 0.0, %v764
    %766 = vdwg.mxu0
    %v767 = vadd.f32 %v762, %v22
    %v768 = vadd.f32 %v765, %v22
    %v769 = vsel %vm292, %v767, -inf
    %v770 = vrot.slane %v769, 4
    %v771 = vmax.f32 %v769, %v770
    %v772 = vrot.slane %v771, 2
    %v773 = vmax.f32 %v771, %v772
    %v774 = vrot.slane %v773, 1
    %v775 = vmax.f32 %v773, %v774
    %v776 = vsel %vm292, %v768, -inf
    %v777 = vrot.slane %v776, 4
    %v778 = vmax.f32 %v776, %v777
    %v779 = vrot.slane %v778, 2
    %v780 = vmax.f32 %v778, %v779
    %v781 = vrot.slane %v780, 1
    %v782 = vmax.f32 %v780, %v781
    %v783 = vsub.f32 %v767, %v775
    %v784 = vsub.f32 %v768, %v782
    %v785 = vmul.f32 %v783, 1.442695
    %v786 = vpow.pop %v785
    %v787 = vmul.f32 %v784, 1.442695
    %v788 = vpow.pop %v787
    %v789 = vsel %vm292, %v786, 0.0
    %v790 = vrot.slane %v789, 4
    %v791 = vadd.f32 %v789, %v790
    %v792 = vrot.slane %v791, 2
    %v793 = vadd.f32 %v791, %v792
    %v794 = vrot.slane %v793, 1
    %v795 = vadd.f32 %v793, %v794
    %v796 = vsel %vm292, %v788, 0.0
    %v797 = vrot.slane %v796, 4
    %v798 = vadd.f32 %v796, %v797
    %v799 = vrot.slane %v798, 2
    %v800 = vadd.f32 %v798, %v799
    %v801 = vrot.slane %v800, 1
    %v802 = vadd.f32 %v800, %v801
    %v803 = vrcp.pop %v795
    %v804 = vrcp.pop %v802
    %v805 = vmul.f32 %v786, %v803
    %v806 = vmul.f32 %v788, %v804
    %v807 = vld [vmem:[%s3 + $0x200] sm:$0x7]
    %v809 = vsel %vm292, %v805, 0
    %v812 = vsel %vm292, %v806, 0
    %v815 = vsel %vm338, %v807, 0
    %817 = vmatpush.msra.mxu0 0.0
    %818 = vmatpush.msra.mxu0 0.0
    %819 = vmatpush.msra.mxu0 0.0
    %820 = vmatpush.msra.mxu0 0.0
    %821 = vmatpush.msra.mxu0 0.0
    %822 = vmatpush.msra.mxu0 0.0
    %823 = vmatpush.msra.mxu0 0.0
    %824 = vmatpush.msra.mxu0 0.0
    %825 = vmatpush.msra.mxu0 0.0
    %826 = vmatpush.msra.mxu0 0.0
    %827 = vmatpush.msra.mxu0 0.0
    %828 = vmatpush.msra.mxu0 0.0
    %829 = vmatpush.msra.mxu0 0.0
    %830 = vmatpush.msra.mxu0 0.0
    %831 = vmatpush.msra.mxu0 0.0
    %832 = vmatpush.msra.mxu0 %v815
    %833 = vmatmul.f32.gmra.mxu0 %v809
    %v834 = vpop.f32.mrf.mxu0
    %v835 = vadd.f32 0.0, %v834
    %836 = vmatmul.f32.gmra.mxu0 %v812
    %v837 = vpop.f32.mrf.mxu0
    %v838 = vadd.f32 0.0, %v837
    %839 = vdwg.mxu0
    %v840 = vmul.f32 %v20, %v835
    %v841 = vmul.f32 %v21, %v838
    %v842 = vsel %vm260, %v840, 0.0
    %v843 = vrot.slane %v842, 4
    %v844 = vadd.f32 %v842, %v843
    %v845 = vrot.slane %v844, 2
    %v846 = vadd.f32 %v844, %v845
    %v847 = vrot.slane %v846, 1
    %v848 = vadd.f32 %v846, %v847
    %v849 = vsel %vm260, %v841, 0.0
    %v850 = vrot.slane %v849, 4
    %v851 = vadd.f32 %v849, %v850
    %v852 = vrot.slane %v851, 2
    %v853 = vadd.f32 %v851, %v852
    %v854 = vrot.slane %v853, 1
    %v855 = vadd.f32 %v853, %v854
    %v856 = vld [vmem:[%s3 + $0x140] sm:$0xff]
    %v857 = vld [vmem:[%s3 + $0x148] sm:$0xff]
    %v858 = vld [vmem:[%s3 + $0x150] sm:$0xff]
    %v859 = vld [vmem:[%s3 + $0x158] sm:$0xff]
    %v860 = vld [vmem:[%s3 + $0x160] sm:$0xff]
    %v861 = vld [vmem:[%s3 + $0x168] sm:$0xff]
    %v862 = vld [vmem:[%s3 + $0x170] sm:$0xff]
    %v863 = vld [vmem:[%s3 + $0x178] sm:$0xff]
    %v864 = vld [vmem:[%s3 + $0x180] sm:$0xff]
    %v865 = vld [vmem:[%s3 + $0x188] sm:$0xff]
    %v866 = vld [vmem:[%s3 + $0x190] sm:$0xff]
    %v867 = vld [vmem:[%s3 + $0x198] sm:$0xff]
    %v870 = vsel %vm396, %v855, %v848
    %v871 = vsel %vm260, %v870, 0
    %873 = vmatpush.msra.mxu0 0.0
    %874 = vmatpush.msra.mxu0 0.0
    %875 = vmatpush.msra.mxu0 0.0
    %876 = vmatpush.msra.mxu0 0.0
    %877 = vmatpush.msra.mxu0 %v867
    %878 = vmatpush.msra.mxu0 %v866
    %879 = vmatpush.msra.mxu0 %v865
    %880 = vmatpush.msra.mxu0 %v864
    %881 = vmatpush.msra.mxu0 %v863
    %882 = vmatpush.msra.mxu0 %v862
    %883 = vmatpush.msra.mxu0 %v861
    %884 = vmatpush.msra.mxu0 %v860
    %885 = vmatpush.msra.mxu0 %v859
    %886 = vmatpush.msra.mxu0 %v858
    %887 = vmatpush.msra.mxu0 %v857
    %888 = vmatpush.msra.mxu0 %v856
    %889 = vmatmul.f32.gmra.mxu0 %v871
    %v890 = vpop.f32.mrf.mxu0
    %v891 = vadd.f32 %v393, %v890
    %892 = vdwg.mxu0
    %v893 = vtanh.pop %v891
    %v894 = vld [vmem:[%s3 + $0x60] sm:$0xff]
    %v895 = vld [vmem:[%s3 + $0x68] sm:$0xff]
    %v896 = vld [vmem:[%s3 + $0x70] sm:$0xff]
    %v897 = vld [vmem:[%s3 + $0x78] sm:$0xff]
    %v898 = vld [vmem:[%s3 + $0x80] sm:$0xff]
    %v899 = vld [vmem:[%s3 + $0x88] sm:$0xff]
    %v900 = vld [vmem:[%s3 + $0x90] sm:$0xff]
    %v901 = vld [vmem:[%s3 + $0x98] sm:$0xff]
    %v903 = vsel %vm41, %v893, 0
    %905 = vmatpush.msra.mxu0 0.0
    %906 = vmatpush.msra.mxu0 0.0
    %907 = vmatpush.msra.mxu0 0.0
    %908 = vmatpush.msra.mxu0 0.0
    %909 = vmatpush.msra.mxu0 0.0
    %910 = vmatpush.msra.mxu0 0.0
    %911 = vmatpush.msra.mxu0 0.0
    %912 = vmatpush.msra.mxu0 0.0
    %913 = vmatpush.msra.mxu0 0.0
    %914 = vmatpush.msra.mxu0 0.0
    %915 = vmatpush.msra.mxu0 0.0
    %916 = vmatpush.msra.mxu0 0.0
    %917 = vmatpush.msra.mxu0 %v901
    %918 = vmatpush.msra.mxu0 %v900
    %919 = vmatpush.msra.mxu0 %v899
    %920 = vmatpush.msra.mxu0 %v898
    %921 = vmatmul.f32.gmra.mxu0 %v903
    %v922 = vpop.f32.mrf.mxu0
    %v923 = vadd.f32 0.0, %v922
    %924 = vdwg.mxu0
    %925 = vmatpush.msra.mxu0 0.0
    %926 = vmatpush.msra.mxu0 0.0
    %927 = vmatpush.msra.mxu0 0.0
    %928 = vmatpush.msra.mxu0 0.0
    %929 = vmatpush.msra.mxu0 0.0
    %930 = vmatpush.msra.mxu0 0.0
    %931 = vmatpush.msra.mxu0 0.0
    %932 = vmatpush.msra.mxu0 0.0
    %933 = vmatpush.msra.mxu0 0.0
    %934 = vmatpush.msra.mxu0 0.0
    %935 = vmatpush.msra.mxu0 0.0
    %936 = vmatpush.msra.mxu0 0.0
    %937 = vmatpush.msra.mxu0 %v897
    %938 = vmatpush.msra.mxu0 %v896
    %939 = vmatpush.msra.mxu0 %v895
    %940 = vmatpush.msra.mxu0 %v894
    %941 = vmatmul.f32.gmra.mxu0 %v694
    %v942 = vpop.f32.mrf.mxu0
    %v943 = vadd.f32 %v923, %v942
    %944 = vdwg.mxu0
    %v945 = vadd.f32 %v943, %v472
    %v946 = vmax.f32 %v945, 0.0
    %v947 = vld [vmem:[%s3 + $0xa0] sm:$0xff]
    %v948 = vld [vmem:[%s3 + $0xa8] sm:$0xff]
    %v949 = vld [vmem:[%s3 + $0xb0] sm:$0xff]
    %v950 = vld [vmem:[%s3 + $0xb8] sm:$0xff]
    %v951 = vld [vmem:[%s3 + $0xc0] sm:$0xff]
    %v952 = vld [vmem:[%s3 + $0xc8] sm:$0xff]
    %v953 = vld [vmem:[%s3 + $0xd0] sm:$0xff]
    %v954 = vld [vmem:[%s3 + $0xd8] sm:$0xff]
    %v955 = vld [vmem:[%s3 + $0xe0] sm:$0xff]
    %v956 = vld [vmem:[%s3 + $0xe8] sm:$0xff]
    %v957 = vld [vmem:[%s3 + $0xf0] sm:$0xff]
    %v958 = vld [vmem:[%s3 + $0xf8] sm:$0xff]
    %v959 = vld [vmem:[%s3 + $0x100] sm:$0xff]
    %v960 = vld [vmem:[%s3 + $0x108] sm:$0xff]
    %v961 = vld [vmem:[%s3 + $0x110] sm:$0xff]
    %v962 = vld [vmem:[%s3 + $0x118] sm:$0xff]
    %963 = vmatpush.msra.mxu0 %v962
    %964 = vmatpush.msra.mxu0 %v961
    %965 = vmatpush.msra.mxu0 %v960
    %966 = vmatpush.msra.mxu0 %v959
    %967 = vmatpush.msra.mxu0 %v958
    %968 = vmatpush.msra.mxu0 %v957
    %969 = vmatpush.msra.mxu0 %v956
    %970 = vmatpush.msra.mxu0 %v955
    %971 = vmatpush.msra.mxu0 %v954
    %972 = vmatpush.msra.mxu0 %v953
    %973 = vmatpush.msra.mxu0 %v952
    %974 = vmatpush.msra.mxu0 %v951
    %975 = vmatpush.msra.mxu0 %v950
    %976 = vmatpush.msra.mxu0 %v949
    %977 = vmatpush.msra.mxu0 %v948
    %978 = vmatpush.msra.mxu0 %v947
    %979 = vmatmul.f32.gmra.mxu0 %v946
    %v980 = vpop.f32.mrf.mxu0
    %v981 = vadd.f32 %v491, %v980
    %982 = vdwg.mxu0
    %v983 = vmul.f32 %v981, 3.0
    %v984 = vsel %vm513, %v983, -inf
    %985 = vmax.xlane.f32.xlu0 %v984
    %v986 = vpop.xlane.xlu0 %985
    %v987 = vsub.f32 %v983, %v986
    %v988 = vmul.f32 %v987, 1.442695
    %v989 = vpow.pop %v988
    %v990 = vsel %vm513, %v989, 0.0
    %991 = vadd.xlane.f32.xlu0 %v990
    %v992 = vpop.xlane.xlu0 %991
    %v993 = vlog2.pop %v992
    %v994 = vmul.f32 %v993, 0.6931472
    %v995 = vsub.f32 %v987, %v994
    %v997 = vrot.slane %v995, 1
    %999 = vst [vmem:[#allocation2 + $0x1] sm:$0x1] %v995
    %1000 = vst [vmem:[#allocation2 + $0x5] sm:$0x1] %v997
    %s1001 = scalar_lea.vmem %s0, 4
    %v1002 = vld [vmem:[%s1001] sm:$0x3]
    %v1003 = vld [vmem:[%s3] sm:$0xff]
    %v1004 = vld [vmem:[%s3 + $0x8] sm:$0xff]
    %v1005 = vld [vmem:[%s3 + $0x10] sm:$0xff]
    %v1006 = vld [vmem:[%s3 + $0x18] sm:$0xff]
    %1007 = vmatpush.msra.mxu0 0.0
    %1008 = vmatpush.msra.mxu0 0.0
    %1009 = vmatpush.msra.mxu0 0.0
    %1010 = vmatpush.msra.mxu0 0.0
    %1011 = vmatpush.msra.mxu0 0.0
    %1012 = vmatpush.msra.mxu0 0.0
    %1013 = vmatpush.msra.mxu0 0.0
    %1014 = vmatpush.msra.mxu0 0.0
    %1015 = vmatpush.msra.mxu0 0.0
    %1016 = vmatpush.msra.mxu0 0.0
    %1017 = vmatpush.msra.mxu0 0.0
    %1018 = vmatpush.msra.mxu0 0.0
    %1019 = vmatpush.msra.mxu0 %v1006
    %1020 = vmatpush.msra.mxu0 %v1005
    %1021 = vmatpush.msra.mxu0 %v1004
    %1022 = vmatpush.msra.mxu0 %v1003
    %1023 = vmatmul.f32.gmra.mxu0 %v627
    %v1024 = vpop.f32.mrf.mxu0
    %v1025 = vadd.f32 0.0, %v1024
    %1026 = vdwg.mxu0
    %v1027 = vadd.f32 %v1002, %v1025
    %v1028 = vadd.f32 %v1027, %v66
    %v1029 = vxor.u32 %v1028, 2147483648
    %v1030 = vmul.f32 %v1029, 1.442695
    %v1031 = vpow.pop %v1030
    %v1032 = vadd.f32 %v1031, 1.0
    %v1033 = vrcp.pop %v1032
    %v1034 = vmul.f32 %v1032, %v1033
    %v1035 = vsub.f32 1.0, %v1034
    %v1036 = vmul.f32 %v1033, %v1035
    %v1037 = vadd.f32 %v1033, %v1036
    %vm1038 = vweird.f32 %v1032
    %vm1039 = vweird.f32 %v1033
    %vm1040 = vmor %vm1038, %vm1039
    %v1041 = vsel %vm1040, %v1033, %v1037
    %v1042 = vand.u32 2147483647, %v1032
    %vm1043 = vcmp.eq.f32.partialorder %v1042, 8.507059e+37
    %v1044 = vand.u32 %v1032, 2147483648
    %v1045 = vor.u32 1.1754944e-38, %v1044
    %v1046 = vsel %vm1043, %v1045, %v1041
    %v1047 = vmul.f32 1.0, %v1046
    %v1048 = vtanh.pop %v1028
    %v1049 = vmul.f32 %v1047, %v589
    %1051 = vrot.lane.b32.xlu0 %v1048, 64
    %v1052 = vpop.permute.xlu0 %1051
    %v1054 = vmul.f32 %v1047, %v1052
    %1056 = vrot.lane.b32.xlu0 %v1054, 32
    %v1057 = vpop.permute.xlu0 %1056
    %v1059 = vadd.f32 %v1049, %v1057
    %v1060 = vtanh.pop %v1059
    %1062 = vrot.lane.b32.xlu0 %v1060, 64
    %v1063 = vpop.permute.xlu0 %1062
    %v1065 = vmul.f32 %v1047, %v1063
    %v1066 = vld [vmem:[%s3 + $0x20] sm:$0xff]
    %v1067 = vld [vmem:[%s3 + $0x28] sm:$0xff]
    %v1068 = vld [vmem:[%s3 + $0x30] sm:$0xff]
    %v1069 = vld [vmem:[%s3 + $0x38] sm:$0xff]
    %v1070 = vld [vmem:[%s3 + $0x40] sm:$0xff]
    %v1071 = vld [vmem:[%s3 + $0x48] sm:$0xff]
    %v1072 = vld [vmem:[%s3 + $0x50] sm:$0xff]
    %v1073 = vld [vmem:[%s3 + $0x58] sm:$0xff]
    %1074 = vmatpush.msra.mxu0 0.0
    %1075 = vmatpush.msra.mxu0 0.0
    %1076 = vmatpush.msra.mxu0 0.0
    %1077 = vmatpush.msra.mxu0 0.0
    %1078 = vmatpush.msra.mxu0 0.0
    %1079 = vmatpush.msra.mxu0 0.0
    %1080 = vmatpush.msra.mxu0 0.0
    %1081 = vmatpush.msra.mxu0 0.0
    %1082 = vmatpush.msra.mxu0 0.0
    %1083 = vmatpush.msra.mxu0 0.0
    %1084 = vmatpush.msra.mxu0 0.0
    %1085 = vmatpush.msra.mxu0 0.0
    %1086 = vmatpush.msra.mxu0 %v1073
    %1087 = vmatpush.msra.mxu0 %v1072
    %1088 = vmatpush.msra.mxu0 %v1071
    %1089 = vmatpush.msra.mxu0 %v1070
    %1090 = vmatmul.f32.gmra.mxu0 %v694
    %v1091 = vpop.f32.mrf.mxu0
    %v1092 = vadd.f32 0.0, %v1091
    %1093 = vdwg.mxu0
    %1095 = vrot.lane.b32.xlu0 %v1065, 32
    %v1096 = vpop.permute.xlu0 %1095
    %v1097 = vsel %vm41, %v1096, 0
    %1099 = vmatpush.msra.mxu0 0.0
    %1100 = vmatpush.msra.mxu0 0.0
    %1101 = vmatpush.msra.mxu0 0.0
    %1102 = vmatpush.msra.mxu0 0.0
    %1103 = vmatpush.msra.mxu0 0.0
    %1104 = vmatpush.msra.mxu0 0.0
    %1105 = vmatpush.msra.mxu0 0.0
    %1106 = vmatpush.msra.mxu0 0.0
    %1107 = vmatpush.msra.mxu0 0.0
    %1108 = vmatpush.msra.mxu0 0.0
    %1109 = vmatpush.msra.mxu0 0.0
    %1110 = vmatpush.msra.mxu0 0.0
    %1111 = vmatpush.msra.mxu0 %v1069
    %1112 = vmatpush.msra.mxu0 %v1068
    %1113 = vmatpush.msra.mxu0 %v1067
    %1114 = vmatpush.msra.mxu0 %v1066
    %1115 = vmatmul.f32.gmra.mxu0 %v1097
    %v1116 = vpop.f32.mrf.mxu0
    %v1117 = vadd.f32 %v1092, %v1116
    %1118 = vdwg.mxu0
    %v1119 = vadd.f32 %v1117, %v165
    %v1120 = vxor.u32 %v1119, 2147483648
    %v1121 = vmul.f32 %v1120, 1.442695
    %v1122 = vpow.pop %v1121
    %v1123 = vadd.f32 %v1122, 1.0
    %v1124 = vrcp.pop %v1123
    %v1125 = vmul.f32 %v1123, %v1124
    %v1126 = vsub.f32 1.0, %v1125
    %v1127 = vmul.f32 %v1124, %v1126
    %v1128 = vadd.f32 %v1124, %v1127
    %vm1129 = vweird.f32 %v1123
    %vm1130 = vweird.f32 %v1124
    %vm1131 = vmor %vm1129, %vm1130
    %v1132 = vsel %vm1131, %v1124, %v1128
    %v1133 = vand.u32 2147483647, %v1123
    %vm1134 = vcmp.eq.f32.partialorder %v1133, 8.507059e+37
    %v1135 = vand.u32 %v1123, 2147483648
    %v1136 = vor.u32 1.1754944e-38, %v1135
    %v1137 = vsel %vm1134, %v1136, %v1132
    %v1138 = vmul.f32 1.0, %v1137
    %v1139 = vtanh.pop %v1119
    %v1140 = vmul.f32 %v1138, %v680
    %1142 = vrot.lane.b32.xlu0 %v1139, 64
    %v1143 = vpop.permute.xlu0 %1142
    %v1145 = vmul.f32 %v1138, %v1143
    %1147 = vrot.lane.b32.xlu0 %v1145, 32
    %v1148 = vpop.permute.xlu0 %1147
    %v1150 = vadd.f32 %v1140, %v1148
    %v1151 = vtanh.pop %v1150
    %1153 = vrot.lane.b32.xlu0 %v1151, 64
    %v1154 = vpop.permute.xlu0 %1153
    %v1156 = vmul.f32 %v1138, %v1154
    %v1157 = vld [vmem:[%s3 + $0x120] sm:$0xff]
    %v1158 = vld [vmem:[%s3 + $0x128] sm:$0xff]
    %v1159 = vld [vmem:[%s3 + $0x130] sm:$0xff]
    %v1160 = vld [vmem:[%s3 + $0x138] sm:$0xff]
    %1162 = vrot.lane.b32.xlu0 %v1156, 32
    %v1163 = vpop.permute.xlu0 %1162
    %v1164 = vsel %vm41, %v1163, 0
    %1166 = vmatpush.msra.mxu0 0.0
    %1167 = vmatpush.msra.mxu0 0.0
    %1168 = vmatpush.msra.mxu0 0.0
    %1169 = vmatpush.msra.mxu0 0.0
    %1170 = vmatpush.msra.mxu0 0.0
    %1171 = vmatpush.msra.mxu0 0.0
    %1172 = vmatpush.msra.mxu0 0.0
    %1173 = vmatpush.msra.mxu0 0.0
    %1174 = vmatpush.msra.mxu0 0.0
    %1175 = vmatpush.msra.mxu0 0.0
    %1176 = vmatpush.msra.mxu0 0.0
    %1177 = vmatpush.msra.mxu0 0.0
    %1178 = vmatpush.msra.mxu0 %v1160
    %1179 = vmatpush.msra.mxu0 %v1159
    %1180 = vmatpush.msra.mxu0 %v1158
    %1181 = vmatpush.msra.mxu0 %v1157
    %1182 = vmatmul.f32.gmra.mxu0 %v1164
    %v1183 = vpop.f32.mrf.mxu0
    %v1184 = vadd.f32 %v212, %v1183
    %1185 = vdwg.mxu0
    %v1187 = vrot.slane %v1184, 1
    %v1188 = vperm.slane %v1184, 0
    %v1189 = vperm.slane %v1187, 0
    %v1192 = vadd.f32 %v20, %v1188
    %v1193 = vadd.f32 %v21, %v1189
    %v1194 = vtanh.pop %v1192
    %v1195 = vtanh.pop %v1193
    %v1196 = vld [vmem:[%s3 + $0x1a0] sm:$0xff]
    %v1197 = vld [vmem:[%s3 + $0x1a8] sm:$0xff]
    %v1198 = vld [vmem:[%s3 + $0x1b0] sm:$0xff]
    %v1199 = vld [vmem:[%s3 + $0x1b8] sm:$0xff]
    %v1200 = vld [vmem:[%s3 + $0x1c0] sm:$0xff]
    %v1201 = vld [vmem:[%s3 + $0x1c8] sm:$0xff]
    %v1202 = vld [vmem:[%s3 + $0x1d0] sm:$0xff]
    %v1203 = vld [vmem:[%s3 + $0x1d8] sm:$0xff]
    %v1204 = vld [vmem:[%s3 + $0x1e0] sm:$0xff]
    %v1205 = vld [vmem:[%s3 + $0x1e8] sm:$0xff]
    %v1206 = vld [vmem:[%s3 + $0x1f0] sm:$0xff]
    %v1207 = vld [vmem:[%s3 + $0x1f8] sm:$0xff]
    %v1209 = vsel %vm260, %v1194, 0
    %v1212 = vsel %vm260, %v1195, 0
    %1214 = vmatpush.msra.mxu0 0.0
    %1215 = vmatpush.msra.mxu0 0.0
    %1216 = vmatpush.msra.mxu0 0.0
    %1217 = vmatpush.msra.mxu0 0.0
    %1218 = vmatpush.msra.mxu0 %v1207
    %1219 = vmatpush.msra.mxu0 %v1206
    %1220 = vmatpush.msra.mxu0 %v1205
    %1221 = vmatpush.msra.mxu0 %v1204
    %1222 = vmatpush.msra.mxu0 %v1203
    %1223 = vmatpush.msra.mxu0 %v1202
    %1224 = vmatpush.msra.mxu0 %v1201
    %1225 = vmatpush.msra.mxu0 %v1200
    %1226 = vmatpush.msra.mxu0 %v1199
    %1227 = vmatpush.msra.mxu0 %v1198
    %1228 = vmatpush.msra.mxu0 %v1197
    %1229 = vmatpush.msra.mxu0 %v1196
    %1230 = vmatmul.f32.gmra.mxu0 %v1209
    %v1231 = vpop.f32.mrf.mxu0
    %v1232 = vadd.f32 0.0, %v1231
    %1233 = vmatmul.f32.gmra.mxu0 %v1212
    %v1234 = vpop.f32.mrf.mxu0
    %v1235 = vadd.f32 0.0, %v1234
    %1236 = vdwg.mxu0
    %v1237 = vadd.f32 %v1232, %v22
    %v1238 = vadd.f32 %v1235, %v22
    %v1239 = vsel %vm292, %v1237, -inf
    %v1240 = vrot.slane %v1239, 4
    %v1241 = vmax.f32 %v1239, %v1240
    %v1242 = vrot.slane %v1241, 2
    %v1243 = vmax.f32 %v1241, %v1242
    %v1244 = vrot.slane %v1243, 1
    %v1245 = vmax.f32 %v1243, %v1244
    %v1246 = vsel %vm292, %v1238, -inf
    %v1247 = vrot.slane %v1246, 4
    %v1248 = vmax.f32 %v1246, %v1247
    %v1249 = vrot.slane %v1248, 2
    %v1250 = vmax.f32 %v1248, %v1249
    %v1251 = vrot.slane %v1250, 1
    %v1252 = vmax.f32 %v1250, %v1251
    %v1253 = vsub.f32 %v1237, %v1245
    %v1254 = vsub.f32 %v1238, %v1252
    %v1255 = vmul.f32 %v1253, 1.442695
    %v1256 = vpow.pop %v1255
    %v1257 = vmul.f32 %v1254, 1.442695
    %v1258 = vpow.pop %v1257
    %v1259 = vsel %vm292, %v1256, 0.0
    %v1260 = vrot.slane %v1259, 4
    %v1261 = vadd.f32 %v1259, %v1260
    %v1262 = vrot.slane %v1261, 2
    %v1263 = vadd.f32 %v1261, %v1262
    %v1264 = vrot.slane %v1263, 1
    %v1265 = vadd.f32 %v1263, %v1264
    %v1266 = vsel %vm292, %v1258, 0.0
    %v1267 = vrot.slane %v1266, 4
    %v1268 = vadd.f32 %v1266, %v1267
    %v1269 = vrot.slane %v1268, 2
    %v1270 = vadd.f32 %v1268, %v1269
    %v1271 = vrot.slane %v1270, 1
    %v1272 = vadd.f32 %v1270, %v1271
    %v1273 = vrcp.pop %v1265
    %v1274 = vrcp.pop %v1272
    %v1275 = vmul.f32 %v1256, %v1273
    %v1276 = vmul.f32 %v1258, %v1274
    %v1277 = vld [vmem:[%s3 + $0x200] sm:$0x7]
    %v1279 = vsel %vm292, %v1275, 0
    %v1282 = vsel %vm292, %v1276, 0
    %v1285 = vsel %vm338, %v1277, 0
    %1287 = vmatpush.msra.mxu0 0.0
    %1288 = vmatpush.msra.mxu0 0.0
    %1289 = vmatpush.msra.mxu0 0.0
    %1290 = vmatpush.msra.mxu0 0.0
    %1291 = vmatpush.msra.mxu0 0.0
    %1292 = vmatpush.msra.mxu0 0.0
    %1293 = vmatpush.msra.mxu0 0.0
    %1294 = vmatpush.msra.mxu0 0.0
    %1295 = vmatpush.msra.mxu0 0.0
    %1296 = vmatpush.msra.mxu0 0.0
    %1297 = vmatpush.msra.mxu0 0.0
    %1298 = vmatpush.msra.mxu0 0.0
    %1299 = vmatpush.msra.mxu0 0.0
    %1300 = vmatpush.msra.mxu0 0.0
    %1301 = vmatpush.msra.mxu0 0.0
    %1302 = vmatpush.msra.mxu0 %v1285
    %1303 = vmatmul.f32.gmra.mxu0 %v1279
    %v1304 = vpop.f32.mrf.mxu0
    %v1305 = vadd.f32 0.0, %v1304
    %1306 = vmatmul.f32.gmra.mxu0 %v1282
    %v1307 = vpop.f32.mrf.mxu0
    %v1308 = vadd.f32 0.0, %v1307
    %1309 = vdwg.mxu0
    %v1310 = vmul.f32 %v20, %v1305
    %v1311 = vmul.f32 %v21, %v1308
    %v1312 = vsel %vm260, %v1310, 0.0
    %v1313 = vrot.slane %v1312, 4
    %v1314 = vadd.f32 %v1312, %v1313
    %v1315 = vrot.slane %v1314, 2
    %v1316 = vadd.f32 %v1314, %v1315
    %v1317 = vrot.slane %v1316, 1
    %v1318 = vadd.f32 %v1316, %v1317
    %v1319 = vsel %vm260, %v1311, 0.0
    %v1320 = vrot.slane %v1319, 4
    %v1321 = vadd.f32 %v1319, %v1320
    %v1322 = vrot.slane %v1321, 2
    %v1323 = vadd.f32 %v1321, %v1322
    %v1324 = vrot.slane %v1323, 1
    %v1325 = vadd.f32 %v1323, %v1324
    %v1326 = vld [vmem:[%s3 + $0x140] sm:$0xff]
    %v1327 = vld [vmem:[%s3 + $0x148] sm:$0xff]
    %v1328 = vld [vmem:[%s3 + $0x150] sm:$0xff]
    %v1329 = vld [vmem:[%s3 + $0x158] sm:$0xff]
    %v1330 = vld [vmem:[%s3 + $0x160] sm:$0xff]
    %v1331 = vld [vmem:[%s3 + $0x168] sm:$0xff]
    %v1332 = vld [vmem:[%s3 + $0x170] sm:$0xff]
    %v1333 = vld [vmem:[%s3 + $0x178] sm:$0xff]
    %v1334 = vld [vmem:[%s3 + $0x180] sm:$0xff]
    %v1335 = vld [vmem:[%s3 + $0x188] sm:$0xff]
    %v1336 = vld [vmem:[%s3 + $0x190] sm:$0xff]
    %v1337 = vld [vmem:[%s3 + $0x198] sm:$0xff]
    %v1340 = vsel %vm396, %v1325, %v1318
    %v1341 = vsel %vm260, %v1340, 0
    %1343 = vmatpush.msra.mxu0 0.0
    %1344 = vmatpush.msra.mxu0 0.0
    %1345 = vmatpush.msra.mxu0 0.0
    %1346 = vmatpush.msra.mxu0 0.0
    %1347 = vmatpush.msra.mxu0 %v1337
    %1348 = vmatpush.msra.mxu0 %v1336
    %1349 = vmatpush.msra.mxu0 %v1335
    %1350 = vmatpush.msra.mxu0 %v1334
    %1351 = vmatpush.msra.mxu0 %v1333
    %1352 = vmatpush.msra.mxu0 %v1332
    %1353 = vmatpush.msra.mxu0 %v1331
    %1354 = vmatpush.msra.mxu0 %v1330
    %1355 = vmatpush.msra.mxu0 %v1329
    %1356 = vmatpush.msra.mxu0 %v1328
    %1357 = vmatpush.msra.mxu0 %v1327
    %1358 = vmatpush.msra.mxu0 %v1326
    %1359 = vmatmul.f32.gmra.mxu0 %v1341
    %v1360 = vpop.f32.mrf.mxu0
    %v1361 = vadd.f32 %v393, %v1360
    %1362 = vdwg.mxu0
    %v1363 = vtanh.pop %v1361
    %v1364 = vld [vmem:[%s3 + $0x60] sm:$0xff]
    %v1365 = vld [vmem:[%s3 + $0x68] sm:$0xff]
    %v1366 = vld [vmem:[%s3 + $0x70] sm:$0xff]
    %v1367 = vld [vmem:[%s3 + $0x78] sm:$0xff]
    %v1368 = vld [vmem:[%s3 + $0x80] sm:$0xff]
    %v1369 = vld [vmem:[%s3 + $0x88] sm:$0xff]
    %v1370 = vld [vmem:[%s3 + $0x90] sm:$0xff]
    %v1371 = vld [vmem:[%s3 + $0x98] sm:$0xff]
    %v1373 = vsel %vm41, %v1363, 0
    %1375 = vmatpush.msra.mxu0 0.0
    %1376 = vmatpush.msra.mxu0 0.0
    %1377 = vmatpush.msra.mxu0 0.0
    %1378 = vmatpush.msra.mxu0 0.0
    %1379 = vmatpush.msra.mxu0 0.0
    %1380 = vmatpush.msra.mxu0 0.0
    %1381 = vmatpush.msra.mxu0 0.0
    %1382 = vmatpush.msra.mxu0 0.0
    %1383 = vmatpush.msra.mxu0 0.0
    %1384 = vmatpush.msra.mxu0 0.0
    %1385 = vmatpush.msra.mxu0 0.0
    %1386 = vmatpush.msra.mxu0 0.0
    %1387 = vmatpush.msra.mxu0 %v1371
    %1388 = vmatpush.msra.mxu0 %v1370
    %1389 = vmatpush.msra.mxu0 %v1369
    %1390 = vmatpush.msra.mxu0 %v1368
    %1391 = vmatmul.f32.gmra.mxu0 %v1373
    %v1392 = vpop.f32.mrf.mxu0
    %v1393 = vadd.f32 0.0, %v1392
    %1394 = vdwg.mxu0
    %1395 = vmatpush.msra.mxu0 0.0
    %1396 = vmatpush.msra.mxu0 0.0
    %1397 = vmatpush.msra.mxu0 0.0
    %1398 = vmatpush.msra.mxu0 0.0
    %1399 = vmatpush.msra.mxu0 0.0
    %1400 = vmatpush.msra.mxu0 0.0
    %1401 = vmatpush.msra.mxu0 0.0
    %1402 = vmatpush.msra.mxu0 0.0
    %1403 = vmatpush.msra.mxu0 0.0
    %1404 = vmatpush.msra.mxu0 0.0
    %1405 = vmatpush.msra.mxu0 0.0
    %1406 = vmatpush.msra.mxu0 0.0
    %1407 = vmatpush.msra.mxu0 %v1367
    %1408 = vmatpush.msra.mxu0 %v1366
    %1409 = vmatpush.msra.mxu0 %v1365
    %1410 = vmatpush.msra.mxu0 %v1364
    %1411 = vmatmul.f32.gmra.mxu0 %v1164
    %v1412 = vpop.f32.mrf.mxu0
    %v1413 = vadd.f32 %v1393, %v1412
    %1414 = vdwg.mxu0
    %v1415 = vadd.f32 %v1413, %v472
    %v1416 = vmax.f32 %v1415, 0.0
    %v1417 = vld [vmem:[%s3 + $0xa0] sm:$0xff]
    %v1418 = vld [vmem:[%s3 + $0xa8] sm:$0xff]
    %v1419 = vld [vmem:[%s3 + $0xb0] sm:$0xff]
    %v1420 = vld [vmem:[%s3 + $0xb8] sm:$0xff]
    %v1421 = vld [vmem:[%s3 + $0xc0] sm:$0xff]
    %v1422 = vld [vmem:[%s3 + $0xc8] sm:$0xff]
    %v1423 = vld [vmem:[%s3 + $0xd0] sm:$0xff]
    %v1424 = vld [vmem:[%s3 + $0xd8] sm:$0xff]
    %v1425 = vld [vmem:[%s3 + $0xe0] sm:$0xff]
    %v1426 = vld [vmem:[%s3 + $0xe8] sm:$0xff]
    %v1427 = vld [vmem:[%s3 + $0xf0] sm:$0xff]
    %v1428 = vld [vmem:[%s3 + $0xf8] sm:$0xff]
    %v1429 = vld [vmem:[%s3 + $0x100] sm:$0xff]
    %v1430 = vld [vmem:[%s3 + $0x108] sm:$0xff]
    %v1431 = vld [vmem:[%s3 + $0x110] sm:$0xff]
    %v1432 = vld [vmem:[%s3 + $0x118] sm:$0xff]
    %1433 = vmatpush.msra.mxu0 %v1432
    %1434 = vmatpush.msra.mxu0 %v1431
    %1435 = vmatpush.msra.mxu0 %v1430
    %1436 = vmatpush.msra.mxu0 %v1429
    %1437 = vmatpush.msra.mxu0 %v1428
    %1438 = vmatpush.msra.mxu0 %v1427
    %1439 = vmatpush.msra.mxu0 %v1426
    %1440 = vmatpush.msra.mxu0 %v1425
    %1441 = vmatpush.msra.mxu0 %v1424
    %1442 = vmatpush.msra.mxu0 %v1423
    %1443 = vmatpush.msra.mxu0 %v1422
    %1444 = vmatpush.msra.mxu0 %v1421
    %1445 = vmatpush.msra.mxu0 %v1420
    %1446 = vmatpush.msra.mxu0 %v1419
    %1447 = vmatpush.msra.mxu0 %v1418
    %1448 = vmatpush.msra.mxu0 %v1417
    %1449 = vmatmul.f32.gmra.mxu0 %v1416
    %v1450 = vpop.f32.mrf.mxu0
    %v1451 = vadd.f32 %v491, %v1450
    %1452 = vdwg.mxu0
    %v1453 = vmul.f32 %v1451, 3.0
    %v1454 = vsel %vm513, %v1453, -inf
    %1455 = vmax.xlane.f32.xlu0 %v1454
    %v1456 = vpop.xlane.xlu0 %1455
    %v1457 = vsub.f32 %v1453, %v1456
    %v1458 = vmul.f32 %v1457, 1.442695
    %v1459 = vpow.pop %v1458
    %v1460 = vsel %vm513, %v1459, 0.0
    %1461 = vadd.xlane.f32.xlu0 %v1460
    %v1462 = vpop.xlane.xlu0 %1461
    %v1463 = vlog2.pop %v1462
    %v1464 = vmul.f32 %v1463, 0.6931472
    %v1465 = vsub.f32 %v1457, %v1464
    %v1467 = vrot.slane %v1465, 1
    %1469 = vst [vmem:[#allocation2 + $0x2] sm:$0x1] %v1465
    %1470 = vst [vmem:[#allocation2 + $0x6] sm:$0x1] %v1467
    %s1471 = scalar_lea.vmem %s0, 6
    %v1472 = vld [vmem:[%s1471] sm:$0x3]
    %v1473 = vld [vmem:[%s3] sm:$0xff]
    %v1474 = vld [vmem:[%s3 + $0x8] sm:$0xff]
    %v1475 = vld [vmem:[%s3 + $0x10] sm:$0xff]
    %v1476 = vld [vmem:[%s3 + $0x18] sm:$0xff]
    %1477 = vmatpush.msra.mxu0 0.0
    %1478 = vmatpush.msra.mxu0 0.0
    %1479 = vmatpush.msra.mxu0 0.0
    %1480 = vmatpush.msra.mxu0 0.0
    %1481 = vmatpush.msra.mxu0 0.0
    %1482 = vmatpush.msra.mxu0 0.0
    %1483 = vmatpush.msra.mxu0 0.0
    %1484 = vmatpush.msra.mxu0 0.0
    %1485 = vmatpush.msra.mxu0 0.0
    %1486 = vmatpush.msra.mxu0 0.0
    %1487 = vmatpush.msra.mxu0 0.0
    %1488 = vmatpush.msra.mxu0 0.0
    %1489 = vmatpush.msra.mxu0 %v1476
    %1490 = vmatpush.msra.mxu0 %v1475
    %1491 = vmatpush.msra.mxu0 %v1474
    %1492 = vmatpush.msra.mxu0 %v1473
    %1493 = vmatmul.f32.gmra.mxu0 %v1097
    %v1494 = vpop.f32.mrf.mxu0
    %v1495 = vadd.f32 0.0, %v1494
    %1496 = vdwg.mxu0
    %v1497 = vadd.f32 %v1472, %v1495
    %v1498 = vadd.f32 %v1497, %v66
    %v1499 = vxor.u32 %v1498, 2147483648
    %v1500 = vmul.f32 %v1499, 1.442695
    %v1501 = vpow.pop %v1500
    %v1502 = vadd.f32 %v1501, 1.0
    %v1503 = vrcp.pop %v1502
    %v1504 = vmul.f32 %v1502, %v1503
    %v1505 = vsub.f32 1.0, %v1504
    %v1506 = vmul.f32 %v1503, %v1505
    %v1507 = vadd.f32 %v1503, %v1506
    %vm1508 = vweird.f32 %v1502
    %vm1509 = vweird.f32 %v1503
    %vm1510 = vmor %vm1508, %vm1509
    %v1511 = vsel %vm1510, %v1503, %v1507
    %v1512 = vand.u32 2147483647, %v1502
    %vm1513 = vcmp.eq.f32.partialorder %v1512, 8.507059e+37
    %v1514 = vand.u32 %v1502, 2147483648
    %v1515 = vor.u32 1.1754944e-38, %v1514
    %v1516 = vsel %vm1513, %v1515, %v1511
    %v1517 = vmul.f32 1.0, %v1516
    %v1518 = vtanh.pop %v1498
    %v1519 = vmul.f32 %v1517, %v1059
    %1521 = vrot.lane.b32.xlu0 %v1518, 64
    %v1522 = vpop.permute.xlu0 %1521
    %v1524 = vmul.f32 %v1517, %v1522
    %1526 = vrot.lane.b32.xlu0 %v1524, 32
    %v1527 = vpop.permute.xlu0 %1526
    %v1529 = vadd.f32 %v1519, %v1527
    %v1530 = vtanh.pop %v1529
    %1532 = vrot.lane.b32.xlu0 %v1530, 64
    %v1533 = vpop.permute.xlu0 %1532
    %v1535 = vmul.f32 %v1517, %v1533
    %v1536 = vld [vmem:[%s3 + $0x20] sm:$0xff]
    %v1537 = vld [vmem:[%s3 + $0x28] sm:$0xff]
    %v1538 = vld [vmem:[%s3 + $0x30] sm:$0xff]
    %v1539 = vld [vmem:[%s3 + $0x38] sm:$0xff]
    %v1540 = vld [vmem:[%s3 + $0x40] sm:$0xff]
    %v1541 = vld [vmem:[%s3 + $0x48] sm:$0xff]
    %v1542 = vld [vmem:[%s3 + $0x50] sm:$0xff]
    %v1543 = vld [vmem:[%s3 + $0x58] sm:$0xff]
    %1544 = vmatpush.msra.mxu0 0.0
    %1545 = vmatpush.msra.mxu0 0.0
    %1546 = vmatpush.msra.mxu0 0.0
    %1547 = vmatpush.msra.mxu0 0.0
    %1548 = vmatpush.msra.mxu0 0.0
    %1549 = vmatpush.msra.mxu0 0.0
    %1550 = vmatpush.msra.mxu0 0.0
    %1551 = vmatpush.msra.mxu0 0.0
    %1552 = vmatpush.msra.mxu0 0.0
    %1553 = vmatpush.msra.mxu0 0.0
    %1554 = vmatpush.msra.mxu0 0.0
    %1555 = vmatpush.msra.mxu0 0.0
    %1556 = vmatpush.msra.mxu0 %v1543
    %1557 = vmatpush.msra.mxu0 %v1542
    %1558 = vmatpush.msra.mxu0 %v1541
    %1559 = vmatpush.msra.mxu0 %v1540
    %1560 = vmatmul.f32.gmra.mxu0 %v1164
    %v1561 = vpop.f32.mrf.mxu0
    %v1562 = vadd.f32 0.0, %v1561
    %1563 = vdwg.mxu0
    %1565 = vrot.lane.b32.xlu0 %v1535, 32
    %v1566 = vpop.permute.xlu0 %1565
    %v1567 = vsel %vm41, %v1566, 0
    %1569 = vmatpush.msra.mxu0 0.0
    %1570 = vmatpush.msra.mxu0 0.0
    %1571 = vmatpush.msra.mxu0 0.0
    %1572 = vmatpush.msra.mxu0 0.0
    %1573 = vmatpush.msra.mxu0 0.0
    %1574 = vmatpush.msra.mxu0 0.0
    %1575 = vmatpush.msra.mxu0 0.0
    %1576 = vmatpush.msra.mxu0 0.0
    %1577 = vmatpush.msra.mxu0 0.0
    %1578 = vmatpush.msra.mxu0 0.0
    %1579 = vmatpush.msra.mxu0 0.0
    %1580 = vmatpush.msra.mxu0 0.0
    %1581 = vmatpush.msra.mxu0 %v1539
    %1582 = vmatpush.msra.mxu0 %v1538
    %1583 = vmatpush.msra.mxu0 %v1537
    %1584 = vmatpush.msra.mxu0 %v1536
    %1585 = vmatmul.f32.gmra.mxu0 %v1567
    %v1586 = vpop.f32.mrf.mxu0
    %v1587 = vadd.f32 %v1562, %v1586
    %1588 = vdwg.mxu0
    %v1589 = vadd.f32 %v1587, %v165
    %v1590 = vxor.u32 %v1589, 2147483648
    %v1591 = vmul.f32 %v1590, 1.442695
    %v1592 = vpow.pop %v1591
    %v1593 = vadd.f32 %v1592, 1.0
    %v1594 = vrcp.pop %v1593
    %v1595 = vmul.f32 %v1593, %v1594
    %v1596 = vsub.f32 1.0, %v1595
    %v1597 = vmul.f32 %v1594, %v1596
    %v1598 = vadd.f32 %v1594, %v1597
    %vm1599 = vweird.f32 %v1593
    %vm1600 = vweird.f32 %v1594
    %vm1601 = vmor %vm1599, %vm1600
    %v1602 = vsel %vm1601, %v1594, %v1598
    %v1603 = vand.u32 2147483647, %v1593
    %vm1604 = vcmp.eq.f32.partialorder %v1603, 8.507059e+37
    %v1605 = vand.u32 %v1593, 2147483648
    %v1606 = vor.u32 1.1754944e-38, %v1605
    %v1607 = vsel %vm1604, %v1606, %v1602
    %v1608 = vmul.f32 1.0, %v1607
    %v1609 = vtanh.pop %v1589
    %v1610 = vmul.f32 %v1608, %v1150
    %1612 = vrot.lane.b32.xlu0 %v1609, 64
    %v1613 = vpop.permute.xlu0 %1612
    %v1615 = vmul.f32 %v1608, %v1613
    %1617 = vrot.lane.b32.xlu0 %v1615, 32
    %v1618 = vpop.permute.xlu0 %1617
    %v1620 = vadd.f32 %v1610, %v1618
    %v1621 = vtanh.pop %v1620
    %1623 = vrot.lane.b32.xlu0 %v1621, 64
    %v1624 = vpop.permute.xlu0 %1623
    %v1626 = vmul.f32 %v1608, %v1624
    %v1627 = vld [vmem:[%s3 + $0x120] sm:$0xff]
    %v1628 = vld [vmem:[%s3 + $0x128] sm:$0xff]
    %v1629 = vld [vmem:[%s3 + $0x130] sm:$0xff]
    %v1630 = vld [vmem:[%s3 + $0x138] sm:$0xff]
    %1632 = vrot.lane.b32.xlu0 %v1626, 32
    %v1633 = vpop.permute.xlu0 %1632
    %v1634 = vsel %vm41, %v1633, 0
    %1636 = vmatpush.msra.mxu0 0.0
    %1637 = vmatpush.msra.mxu0 0.0
    %1638 = vmatpush.msra.mxu0 0.0
    %1639 = vmatpush.msra.mxu0 0.0
    %1640 = vmatpush.msra.mxu0 0.0
    %1641 = vmatpush.msra.mxu0 0.0
    %1642 = vmatpush.msra.mxu0 0.0
    %1643 = vmatpush.msra.mxu0 0.0
    %1644 = vmatpush.msra.mxu0 0.0
    %1645 = vmatpush.msra.mxu0 0.0
    %1646 = vmatpush.msra.mxu0 0.0
    %1647 = vmatpush.msra.mxu0 0.0
    %1648 = vmatpush.msra.mxu0 %v1630
    %1649 = vmatpush.msra.mxu0 %v1629
    %1650 = vmatpush.msra.mxu0 %v1628
    %1651 = vmatpush.msra.mxu0 %v1627
    %1652 = vmatmul.f32.gmra.mxu0 %v1634
    %v1653 = vpop.f32.mrf.mxu0
    %v1654 = vadd.f32 %v212, %v1653
    %1655 = vdwg.mxu0
    %v1657 = vrot.slane %v1654, 1
    %v1658 = vperm.slane %v1654, 0
    %v1659 = vperm.slane %v1657, 0
    %v1662 = vadd.f32 %v20, %v1658
    %v1663 = vadd.f32 %v21, %v1659
    %v1664 = vtanh.pop %v1662
    %v1665 = vtanh.pop %v1663
    %v1666 = vld [vmem:[%s3 + $0x1a0] sm:$0xff]
    %v1667 = vld [vmem:[%s3 + $0x1a8] sm:$0xff]
    %v1668 = vld [vmem:[%s3 + $0x1b0] sm:$0xff]
    %v1669 = vld [vmem:[%s3 + $0x1b8] sm:$0xff]
    %v1670 = vld [vmem:[%s3 + $0x1c0] sm:$0xff]
    %v1671 = vld [vmem:[%s3 + $0x1c8] sm:$0xff]
    %v1672 = vld [vmem:[%s3 + $0x1d0] sm:$0xff]
    %v1673 = vld [vmem:[%s3 + $0x1d8] sm:$0xff]
    %v1674 = vld [vmem:[%s3 + $0x1e0] sm:$0xff]
    %v1675 = vld [vmem:[%s3 + $0x1e8] sm:$0xff]
    %v1676 = vld [vmem:[%s3 + $0x1f0] sm:$0xff]
    %v1677 = vld [vmem:[%s3 + $0x1f8] sm:$0xff]
    %v1679 = vsel %vm260, %v1664, 0
    %v1682 = vsel %vm260, %v1665, 0
    %1684 = vmatpush.msra.mxu0 0.0
    %1685 = vmatpush.msra.mxu0 0.0
    %1686 = vmatpush.msra.mxu0 0.0
    %1687 = vmatpush.msra.mxu0 0.0
    %1688 = vmatpush.msra.mxu0 %v1677
    %1689 = vmatpush.msra.mxu0 %v1676
    %1690 = vmatpush.msra.mxu0 %v1675
    %1691 = vmatpush.msra.mxu0 %v1674
    %1692 = vmatpush.msra.mxu0 %v1673
    %1693 = vmatpush.msra.mxu0 %v1672
    %1694 = vmatpush.msra.mxu0 %v1671
    %1695 = vmatpush.msra.mxu0 %v1670
    %1696 = vmatpush.msra.mxu0 %v1669
    %1697 = vmatpush.msra.mxu0 %v1668
    %1698 = vmatpush.msra.mxu0 %v1667
    %1699 = vmatpush.msra.mxu0 %v1666
    %1700 = vmatmul.f32.gmra.mxu0 %v1679
    %v1701 = vpop.f32.mrf.mxu0
    %v1702 = vadd.f32 0.0, %v1701
    %1703 = vmatmul.f32.gmra.mxu0 %v1682
    %v1704 = vpop.f32.mrf.mxu0
    %v1705 = vadd.f32 0.0, %v1704
    %1706 = vdwg.mxu0
    %v1707 = vadd.f32 %v1702, %v22
    %v1708 = vadd.f32 %v1705, %v22
    %v1709 = vsel %vm292, %v1707, -inf
    %v1710 = vrot.slane %v1709, 4
    %v1711 = vmax.f32 %v1709, %v1710
    %v1712 = vrot.slane %v1711, 2
    %v1713 = vmax.f32 %v1711, %v1712
    %v1714 = vrot.slane %v1713, 1
    %v1715 = vmax.f32 %v1713, %v1714
    %v1716 = vsel %vm292, %v1708, -inf
    %v1717 = vrot.slane %v1716, 4
    %v1718 = vmax.f32 %v1716, %v1717
    %v1719 = vrot.slane %v1718, 2
    %v1720 = vmax.f32 %v1718, %v1719
    %v1721 = vrot.slane %v1720, 1
    %v1722 = vmax.f32 %v1720, %v1721
    %v1723 = vsub.f32 %v1707, %v1715
    %v1724 = vsub.f32 %v1708, %v1722
    %v1725 = vmul.f32 %v1723, 1.442695
    %v1726 = vpow.pop %v1725
    %v1727 = vmul.f32 %v1724, 1.442695
    %v1728 = vpow.pop %v1727
    %v1729 = vsel %vm292, %v1726, 0.0
    %v1730 = vrot.slane %v1729, 4
    %v1731 = vadd.f32 %v1729, %v1730
    %v1732 = vrot.slane %v1731, 2
    %v1733 = vadd.f32 %v1731, %v1732
    %v1734 = vrot.slane %v1733, 1
    %v1735 = vadd.f32 %v1733, %v1734
    %v1736 = vsel %vm292, %v1728, 0.0
    %v1737 = vrot.slane %v1736, 4
    %v1738 = vadd.f32 %v1736, %v1737
    %v1739 = vrot.slane %v1738, 2
    %v1740 = vadd.f32 %v1738, %v1739
    %v1741 = vrot.slane %v1740, 1
    %v1742 = vadd.f32 %v1740, %v1741
    %v1743 = vrcp.pop %v1735
    %v1744 = vrcp.pop %v1742
    %v1745 = vmul.f32 %v1726, %v1743
    %v1746 = vmul.f32 %v1728, %v1744
    %v1747 = vld [vmem:[%s3 + $0x200] sm:$0x7]
    %v1749 = vsel %vm292, %v1745, 0
    %v1752 = vsel %vm292, %v1746, 0
    %v1755 = vsel %vm338, %v1747, 0
    %1757 = vmatpush.msra.mxu0 0.0
    %1758 = vmatpush.msra.mxu0 0.0
    %1759 = vmatpush.msra.mxu0 0.0
    %1760 = vmatpush.msra.mxu0 0.0
    %1761 = vmatpush.msra.mxu0 0.0
    %1762 = vmatpush.msra.mxu0 0.0
    %1763 = vmatpush.msra.mxu0 0.0
    %1764 = vmatpush.msra.mxu0 0.0
    %1765 = vmatpush.msra.mxu0 0.0
    %1766 = vmatpush.msra.mxu0 0.0
    %1767 = vmatpush.msra.mxu0 0.0
    %1768 = vmatpush.msra.mxu0 0.0
    %1769 = vmatpush.msra.mxu0 0.0
    %1770 = vmatpush.msra.mxu0 0.0
    %1771 = vmatpush.msra.mxu0 0.0
    %1772 = vmatpush.msra.mxu0 %v1755
    %1773 = vmatmul.f32.gmra.mxu0 %v1749
    %v1774 = vpop.f32.mrf.mxu0
    %v1775 = vadd.f32 0.0, %v1774
    %1776 = vmatmul.f32.gmra.mxu0 %v1752
    %v1777 = vpop.f32.mrf.mxu0
    %v1778 = vadd.f32 0.0, %v1777
    %1779 = vdwg.mxu0
    %v1780 = vmul.f32 %v20, %v1775
    %v1781 = vmul.f32 %v21, %v1778
    %v1782 = vsel %vm260, %v1780, 0.0
    %v1783 = vrot.slane %v1782, 4
    %v1784 = vadd.f32 %v1782, %v1783
    %v1785 = vrot.slane %v1784, 2
    %v1786 = vadd.f32 %v1784, %v1785
    %v1787 = vrot.slane %v1786, 1
    %v1788 = vadd.f32 %v1786, %v1787
    %v1789 = vsel %vm260, %v1781, 0.0
    %v1790 = vrot.slane %v1789, 4
    %v1791 = vadd.f32 %v1789, %v1790
    %v1792 = vrot.slane %v1791, 2
    %v1793 = vadd.f32 %v1791, %v1792
    %v1794 = vrot.slane %v1793, 1
    %v1795 = vadd.f32 %v1793, %v1794
    %v1796 = vld [vmem:[%s3 + $0x140] sm:$0xff]
    %v1797 = vld [vmem:[%s3 + $0x148] sm:$0xff]
    %v1798 = vld [vmem:[%s3 + $0x150] sm:$0xff]
    %v1799 = vld [vmem:[%s3 + $0x158] sm:$0xff]
    %v1800 = vld [vmem:[%s3 + $0x160] sm:$0xff]
    %v1801 = vld [vmem:[%s3 + $0x168] sm:$0xff]
    %v1802 = vld [vmem:[%s3 + $0x170] sm:$0xff]
    %v1803 = vld [vmem:[%s3 + $0x178] sm:$0xff]
    %v1804 = vld [vmem:[%s3 + $0x180] sm:$0xff]
    %v1805 = vld [vmem:[%s3 + $0x188] sm:$0xff]
    %v1806 = vld [vmem:[%s3 + $0x190] sm:$0xff]
    %v1807 = vld [vmem:[%s3 + $0x198] sm:$0xff]
    %v1810 = vsel %vm396, %v1795, %v1788
    %v1811 = vsel %vm260, %v1810, 0
    %1813 = vmatpush.msra.mxu0 0.0
    %1814 = vmatpush.msra.mxu0 0.0
    %1815 = vmatpush.msra.mxu0 0.0
    %1816 = vmatpush.msra.mxu0 0.0
    %1817 = vmatpush.msra.mxu0 %v1807
    %1818 = vmatpush.msra.mxu0 %v1806
    %1819 = vmatpush.msra.mxu0 %v1805
    %1820 = vmatpush.msra.mxu0 %v1804
    %1821 = vmatpush.msra.mxu0 %v1803
    %1822 = vmatpush.msra.mxu0 %v1802
    %1823 = vmatpush.msra.mxu0 %v1801
    %1824 = vmatpush.msra.mxu0 %v1800
    %1825 = vmatpush.msra.mxu0 %v1799
    %1826 = vmatpush.msra.mxu0 %v1798
    %1827 = vmatpush.msra.mxu0 %v1797
    %1828 = vmatpush.msra.mxu0 %v1796
    %1829 = vmatmul.f32.gmra.mxu0 %v1811
    %v1830 = vpop.f32.mrf.mxu0
    %v1831 = vadd.f32 %v393, %v1830
    %1832 = vdwg.mxu0
    %v1833 = vtanh.pop %v1831
    %v1834 = vld [vmem:[%s3 + $0x60] sm:$0xff]
    %v1835 = vld [vmem:[%s3 + $0x68] sm:$0xff]
    %v1836 = vld [vmem:[%s3 + $0x70] sm:$0xff]
    %v1837 = vld [vmem:[%s3 + $0x78] sm:$0xff]
    %v1838 = vld [vmem:[%s3 + $0x80] sm:$0xff]
    %v1839 = vld [vmem:[%s3 + $0x88] sm:$0xff]
    %v1840 = vld [vmem:[%s3 + $0x90] sm:$0xff]
    %v1841 = vld [vmem:[%s3 + $0x98] sm:$0xff]
    %v1843 = vsel %vm41, %v1833, 0
    %1845 = vmatpush.msra.mxu0 0.0
    %1846 = vmatpush.msra.mxu0 0.0
    %1847 = vmatpush.msra.mxu0 0.0
    %1848 = vmatpush.msra.mxu0 0.0
    %1849 = vmatpush.msra.mxu0 0.0
    %1850 = vmatpush.msra.mxu0 0.0
    %1851 = vmatpush.msra.mxu0 0.0
    %1852 = vmatpush.msra.mxu0 0.0
    %1853 = vmatpush.msra.mxu0 0.0
    %1854 = vmatpush.msra.mxu0 0.0
    %1855 = vmatpush.msra.mxu0 0.0
    %1856 = vmatpush.msra.mxu0 0.0
    %1857 = vmatpush.msra.mxu0 %v1841
    %1858 = vmatpush.msra.mxu0 %v1840
    %1859 = vmatpush.msra.mxu0 %v1839
    %1860 = vmatpush.msra.mxu0 %v1838
    %1861 = vmatmul.f32.gmra.mxu0 %v1843
    %v1862 = vpop.f32.mrf.mxu0
    %v1863 = vadd.f32 0.0, %v1862
    %1864 = vdwg.mxu0
    %1865 = vmatpush.msra.mxu0 0.0
    %1866 = vmatpush.msra.mxu0 0.0
    %1867 = vmatpush.msra.mxu0 0.0
    %1868 = vmatpush.msra.mxu0 0.0
    %1869 = vmatpush.msra.mxu0 0.0
    %1870 = vmatpush.msra.mxu0 0.0
    %1871 = vmatpush.msra.mxu0 0.0
    %1872 = vmatpush.msra.mxu0 0.0
    %1873 = vmatpush.msra.mxu0 0.0
    %1874 = vmatpush.msra.mxu0 0.0
    %1875 = vmatpush.msra.mxu0 0.0
    %1876 = vmatpush.msra.mxu0 0.0
    %1877 = vmatpush.msra.mxu0 %v1837
    %1878 = vmatpush.msra.mxu0 %v1836
    %1879 = vmatpush.msra.mxu0 %v1835
    %1880 = vmatpush.msra.mxu0 %v1834
    %1881 = vmatmul.f32.gmra.mxu0 %v1634
    %v1882 = vpop.f32.mrf.mxu0
    %v1883 = vadd.f32 %v1863, %v1882
    %1884 = vdwg.mxu0
    %v1885 = vadd.f32 %v1883, %v472
    %v1886 = vmax.f32 %v1885, 0.0
    %v1887 = vld [vmem:[%s3 + $0xa0] sm:$0xff]
    %v1888 = vld [vmem:[%s3 + $0xa8] sm:$0xff]
    %v1889 = vld [vmem:[%s3 + $0xb0] sm:$0xff]
    %v1890 = vld [vmem:[%s3 + $0xb8] sm:$0xff]
    %v1891 = vld [vmem:[%s3 + $0xc0] sm:$0xff]
    %v1892 = vld [vmem:[%s3 + $0xc8] sm:$0xff]
    %v1893 = vld [vmem:[%s3 + $0xd0] sm:$0xff]
    %v1894 = vld [vmem:[%s3 + $0xd8] sm:$0xff]
    %v1895 = vld [vmem:[%s3 + $0xe0] sm:$0xff]
    %v1896 = vld [vmem:[%s3 + $0xe8] sm:$0xff]
    %v1897 = vld [vmem:[%s3 + $0xf0] sm:$0xff]
    %v1898 = vld [vmem:[%s3 + $0xf8] sm:$0xff]
    %v1899 = vld [vmem:[%s3 + $0x100] sm:$0xff]
    %v1900 = vld [vmem:[%s3 + $0x108] sm:$0xff]
    %v1901 = vld [vmem:[%s3 + $0x110] sm:$0xff]
    %v1902 = vld [vmem:[%s3 + $0x118] sm:$0xff]
    %1903 = vmatpush.msra.mxu0 %v1902
    %1904 = vmatpush.msra.mxu0 %v1901
    %1905 = vmatpush.msra.mxu0 %v1900
    %1906 = vmatpush.msra.mxu0 %v1899
    %1907 = vmatpush.msra.mxu0 %v1898
    %1908 = vmatpush.msra.mxu0 %v1897
    %1909 = vmatpush.msra.mxu0 %v1896
    %1910 = vmatpush.msra.mxu0 %v1895
    %1911 = vmatpush.msra.mxu0 %v1894
    %1912 = vmatpush.msra.mxu0 %v1893
    %1913 = vmatpush.msra.mxu0 %v1892
    %1914 = vmatpush.msra.mxu0 %v1891
    %1915 = vmatpush.msra.mxu0 %v1890
    %1916 = vmatpush.msra.mxu0 %v1889
    %1917 = vmatpush.msra.mxu0 %v1888
    %1918 = vmatpush.msra.mxu0 %v1887
    %1919 = vmatmul.f32.gmra.mxu0 %v1886
    %v1920 = vpop.f32.mrf.mxu0
    %v1921 = vadd.f32 %v491, %v1920
    %1922 = vdwg.mxu0
    %v1923 = vmul.f32 %v1921, 3.0
    %v1924 = vsel %vm513, %v1923, -inf
    %1925 = vmax.xlane.f32.xlu0 %v1924
    %v1926 = vpop.xlane.xlu0 %1925
    %v1927 = vsub.f32 %v1923, %v1926
    %v1928 = vmul.f32 %v1927, 1.442695
    %v1929 = vpow.pop %v1928
    %v1930 = vsel %vm513, %v1929, 0.0
    %1931 = vadd.xlane.f32.xlu0 %v1930
    %v1932 = vpop.xlane.xlu0 %1931
    %v1933 = vlog2.pop %v1932
    %v1934 = vmul.f32 %v1933, 0.6931472
    %v1935 = vsub.f32 %v1927, %v1934
    %v1937 = vrot.slane %v1935, 1
    %1939 = vst [vmem:[#allocation2 + $0x3] sm:$0x1] %v1935
    %1940 = vst [vmem:[#allocation2 + $0x7] sm:$0x1] %v1937
    %vm1942 = vcmask 254976
    %1943 = vst.msk [vmem:[%s5] sm:$0x3] %vm1942, %v1566
    %1945 = vrot.lane.b32.xlu0 %v1529, 96
    %v1946 = vpop.permute.xlu0 %1945
    %s1948 = scalar_lea.vmem %s5, 4
    %1949 = vst.msk [vmem:[%s1948] sm:$0x3] %vm1942, %v1946
    %s1951 = scalar_lea.vmem %s5, 2
    %1952 = vst.msk [vmem:[%s1951] sm:$0x3] %vm1942, %v1633
    %1954 = vrot.lane.b32.xlu0 %v1620, 96
    %v1955 = vpop.permute.xlu0 %1954
    %s1957 = scalar_lea.vmem %s5, 6
    %1958 = vst.msk [vmem:[%s1957] sm:$0x3] %vm1942, %v1955
    // Predicated region
    $region18: #{netg_forward.1} parent=1 // pred_check
      _
    $region19: #{netg_forward.1} parent=1 // pred_check_branch
      %1960 = sbr.rel (0) target = $region21
    $region20: #{netg_forward.1} parent=1 // pred_region
      %1962 = vsyncadd [#allocation3], 0
      %s1963 = sshll.u32 [#allocation2], 4
      %s1964 = int_to_ptr.vmem [resolvable:$true] %s1963
      %s1965 = sshll.u32 %s4, 4
      %s1966 = int_to_ptr.hbm [resolvable:$true] %s1965
      %1971 = dma.vmem_to_hbm [thread:$0]  %s1964, 128, %s1966, [#allocation3], 64, 64, 4
    $region21: #{netg_forward.1} parent=1 // pred_fallthru
      _
    // Predicated region
    $region22: #{netg_forward.1} parent=1 // pred_check
      _
    $region23: #{netg_forward.1} parent=1 // pred_check_branch
      %1973 = sbr.rel (0) target = $region25
    $region24: #{netg_forward.1} parent=1 // pred_region
      _
    $region25: #{netg_forward.1} parent=1 // pred_fallthru
      _
    // Predicated region
    $region26: #{netg_forward.1} parent=1 // pred_check
      _
    $region27: #{netg_forward.1} parent=1 // pred_check_branch
      %1975 = sbr.rel (0) target = $region29
    $region28: #{netg_forward.1} parent=1 // pred_region
      %1977 = dma.done [#allocation3], 128
    $region29: #{netg_forward.1} parent=1 // pred_fallthru
      _
    // Predicated region
    $region30: #{netg_forward.1} parent=1 // pred_check
      _
    $region31: #{netg_forward.1} parent=1 // pred_check_branch
      %1979 = sbr.rel (0) target = $region33
    $region32: #{netg_forward.1} parent=1 // pred_region
      _
    $region33: #{netg_forward.1} parent=1 // pred_fallthru
      _
    %1980 = vsyncpa [#allocation3], 1

</llo_original>
